<compile_context>
chip_gen: v7x
topology: tpu7x:2x2x1
jax: 0.10.0
libtpu: 0.0.40
codegen_flags: <defaults>
</compile_context>

<pallas_src>
import jax
import jax.numpy as jnp
from jax.experimental import pallas as pl
from jax.experimental.pallas import tpu as pltpu

# ---- static config -------------------------------------------------------
CHANNELS = 4
IMG_SIZE = 16
N_CLASSES = 10
N_FEATURES = CHANNELS * IMG_SIZE * IMG_SIZE   # 1024
X_GROUPS, X_K, X_PAD = 240, 5, 256            # x_map maxout pieces padded 240 -> 256 lanes
Y_GROUPS, Y_K, Y_PAD = 50, 5, 128             # y_map maxout pieces padded 50  -> 128 lanes
J_GROUPS, J_K, J_PAD = 240, 4, 256            # j_map maxout pieces padded 240 -> 256 lanes


def _round_up(n, m):
    return ((n + m - 1) // m) * m


def _disc_kernel(x_ref, y_ref,
                 wx_ref, bx_ref,
                 wy_ref, by_ref,
                 wjx_ref, wjy_ref, bj_ref,
                 wo_ref, bo_ref,
                 out_ref):
    x = x_ref[...]                               # (TB, 1024) bf16 (cast fused upstream)
    y = y_ref[...]                               # (TB, 10)   bf16 (one-hot -> exact)

    # ---- x_map: ONE wide matmul, maxout over 5 lane-aligned 256-wide slices.
    vx = jnp.dot(x, wx_ref[...], preferred_element_type=jnp.float32) + bx_ref[...]
    hx = vx[:, 0:X_PAD]
    for s in range(1, X_K):
        hx = jnp.maximum(hx, vx[:, s * X_PAD:(s + 1) * X_PAD])
    # padded columns 240:256 are exactly 0 in every piece -> stay 0 after max.

    # ---- y_map: ONE matmul, maxout over 5 lane-aligned 128-wide slices.
    vy = jnp.dot(y, wy_ref[...], preferred_element_type=jnp.float32) + by_ref[...]
    hy = vy[:, 0:Y_PAD]
    for s in range(1, Y_K):
        hy = jnp.maximum(hy, vy[:, s * Y_PAD:(s + 1) * Y_PAD])

    # ---- j_map: concat([hx, hy]) folded into two matmuls, maxout over 4 slices.
    vj = (jnp.dot(hx.astype(jnp.bfloat16), wjx_ref[...],
                  preferred_element_type=jnp.float32)
          + jnp.dot(hy.astype(jnp.bfloat16), wjy_ref[...],
                    preferred_element_type=jnp.float32)
          + bj_ref[...])
    hj = vj[:, 0:J_PAD]
    for s in range(1, J_K):
        hj = jnp.maximum(hj, vj[:, s * J_PAD:(s + 1) * J_PAD])

    # ---- final Linear(240, 1) + Sigmoid via VPU multiply + lane reduce
    # (avoids an N=1 MXU pass; wo padded columns are 0 so they contribute 0).
    logits = jnp.sum(hj * wo_ref[...], axis=-1, keepdims=True) + bo_ref[...]
    out_ref[...] = jax.nn.sigmoid(logits)


# ---- one-time weight preparation (hoisted out of the per-forward path) ----
def _fuse_maxout_weight(w, b, groups, k, gpad):
    """w: (in, groups*k), b: (groups*k,) with PyTorch column layout col = g*k + j.
    Returns w_fused (in, k*gpad), b_fused (1, k*gpad) where slice
    [s*gpad:(s+1)*gpad] holds maxout piece s, zero-padded from `groups` to `gpad`."""
    in_dim = w.shape[0]
    wp = w.reshape(in_dim, groups, k).transpose(2, 0, 1)           # (k, in, groups)
    bp = b.reshape(groups, k).T                                    # (k, groups)
    wpad = jnp.zeros((k, in_dim, gpad), jnp.float32).at[:, :, :groups].set(wp)
    bpad = jnp.zeros((k, gpad), jnp.float32).at[:, :groups].set(bp)
    w_fused = wpad.transpose(1, 0, 2).reshape(in_dim, k * gpad)
    b_fused = bpad.reshape(1, k * gpad)
    return w_fused, b_fused


def prepare_params(params):
    """Split/fuse/pad/cast the PyTorch-layout weights once."""
    wx, bx = _fuse_maxout_weight(params["Wx"], params["bx"], X_GROUPS, X_K, X_PAD)
    wy, by = _fuse_maxout_weight(params["Wy"], params["by"], Y_GROUPS, Y_K, Y_PAD)
    wj, bj = _fuse_maxout_weight(params["Wj"], params["bj"], J_GROUPS, J_K, J_PAD)
    # concat([hx, hy]) folded: rows 0:240 of Wj act on hx, rows 240:290 on hy.
    # NOTE: the zero pad rows/cols below MUST stay exactly zero (maxout-pad trick).
    wjx = jnp.zeros((X_PAD, J_K * J_PAD), jnp.float32).at[:X_GROUPS].set(wj[:X_GROUPS])
    wjy = jnp.zeros((Y_PAD, J_K * J_PAD), jnp.float32).at[:Y_GROUPS].set(wj[X_GROUPS:])
    wo = jnp.zeros((1, J_PAD), jnp.float32).at[0, :J_GROUPS].set(params["Wo"][:, 0])
    bo = params["bo"].reshape(1, 1).astype(jnp.float32)
    return dict(
        wx=wx.astype(jnp.bfloat16), bx=bx,              # (1024, 1280) bf16, (1, 1280) f32
        wy=wy.astype(jnp.bfloat16), by=by,              # (10, 640) bf16, (1, 640) f32
        wjx=wjx.astype(jnp.bfloat16),                   # (256, 1024) bf16
        wjy=wjy.astype(jnp.bfloat16),                   # (128, 1024) bf16
        bj=bj,                                          # (1, 1024) f32
        wo=wo, bo=bo,                                   # (1, 256), (1, 1) f32
    )


def discriminator_forward(x_img, y_onehot, prepped, *, batch_tile=1024):
    """x_img: (B, C, H, W) NCHW; y_onehot: (B, n_classes). Returns (B, 1) f32."""
    B = x_img.shape[0]
    # Reshape + bf16 cast; fused with the pad by XLA when this wrapper is jitted
    # (no standalone HBM pass for the cast).
    x = x_img.reshape(B, N_FEATURES).astype(jnp.bfloat16)   # x.view(-1, n_features)
    y = y_onehot.reshape(B, N_CLASSES).astype(jnp.bfloat16)  # one-hot -> exact in bf16

    if B <= 256:
        # Tiny batch: one minimal tile (8-row sublane alignment), no wasted rows.
        TB = _round_up(B, 8)
    else:
        # >= 2 grid steps so v7x's two TensorCores both get batch tiles;
        # keep the tile a multiple of 256, capped at batch_tile (1024 default
        # fits the 48 MiB VMEM budget on every generation incl. v7x's 64 MiB).
        TB = min(batch_tile, _round_up((B + 1) // 2, 256))
    Bp = _round_up(B, TB)
    if Bp != B:
        x = jnp.pad(x, ((0, Bp - B), (0, 0)))
        y = jnp.pad(y, ((0, Bp - B), (0, 0)))

    # Weights/biases: constant index_map -> resident in VMEM across grid steps;
    # Buffered(1) -> single buffer (no pointless double-buffering of constants).
    def w_spec(arr):
        return pl.BlockSpec(arr.shape, lambda i: (0, 0),
                            pipeline_mode=pl.Buffered(1))

    out = pl.pallas_call(
        _disc_kernel,
        out_shape=jax.ShapeDtypeStruct((Bp, 1), jnp.float32),
        grid=(Bp // TB,),
        in_specs=[
            pl.BlockSpec((TB, N_FEATURES), lambda i: (i, 0)),   # x (batch tiled, bf16)
            pl.BlockSpec((TB, N_CLASSES), lambda i: (i, 0)),    # y (batch tiled, bf16)
            w_spec(prepped["wx"]), w_spec(prepped["bx"]),
            w_spec(prepped["wy"]), w_spec(prepped["by"]),
            w_spec(prepped["wjx"]), w_spec(prepped["wjy"]), w_spec(prepped["bj"]),
            w_spec(prepped["wo"]), w_spec(prepped["bo"]),
        ],
        out_specs=pl.BlockSpec((TB, 1), lambda i: (i, 0)),
        compiler_params=pltpu.CompilerParams(
            dimension_semantics=("parallel",),
            vmem_limit_bytes=48 * 1024 * 1024,
        ),
    )(x, y,
      prepped["wx"], prepped["bx"],
      prepped["wy"], prepped["by"],
      prepped["wjx"], prepped["wjy"], prepped["bj"],
      prepped["wo"], prepped["bo"])

    return out[:B] if Bp != B else out


# jitted entry point so reshape/cast/pad fuse into one producer pass.
discriminator_forward_jit = jax.jit(discriminator_forward,
                                    static_argnames=("batch_tile",))


# ---- init & reference (verification only) --------------------------------
def init_params(key):
    """Deterministic init mimicking PyTorch Linear default U(-1/sqrt(in), 1/sqrt(in))."""
    def linear(key, fan_in, fan_out):
        k1, k2 = jax.random.split(key)
        lim = 1.0 / jnp.sqrt(jnp.float32(fan_in))
        w = jax.random.uniform(k1, (fan_in, fan_out), jnp.float32, -lim, lim)
        b = jax.random.uniform(k2, (fan_out,), jnp.float32, -lim, lim)
        return w, b

    ks = jax.random.split(key, 4)
    Wx, bx = linear(ks[0], N_FEATURES, X_GROUPS * X_K)           # (1024, 1200)
    Wy, by = linear(ks[1], N_CLASSES, Y_GROUPS * Y_K)            # (10, 250)
    Wj, bj = linear(ks[2], X_GROUPS + Y_GROUPS, J_GROUPS * J_K)  # (290, 960)
    Wo, bo = linear(ks[3], J_GROUPS, 1)                          # (240, 1)
    return dict(Wx=Wx, bx=bx, Wy=Wy, by=by, Wj=Wj, bj=bj, Wo=Wo, bo=bo)


def _reference_forward(x_img, y_onehot, p):
    """Pure-JAX f32 reference matching the PyTorch forward."""
    B = x_img.shape[0]
    x = x_img.reshape(B, N_FEATURES)
    hx = (x @ p["Wx"] + p["bx"]).reshape(B, X_GROUPS, X_K).max(axis=2)
    y = y_onehot.reshape(B, N_CLASSES)
    hy = (y @ p["Wy"] + p["by"]).reshape(B, Y_GROUPS, Y_K).max(axis=2)
    j = jnp.concatenate([hx, hy], axis=1)
    hj = (j @ p["Wj"] + p["bj"]).reshape(B, J_GROUPS, J_K).max(axis=2)
    return jax.nn.sigmoid(hj @ p["Wo"] + p["bo"])


if __name__ == "__main__":
    key = jax.random.PRNGKey(0)
    k_params, k_x, k_y = jax.random.split(key, 3)

    params = init_params(k_params)
    prepped = prepare_params(params)   # one-time weight prep (hoisted out of fwd)

    B = 2
    x_img = jax.random.normal(k_x, (B, CHANNELS, IMG_SIZE, IMG_SIZE), jnp.float32)
    labels = jax.random.randint(k_y, (B,), 0, N_CLASSES)
    y_onehot = jax.nn.one_hot(labels, N_CLASSES, dtype=jnp.float32)

    prob = discriminator_forward_jit(x_img, y_onehot, prepped)
    prob = jax.block_until_ready(prob)

    ref = _reference_forward(x_img, y_onehot, params)
    assert prob.shape == (B, 1)
    # bf16 weights/activations vs f32 reference: relaxed tolerance (probabilities).
    assert jnp.allclose(prob, ref, atol=2e-2, rtol=0.0), (prob, ref)

    print("KERNEL_OK")
</pallas_src>

<mosaic_0001>
module attributes {stable_mosaic.version = 11 : i64} {
  func.func @_disc_kernel(%arg0: i32, %arg1: memref<8x1024xbf16, #tpu.memory_space<vmem>>, %arg2: memref<8x10xbf16, #tpu.memory_space<vmem>>, %arg3: memref<1024x1280xbf16, #tpu.memory_space<vmem>>, %arg4: memref<1x1280xf32, #tpu.memory_space<vmem>>, %arg5: memref<10x640xbf16, #tpu.memory_space<vmem>>, %arg6: memref<1x640xf32, #tpu.memory_space<vmem>>, %arg7: memref<256x1024xbf16, #tpu.memory_space<vmem>>, %arg8: memref<128x1024xbf16, #tpu.memory_space<vmem>>, %arg9: memref<1x1024xf32, #tpu.memory_space<vmem>>, %arg10: memref<1x256xf32, #tpu.memory_space<vmem>>, %arg11: memref<1x1xf32, #tpu.memory_space<vmem>>, %arg12: memref<8x1xf32, #tpu.memory_space<vmem>>) attributes {dimension_semantics = [#tpu.dimension_semantics<parallel>], iteration_bounds = array<i64: 1>, scalar_prefetch = 0 : i64, scratch_operands = 0 : i64, tpu.core_type = #tpu.core_type<tc>, window_params = [{transform_indices = @transform_0, window_bounds = array<i64: 8, 1024>}, {transform_indices = @transform_1, window_bounds = array<i64: 8, 10>}, {pipeline_mode = #tpu.pipeline_mode<synchronous>, transform_indices = @transform_2, window_bounds = array<i64: 1024, 1280>}, {pipeline_mode = #tpu.pipeline_mode<synchronous>, transform_indices = @transform_3, window_bounds = array<i64: 1, 1280>}, {pipeline_mode = #tpu.pipeline_mode<synchronous>, transform_indices = @transform_4, window_bounds = array<i64: 10, 640>}, {pipeline_mode = #tpu.pipeline_mode<synchronous>, transform_indices = @transform_5, window_bounds = array<i64: 1, 640>}, {pipeline_mode = #tpu.pipeline_mode<synchronous>, transform_indices = @transform_6, window_bounds = array<i64: 256, 1024>}, {pipeline_mode = #tpu.pipeline_mode<synchronous>, transform_indices = @transform_7, window_bounds = array<i64: 128, 1024>}, {pipeline_mode = #tpu.pipeline_mode<synchronous>, transform_indices = @transform_8, window_bounds = array<i64: 1, 1024>}, {pipeline_mode = #tpu.pipeline_mode<synchronous>, transform_indices = @transform_9, window_bounds = array<i64: 1, 256>}, {pipeline_mode = #tpu.pipeline_mode<synchronous>, transform_indices = @transform_10, window_bounds = array<i64: 1, 1>}, {transform_indices = @transform_11, window_bounds = array<i64: 8, 1>}]} {
    %c0 = arith.constant 0 : index
    %c0_0 = arith.constant 0 : index
    %0 = vector.load %arg1[%c0, %c0_0] : memref<8x1024xbf16, #tpu.memory_space<vmem>>, vector<8x1024xbf16>
    %c0_1 = arith.constant 0 : index
    %c0_2 = arith.constant 0 : index
    %1 = vector.load %arg2[%c0_1, %c0_2] : memref<8x10xbf16, #tpu.memory_space<vmem>>, vector<8x10xbf16>
    %c0_3 = arith.constant 0 : index
    %c0_4 = arith.constant 0 : index
    %2 = vector.load %arg3[%c0_3, %c0_4] : memref<1024x1280xbf16, #tpu.memory_space<vmem>>, vector<1024x1280xbf16>
    %cst = arith.constant dense<0.000000e+00> : vector<8x1280xf32>
    %3 = tpu.matmul %0, %2, %cst {dimension_numbers = #tpu.dot_dimension_numbers<[1], [0], [0], [1], [0, 0, 1, 1], [], []>} : vector<8x1024xbf16>, vector<1024x1280xbf16>, vector<8x1280xf32> -> vector<8x1280xf32>
    %c0_5 = arith.constant 0 : index
    %c0_6 = arith.constant 0 : index
    %4 = vector.load %arg4[%c0_5, %c0_6] : memref<1x1280xf32, #tpu.memory_space<vmem>>, vector<1x1280xf32>
    %5 = vector.broadcast %4 : vector<1x1280xf32> to vector<8x1280xf32>
    %6 = arith.addf %3, %5 : vector<8x1280xf32>
    %7 = vector.extract_strided_slice %6 {offsets = [0, 0], sizes = [8, 256], strides = [1, 1]} : vector<8x1280xf32> to vector<8x256xf32>
    %8 = vector.extract_strided_slice %6 {offsets = [0, 256], sizes = [8, 256], strides = [1, 1]} : vector<8x1280xf32> to vector<8x256xf32>
    %9 = arith.maximumf %7, %8 : vector<8x256xf32>
    %10 = vector.extract_strided_slice %6 {offsets = [0, 512], sizes = [8, 256], strides = [1, 1]} : vector<8x1280xf32> to vector<8x256xf32>
    %11 = arith.maximumf %9, %10 : vector<8x256xf32>
    %12 = vector.extract_strided_slice %6 {offsets = [0, 768], sizes = [8, 256], strides = [1, 1]} : vector<8x1280xf32> to vector<8x256xf32>
    %13 = arith.maximumf %11, %12 : vector<8x256xf32>
    %14 = vector.extract_strided_slice %6 {offsets = [0, 1024], sizes = [8, 256], strides = [1, 1]} : vector<8x1280xf32> to vector<8x256xf32>
    %15 = arith.maximumf %13, %14 : vector<8x256xf32>
    %c0_7 = arith.constant 0 : index
    %c0_8 = arith.constant 0 : index
    %16 = vector.load %arg5[%c0_7, %c0_8] : memref<10x640xbf16, #tpu.memory_space<vmem>>, vector<10x640xbf16>
    %cst_9 = arith.constant dense<0.000000e+00> : vector<8x640xf32>
    %17 = tpu.matmul %1, %16, %cst_9 {dimension_numbers = #tpu.dot_dimension_numbers<[1], [0], [0], [1], [0, 0, 1, 1], [], []>} : vector<8x10xbf16>, vector<10x640xbf16>, vector<8x640xf32> -> vector<8x640xf32>
    %c0_10 = arith.constant 0 : index
    %c0_11 = arith.constant 0 : index
    %18 = vector.load %arg6[%c0_10, %c0_11] : memref<1x640xf32, #tpu.memory_space<vmem>>, vector<1x640xf32>
    %19 = vector.broadcast %18 : vector<1x640xf32> to vector<8x640xf32>
    %20 = arith.addf %17, %19 : vector<8x640xf32>
    %21 = vector.extract_strided_slice %20 {offsets = [0, 0], sizes = [8, 128], strides = [1, 1]} : vector<8x640xf32> to vector<8x128xf32>
    %22 = vector.extract_strided_slice %20 {offsets = [0, 128], sizes = [8, 128], strides = [1, 1]} : vector<8x640xf32> to vector<8x128xf32>
    %23 = arith.maximumf %21, %22 : vector<8x128xf32>
    %24 = vector.extract_strided_slice %20 {offsets = [0, 256], sizes = [8, 128], strides = [1, 1]} : vector<8x640xf32> to vector<8x128xf32>
    %25 = arith.maximumf %23, %24 : vector<8x128xf32>
    %26 = vector.extract_strided_slice %20 {offsets = [0, 384], sizes = [8, 128], strides = [1, 1]} : vector<8x640xf32> to vector<8x128xf32>
    %27 = arith.maximumf %25, %26 : vector<8x128xf32>
    %28 = vector.extract_strided_slice %20 {offsets = [0, 512], sizes = [8, 128], strides = [1, 1]} : vector<8x640xf32> to vector<8x128xf32>
    %29 = arith.maximumf %27, %28 : vector<8x128xf32>
    %30 = arith.truncf %15 : vector<8x256xf32> to vector<8x256xbf16>
    %c0_12 = arith.constant 0 : index
    %c0_13 = arith.constant 0 : index
    %31 = vector.load %arg7[%c0_12, %c0_13] : memref<256x1024xbf16, #tpu.memory_space<vmem>>, vector<256x1024xbf16>
    %cst_14 = arith.constant dense<0.000000e+00> : vector<8x1024xf32>
    %32 = tpu.matmul %30, %31, %cst_14 {dimension_numbers = #tpu.dot_dimension_numbers<[1], [0], [0], [1], [0, 0, 1, 1], [], []>} : vector<8x256xbf16>, vector<256x1024xbf16>, vector<8x1024xf32> -> vector<8x1024xf32>
    %33 = arith.truncf %29 : vector<8x128xf32> to vector<8x128xbf16>
    %c0_15 = arith.constant 0 : index
    %c0_16 = arith.constant 0 : index
    %34 = vector.load %arg8[%c0_15, %c0_16] : memref<128x1024xbf16, #tpu.memory_space<vmem>>, vector<128x1024xbf16>
    %cst_17 = arith.constant dense<0.000000e+00> : vector<8x1024xf32>
    %35 = tpu.matmul %33, %34, %cst_17 {dimension_numbers = #tpu.dot_dimension_numbers<[1], [0], [0], [1], [0, 0, 1, 1], [], []>} : vector<8x128xbf16>, vector<128x1024xbf16>, vector<8x1024xf32> -> vector<8x1024xf32>
    %36 = arith.addf %32, %35 : vector<8x1024xf32>
    %c0_18 = arith.constant 0 : index
    %c0_19 = arith.constant 0 : index
    %37 = vector.load %arg9[%c0_18, %c0_19] : memref<1x1024xf32, #tpu.memory_space<vmem>>, vector<1x1024xf32>
    %38 = vector.broadcast %37 : vector<1x1024xf32> to vector<8x1024xf32>
    %39 = arith.addf %36, %38 : vector<8x1024xf32>
    %40 = vector.extract_strided_slice %39 {offsets = [0, 0], sizes = [8, 256], strides = [1, 1]} : vector<8x1024xf32> to vector<8x256xf32>
    %41 = vector.extract_strided_slice %39 {offsets = [0, 256], sizes = [8, 256], strides = [1, 1]} : vector<8x1024xf32> to vector<8x256xf32>
    %42 = arith.maximumf %40, %41 : vector<8x256xf32>
    %43 = vector.extract_strided_slice %39 {offsets = [0, 512], sizes = [8, 256], strides = [1, 1]} : vector<8x1024xf32> to vector<8x256xf32>
    %44 = arith.maximumf %42, %43 : vector<8x256xf32>
    %45 = vector.extract_strided_slice %39 {offsets = [0, 768], sizes = [8, 256], strides = [1, 1]} : vector<8x1024xf32> to vector<8x256xf32>
    %46 = arith.maximumf %44, %45 : vector<8x256xf32>
    %c0_20 = arith.constant 0 : index
    %c0_21 = arith.constant 0 : index
    %47 = vector.load %arg10[%c0_20, %c0_21] : memref<1x256xf32, #tpu.memory_space<vmem>>, vector<1x256xf32>
    %48 = vector.broadcast %47 : vector<1x256xf32> to vector<8x256xf32>
    %49 = arith.mulf %46, %48 : vector<8x256xf32>
    %cst_22 = arith.constant dense<0.000000e+00> : vector<8xf32>
    %50 = vector.multi_reduction <add>, %49, %cst_22 [1] : vector<8x256xf32> to vector<8xf32>
    %51 = vector.shape_cast %50 : vector<8xf32> to vector<8x1xf32>
    %c0_23 = arith.constant 0 : index
    %c0_24 = arith.constant 0 : index
    %52 = vector.load %arg11[%c0_23, %c0_24] : memref<1x1xf32, #tpu.memory_space<vmem>>, vector<1x1xf32>
    %53 = vector.broadcast %52 : vector<1x1xf32> to vector<8x1xf32>
    %54 = arith.addf %51, %53 : vector<8x1xf32>
    %55 = arith.negf %54 : vector<8x1xf32>
    %56 = math.exp %55 : vector<8x1xf32>
    %cst_25 = arith.constant 1.000000e+00 : f32
    %57 = vector.broadcast %cst_25 : f32 to vector<8x1xf32>
    %58 = arith.addf %57, %56 : vector<8x1xf32>
    %59 = arith.divf %57, %58 : vector<8x1xf32>
    %c0_26 = arith.constant 0 : index
    %c0_27 = arith.constant 0 : index
    %60 = vector.load %arg12[%c0_26, %c0_27] : memref<8x1xf32, #tpu.memory_space<vmem>>, vector<8x1xf32>
    tpu.vector_store %arg12[%c0_26, %c0_27], %59 {strides = array<i32>} : memref<8x1xf32, #tpu.memory_space<vmem>>, vector<8x1xf32>,
    return
  }
  func.func @transform_0(%arg0: i32) -> (i32, i32) {
    %c0_i32 = arith.constant 0 : i32
    %c0_i32_0 = arith.constant 0 : i32
    return %arg0, %c0_i32 : i32, i32
  }
  func.func @transform_1(%arg0: i32) -> (i32, i32) {
    %c0_i32 = arith.constant 0 : i32
    %c0_i32_0 = arith.constant 0 : i32
    return %arg0, %c0_i32 : i32, i32
  }
  func.func @transform_2(%arg0: i32) -> (i32, i32) {
    %c0_i32 = arith.constant 0 : i32
    %c0_i32_0 = arith.constant 0 : i32
    %c0_i32_1 = arith.constant 0 : i32
    return %c0_i32, %c0_i32_0 : i32, i32
  }
  func.func @transform_3(%arg0: i32) -> (i32, i32) {
    %c0_i32 = arith.constant 0 : i32
    %c0_i32_0 = arith.constant 0 : i32
    %c0_i32_1 = arith.constant 0 : i32
    return %c0_i32, %c0_i32_0 : i32, i32
  }
  func.func @transform_4(%arg0: i32) -> (i32, i32) {
    %c0_i32 = arith.constant 0 : i32
    %c0_i32_0 = arith.constant 0 : i32
    %c0_i32_1 = arith.constant 0 : i32
    return %c0_i32, %c0_i32_0 : i32, i32
  }
  func.func @transform_5(%arg0: i32) -> (i32, i32) {
    %c0_i32 = arith.constant 0 : i32
    %c0_i32_0 = arith.constant 0 : i32
    %c0_i32_1 = arith.constant 0 : i32
    return %c0_i32, %c0_i32_0 : i32, i32
  }
  func.func @transform_6(%arg0: i32) -> (i32, i32) {
    %c0_i32 = arith.constant 0 : i32
    %c0_i32_0 = arith.constant 0 : i32
    %c0_i32_1 = arith.constant 0 : i32
    return %c0_i32, %c0_i32_0 : i32, i32
  }
  func.func @transform_7(%arg0: i32) -> (i32, i32) {
    %c0_i32 = arith.constant 0 : i32
    %c0_i32_0 = arith.constant 0 : i32
    %c0_i32_1 = arith.constant 0 : i32
    return %c0_i32, %c0_i32_0 : i32, i32
  }
  func.func @transform_8(%arg0: i32) -> (i32, i32) {
    %c0_i32 = arith.constant 0 : i32
    %c0_i32_0 = arith.constant 0 : i32
    %c0_i32_1 = arith.constant 0 : i32
    return %c0_i32, %c0_i32_0 : i32, i32
  }
  func.func @transform_9(%arg0: i32) -> (i32, i32) {
    %c0_i32 = arith.constant 0 : i32
    %c0_i32_0 = arith.constant 0 : i32
    %c0_i32_1 = arith.constant 0 : i32
    return %c0_i32, %c0_i32_0 : i32, i32
  }
  func.func @transform_10(%arg0: i32) -> (i32, i32) {
    %c0_i32 = arith.constant 0 : i32
    %c0_i32_0 = arith.constant 0 : i32
    %c0_i32_1 = arith.constant 0 : i32
    return %c0_i32, %c0_i32_0 : i32, i32
  }
  func.func @transform_11(%arg0: i32) -> (i32, i32) {
    %c0_i32 = arith.constant 0 : i32
    %c0_i32_0 = arith.constant 0 : i32
    return %arg0, %c0_i32 : i32, i32
  }
}

</mosaic_0001>

<llo_original>
// kernel: discriminator_forward.1
$region0: #{discriminator_forward.1}
  #allocation0 [shape = 'u32[]', space=smem, size = 0x4, offset = 0x4, fixed_abs, tag = 'smem constant byte address 0x4 - core index']
  #allocation1 [shape = 'u32[144,128]{1,0:T(1,128)}', space=vmem, size = 0x12000, scoped, tag = 'internal scratch']
  #allocation2 [shape = 'f32[1,1]{1,0:T(1,128)S(1)}', space=vmem, size = 0x200, scoped, tag = 'scoped memory for discriminator_forward.1']
  %s0 = inlined_call_operand.vmem [shape: bf16[8,1024], index: 0, kind: input, shape index: {}]
  %s1 = inlined_call_operand.vmem [shape: bf16[8,10], index: 1, kind: input, shape index: {}]
  %s2 = inlined_call_operand.hbm [shape: bf16[1024,1280], index: 2, kind: input, shape index: {}]
  %s3 = inlined_call_operand.hbm [shape: f32[1,1280], index: 3, kind: input, shape index: {}]
  %s4 = inlined_call_operand.hbm [shape: bf16[10,640], index: 4, kind: input, shape index: {}]
  %s5 = inlined_call_operand.hbm [shape: f32[1,640], index: 5, kind: input, shape index: {}]
  %s6 = inlined_call_operand.hbm [shape: bf16[256,1024], index: 6, kind: input, shape index: {}]
  %s7 = inlined_call_operand.hbm [shape: bf16[128,1024], index: 7, kind: input, shape index: {}]
  %s8 = inlined_call_operand.hbm [shape: f32[1,1024], index: 8, kind: input, shape index: {}]
  %s9 = inlined_call_operand.hbm [shape: f32[1,256], index: 9, kind: input, shape index: {}]
  %s10 = inlined_call_operand.<no memory space> [shape: f32[1,1], index: 10, kind: input, shape index: {}]
  %s11 = inlined_call_operand.vmem [shape: f32[8,1], index: 11, kind: output, shape index: {}]
  %s12 = sld [smem:[#allocation0]]
  $region86: #{discriminator_forward.1} parent=0
    _
  %s14 = ssub.s32 1, %s12
  %s15 = scalar_select 0, %s14, %s12
  %v16 = vstv %s10
  %17 = vst [vmem:[#allocation2] sm:$0x1] %v16
  $region1: #{discriminator_forward.1} parent=0
    #allocation3 [shape = 'u8[2621440]{0}', space=vmem, size = 0x280000, scoped, tag = 'input window, operand 2, single buffered']
    #allocation4 [shape = 's32[1]{0}', space=sflag, size = 0x4, scoped, tag = 'scoped memory for discriminator_forward.1']
    #allocation5 [shape = 'u8[5120]{0}', space=vmem, size = 0x1400, scoped, tag = 'input window, operand 3, single buffered']
    #allocation6 [shape = 's32[1]{0}', space=sflag, size = 0x4, scoped, tag = 'scoped memory for discriminator_forward.1']
    #allocation7 [shape = 'u8[20480]{0}', space=vmem, size = 0x5000, scoped, tag = 'input window, operand 4, single buffered']
    #allocation8 [shape = 'u8[2560]{0}', space=vmem, size = 0xc00, scoped, tag = 'input window, operand 5, single buffered']
    #allocation9 [shape = 's32[1]{0}', space=sflag, size = 0x4, scoped, tag = 'scoped memory for discriminator_forward.1']
    #allocation10 [shape = 'u8[524288]{0}', space=vmem, size = 0x80000, scoped, tag = 'input window, operand 6, single buffered']
    #allocation11 [shape = 'u8[262144]{0}', space=vmem, size = 0x40000, scoped, tag = 'input window, operand 7, single buffered']
    #allocation12 [shape = 's32[1]{0}', space=sflag, size = 0x4, scoped, tag = 'scoped memory for discriminator_forward.1']
    #allocation13 [shape = 'u8[4096]{0}', space=vmem, size = 0x1000, scoped, tag = 'input window, operand 8, single buffered']
    #allocation14 [shape = 'u8[1024]{0}', space=vmem, size = 0x400, scoped, tag = 'input window, operand 9, single buffered']
    #allocation15 [shape = 's32[1]{0}', space=sflag, size = 0x4, scoped, tag = 'scoped memory for discriminator_forward.1']
    %18 = vsyncpa [#allocation4], 0
    %19 = vsyncpa [#allocation6], 0
    %20 = vsyncpa [#allocation9], 0
    %21 = vsyncpa [#allocation12], 0
    %22 = vsyncpa [#allocation15], 0
    // Predicated region
    $region2: #{discriminator_forward.1} parent=1 // pred_check
      _
    $region3: #{discriminator_forward.1} parent=1 // pred_check_branch
      %24 = sbr.rel (0) target = $region5
    $region4: #{discriminator_forward.1} parent=1 // pred_region
      _
    $region5: #{discriminator_forward.1} parent=1 // pred_fallthru
      _
    // Predicated region
    $region6: #{discriminator_forward.1} parent=1 // pred_check
      _
    $region7: #{discriminator_forward.1} parent=1 // pred_check_branch
      %26 = sbr.rel (0) target = $region9
    $region8: #{discriminator_forward.1} parent=1 // pred_region
      _
    $region9: #{discriminator_forward.1} parent=1 // pred_fallthru
      _
    // Predicated region
    $region10: #{discriminator_forward.1} parent=1 // pred_check
      _
    $region11: #{discriminator_forward.1} parent=1 // pred_check_branch
      %28 = sbr.rel (0) target = $region13
    $region12: #{discriminator_forward.1} parent=1 // pred_region
      %s30 = ssub.s32 81920, 81920
      %31 = vsyncadd [#allocation4], %s30
      %s32 = sshll.u32 [#allocation3], 4
      %s33 = int_to_ptr.vmem [resolvable:$true] %s32
      %38 = dma.hbm_to_vmem [thread:$0]  %s2, 81920, %s33, [#allocation4], 640, 640, 40
    $region13: #{discriminator_forward.1} parent=1 // pred_fallthru
      _
    // Predicated region
    $region14: #{discriminator_forward.1} parent=1 // pred_check
      _
    $region15: #{discriminator_forward.1} parent=1 // pred_check_branch
      %40 = sbr.rel (0) target = $region17
    $region16: #{discriminator_forward.1} parent=1 // pred_region
      %s42 = ssub.s32 160, 160
      %43 = vsyncadd [#allocation6], %s42
      %s45 = sshll.u32 [#allocation5], 4
      %s46 = int_to_ptr.vmem [resolvable:$true] %s45
      %48 = dma.hbm_to_vmem [thread:$0]  %s3, 160, %s46, [#allocation6]
    $region17: #{discriminator_forward.1} parent=1 // pred_fallthru
      _
    // Predicated region
    $region18: #{discriminator_forward.1} parent=1 // pred_check
      _
    $region19: #{discriminator_forward.1} parent=1 // pred_check_branch
      %50 = sbr.rel (0) target = $region21
    $region20: #{discriminator_forward.1} parent=1 // pred_region
      %s52 = ssub.s32 640, 640
      %53 = vsyncadd [#allocation6], %s52
      %s54 = sshll.u32 [#allocation7], 4
      %s55 = int_to_ptr.vmem [resolvable:$true] %s54
      %60 = dma.hbm_to_vmem [thread:$0]  %s4, 640, %s55, [#allocation6], 320, 320, 20
    $region21: #{discriminator_forward.1} parent=1 // pred_fallthru
      _
    // Predicated region
    $region22: #{discriminator_forward.1} parent=1 // pred_check
      _
    $region23: #{discriminator_forward.1} parent=1 // pred_check_branch
      %62 = sbr.rel (0) target = $region25
    $region24: #{discriminator_forward.1} parent=1 // pred_region
      %s64 = ssub.s32 80, 80
      %65 = vsyncadd [#allocation9], %s64
      %s67 = sshll.u32 [#allocation8], 4
      %s68 = int_to_ptr.vmem [resolvable:$true] %s67
      %70 = dma.hbm_to_vmem [thread:$0]  %s5, 80, %s68, [#allocation9]
    $region25: #{discriminator_forward.1} parent=1 // pred_fallthru
      _
    // Predicated region
    $region26: #{discriminator_forward.1} parent=1 // pred_check
      _
    $region27: #{discriminator_forward.1} parent=1 // pred_check_branch
      %72 = sbr.rel (0) target = $region29
    $region28: #{discriminator_forward.1} parent=1 // pred_region
      %s74 = ssub.s32 16384, 16384
      %75 = vsyncadd [#allocation9], %s74
      %s76 = sshll.u32 [#allocation10], 4
      %s77 = int_to_ptr.vmem [resolvable:$true] %s76
      %82 = dma.hbm_to_vmem [thread:$0]  %s6, 16384, %s77, [#allocation9], 512, 512, 32
    $region29: #{discriminator_forward.1} parent=1 // pred_fallthru
      _
    // Predicated region
    $region30: #{discriminator_forward.1} parent=1 // pred_check
      _
    $region31: #{discriminator_forward.1} parent=1 // pred_check_branch
      %84 = sbr.rel (0) target = $region33
    $region32: #{discriminator_forward.1} parent=1 // pred_region
      %s86 = ssub.s32 8192, 8192
      %87 = vsyncadd [#allocation12], %s86
      %s88 = sshll.u32 [#allocation11], 4
      %s89 = int_to_ptr.vmem [resolvable:$true] %s88
      %94 = dma.hbm_to_vmem [thread:$0]  %s7, 8192, %s89, [#allocation12], 512, 512, 32
    $region33: #{discriminator_forward.1} parent=1 // pred_fallthru
      _
    // Predicated region
    $region34: #{discriminator_forward.1} parent=1 // pred_check
      _
    $region35: #{discriminator_forward.1} parent=1 // pred_check_branch
      %96 = sbr.rel (0) target = $region37
    $region36: #{discriminator_forward.1} parent=1 // pred_region
      %s98 = ssub.s32 128, 128
      %99 = vsyncadd [#allocation12], %s98
      %s101 = sshll.u32 [#allocation13], 4
      %s102 = int_to_ptr.vmem [resolvable:$true] %s101
      %104 = dma.hbm_to_vmem [thread:$0]  %s8, 128, %s102, [#allocation12]
    $region37: #{discriminator_forward.1} parent=1 // pred_fallthru
      _
    // Predicated region
    $region38: #{discriminator_forward.1} parent=1 // pred_check
      _
    $region39: #{discriminator_forward.1} parent=1 // pred_check_branch
      %106 = sbr.rel (0) target = $region41
    $region40: #{discriminator_forward.1} parent=1 // pred_region
      %s108 = ssub.s32 32, 32
      %109 = vsyncadd [#allocation15], %s108
      %s111 = sshll.u32 [#allocation14], 4
      %s112 = int_to_ptr.vmem [resolvable:$true] %s111
      %114 = dma.hbm_to_vmem [thread:$0]  %s9, 32, %s112, [#allocation15]
    $region41: #{discriminator_forward.1} parent=1 // pred_fallthru
      _
    // Predicated region
    $region42: #{discriminator_forward.1} parent=1 // pred_check
      _
    $region43: #{discriminator_forward.1} parent=1 // pred_check_branch
      %116 = sbr.rel (0) target = $region45
    $region44: #{discriminator_forward.1} parent=1 // pred_region
      _
    $region45: #{discriminator_forward.1} parent=1 // pred_fallthru
      _
    // Predicated region
    $region46: #{discriminator_forward.1} parent=1 // pred_check
      _
    $region47: #{discriminator_forward.1} parent=1 // pred_check_branch
      %118 = sbr.rel (0) target = $region49
    $region48: #{discriminator_forward.1} parent=1 // pred_region
      %119 = dma.done [#allocation4], 81920
    $region49: #{discriminator_forward.1} parent=1 // pred_fallthru
      _
    // Predicated region
    $region50: #{discriminator_forward.1} parent=1 // pred_check
      _
    $region51: #{discriminator_forward.1} parent=1 // pred_check_branch
      %121 = sbr.rel (0) target = $region53
    $region52: #{discriminator_forward.1} parent=1 // pred_region
      %122 = dma.done [#allocation6], 160
    $region53: #{discriminator_forward.1} parent=1 // pred_fallthru
      _
    // Predicated region
    $region54: #{discriminator_forward.1} parent=1 // pred_check
      _
    $region55: #{discriminator_forward.1} parent=1 // pred_check_branch
      %124 = sbr.rel (0) target = $region57
    $region56: #{discriminator_forward.1} parent=1 // pred_region
      %125 = dma.done [#allocation6], 640
    $region57: #{discriminator_forward.1} parent=1 // pred_fallthru
      _
    // Predicated region
    $region58: #{discriminator_forward.1} parent=1 // pred_check
      _
    $region59: #{discriminator_forward.1} parent=1 // pred_check_branch
      %127 = sbr.rel (0) target = $region61
    $region60: #{discriminator_forward.1} parent=1 // pred_region
      %128 = dma.done [#allocation9], 80
    $region61: #{discriminator_forward.1} parent=1 // pred_fallthru
      _
    // Predicated region
    $region62: #{discriminator_forward.1} parent=1 // pred_check
      _
    $region63: #{discriminator_forward.1} parent=1 // pred_check_branch
      %130 = sbr.rel (0) target = $region65
    $region64: #{discriminator_forward.1} parent=1 // pred_region
      %131 = dma.done [#allocation9], 16384
    $region65: #{discriminator_forward.1} parent=1 // pred_fallthru
      _
    // Predicated region
    $region66: #{discriminator_forward.1} parent=1 // pred_check
      _
    $region67: #{discriminator_forward.1} parent=1 // pred_check_branch
      %133 = sbr.rel (0) target = $region69
    $region68: #{discriminator_forward.1} parent=1 // pred_region
      %134 = dma.done [#allocation12], 8192
    $region69: #{discriminator_forward.1} parent=1 // pred_fallthru
      _
    // Predicated region
    $region70: #{discriminator_forward.1} parent=1 // pred_check
      _
    $region71: #{discriminator_forward.1} parent=1 // pred_check_branch
      %136 = sbr.rel (0) target = $region73
    $region72: #{discriminator_forward.1} parent=1 // pred_region
      %137 = dma.done [#allocation12], 128
    $region73: #{discriminator_forward.1} parent=1 // pred_fallthru
      _
    // Predicated region
    $region74: #{discriminator_forward.1} parent=1 // pred_check
      _
    $region75: #{discriminator_forward.1} parent=1 // pred_check_branch
      %139 = sbr.rel (0) target = $region77
    $region76: #{discriminator_forward.1} parent=1 // pred_region
      %140 = dma.done [#allocation15], 32
    $region77: #{discriminator_forward.1} parent=1 // pred_fallthru
      _
    %v142 = vld [vmem:[%s0] sm:$0xff]
    %v143 = vld [vmem:[%s0 + $0x8] sm:$0xff]
    %v144 = vld [vmem:[%s0 + $0x10] sm:$0xff]
    %v145 = vld [vmem:[%s0 + $0x18] sm:$0xff]
    %v146 = vld [vmem:[%s1] sm:$0xf]
    %v147 = vld [vmem:[#allocation3] sm:$0xff]
    %v148 = vld [vmem:[#allocation3 + $0x8] sm:$0xff]
    %v149 = vld [vmem:[#allocation3 + $0x10] sm:$0xff]
    %v150 = vld [vmem:[#allocation3 + $0x18] sm:$0xff]
    %v151 = vld [vmem:[#allocation3 + $0x20] sm:$0xff]
    %v152 = vld [vmem:[#allocation3 + $0x28] sm:$0xff]
    %v153 = vld [vmem:[#allocation3 + $0x30] sm:$0xff]
    %v154 = vld [vmem:[#allocation3 + $0x38] sm:$0xff]
    %v155 = vld [vmem:[#allocation3 + $0x40] sm:$0xff]
    %v156 = vld [vmem:[#allocation3 + $0x48] sm:$0xff]
    %v157 = vld [vmem:[#allocation3 + $0x50] sm:$0xff]
    %v158 = vld [vmem:[#allocation3 + $0x58] sm:$0xff]
    %v159 = vld [vmem:[#allocation3 + $0x60] sm:$0xff]
    %v160 = vld [vmem:[#allocation3 + $0x68] sm:$0xff]
    %v161 = vld [vmem:[#allocation3 + $0x70] sm:$0xff]
    %v162 = vld [vmem:[#allocation3 + $0x78] sm:$0xff]
    %v163 = vld [vmem:[#allocation3 + $0x80] sm:$0xff]
    %v164 = vld [vmem:[#allocation3 + $0x88] sm:$0xff]
    %v165 = vld [vmem:[#allocation3 + $0x90] sm:$0xff]
    %v166 = vld [vmem:[#allocation3 + $0x98] sm:$0xff]
    %v167 = vld [vmem:[#allocation3 + $0xa0] sm:$0xff]
    %v168 = vld [vmem:[#allocation3 + $0xa8] sm:$0xff]
    %v169 = vld [vmem:[#allocation3 + $0xb0] sm:$0xff]
    %v170 = vld [vmem:[#allocation3 + $0xb8] sm:$0xff]
    %v171 = vld [vmem:[#allocation3 + $0xc0] sm:$0xff]
    %v172 = vld [vmem:[#allocation3 + $0xc8] sm:$0xff]
    %v173 = vld [vmem:[#allocation3 + $0xd0] sm:$0xff]
    %v174 = vld [vmem:[#allocation3 + $0xd8] sm:$0xff]
    %v175 = vld [vmem:[#allocation3 + $0xe0] sm:$0xff]
    %v176 = vld [vmem:[#allocation3 + $0xe8] sm:$0xff]
    %v177 = vld [vmem:[#allocation3 + $0xf0] sm:$0xff]
    %v178 = vld [vmem:[#allocation3 + $0xf8] sm:$0xff]
    %v179 = vld [vmem:[#allocation3 + $0x100] sm:$0xff]
    %v180 = vld [vmem:[#allocation3 + $0x108] sm:$0xff]
    %v181 = vld [vmem:[#allocation3 + $0x110] sm:$0xff]
    %v182 = vld [vmem:[#allocation3 + $0x118] sm:$0xff]
    %v183 = vld [vmem:[#allocation3 + $0x120] sm:$0xff]
    %v184 = vld [vmem:[#allocation3 + $0x128] sm:$0xff]
    %v185 = vld [vmem:[#allocation3 + $0x130] sm:$0xff]
    %v186 = vld [vmem:[#allocation3 + $0x138] sm:$0xff]
    %v187 = vld [vmem:[#allocation3 + $0x140] sm:$0xff]
    %v188 = vld [vmem:[#allocation3 + $0x148] sm:$0xff]
    %v189 = vld [vmem:[#allocation3 + $0x150] sm:$0xff]
    %v190 = vld [vmem:[#allocation3 + $0x158] sm:$0xff]
    %v191 = vld [vmem:[#allocation3 + $0x160] sm:$0xff]
    %v192 = vld [vmem:[#allocation3 + $0x168] sm:$0xff]
    %v193 = vld [vmem:[#allocation3 + $0x170] sm:$0xff]
    %v194 = vld [vmem:[#allocation3 + $0x178] sm:$0xff]
    %v195 = vld [vmem:[#allocation3 + $0x180] sm:$0xff]
    %v196 = vld [vmem:[#allocation3 + $0x188] sm:$0xff]
    %v197 = vld [vmem:[#allocation3 + $0x190] sm:$0xff]
    %v198 = vld [vmem:[#allocation3 + $0x198] sm:$0xff]
    %v199 = vld [vmem:[#allocation3 + $0x1a0] sm:$0xff]
    %v200 = vld [vmem:[#allocation3 + $0x1a8] sm:$0xff]
    %v201 = vld [vmem:[#allocation3 + $0x1b0] sm:$0xff]
    %v202 = vld [vmem:[#allocation3 + $0x1b8] sm:$0xff]
    %v203 = vld [vmem:[#allocation3 + $0x1c0] sm:$0xff]
    %v204 = vld [vmem:[#allocation3 + $0x1c8] sm:$0xff]
    %v205 = vld [vmem:[#allocation3 + $0x1d0] sm:$0xff]
    %v206 = vld [vmem:[#allocation3 + $0x1d8] sm:$0xff]
    %v207 = vld [vmem:[#allocation3 + $0x1e0] sm:$0xff]
    %v208 = vld [vmem:[#allocation3 + $0x1e8] sm:$0xff]
    %v209 = vld [vmem:[#allocation3 + $0x1f0] sm:$0xff]
    %v210 = vld [vmem:[#allocation3 + $0x1f8] sm:$0xff]
    %v211 = vld [vmem:[#allocation3 + $0x200] sm:$0xff]
    %v212 = vld [vmem:[#allocation3 + $0x208] sm:$0xff]
    %v213 = vld [vmem:[#allocation3 + $0x210] sm:$0xff]
    %v214 = vld [vmem:[#allocation3 + $0x218] sm:$0xff]
    %v215 = vld [vmem:[#allocation3 + $0x220] sm:$0xff]
    %v216 = vld [vmem:[#allocation3 + $0x228] sm:$0xff]
    %v217 = vld [vmem:[#allocation3 + $0x230] sm:$0xff]
    %v218 = vld [vmem:[#allocation3 + $0x238] sm:$0xff]
    %v219 = vld [vmem:[#allocation3 + $0x240] sm:$0xff]
    %v220 = vld [vmem:[#allocation3 + $0x248] sm:$0xff]
    %v221 = vld [vmem:[#allocation3 + $0x250] sm:$0xff]
    %v222 = vld [vmem:[#allocation3 + $0x258] sm:$0xff]
    %v223 = vld [vmem:[#allocation3 + $0x260] sm:$0xff]
    %v224 = vld [vmem:[#allocation3 + $0x268] sm:$0xff]
    %v225 = vld [vmem:[#allocation3 + $0x270] sm:$0xff]
    %v226 = vld [vmem:[#allocation3 + $0x278] sm:$0xff]
    %v227 = vld [vmem:[#allocation3 + $0x280] sm:$0xff]
    %v228 = vld [vmem:[#allocation3 + $0x288] sm:$0xff]
    %v229 = vld [vmem:[#allocation3 + $0x290] sm:$0xff]
    %v230 = vld [vmem:[#allocation3 + $0x298] sm:$0xff]
    %v231 = vld [vmem:[#allocation3 + $0x2a0] sm:$0xff]
    %v232 = vld [vmem:[#allocation3 + $0x2a8] sm:$0xff]
    %v233 = vld [vmem:[#allocation3 + $0x2b0] sm:$0xff]
    %v234 = vld [vmem:[#allocation3 + $0x2b8] sm:$0xff]
    %v235 = vld [vmem:[#allocation3 + $0x2c0] sm:$0xff]
    %v236 = vld [vmem:[#allocation3 + $0x2c8] sm:$0xff]
    %v237 = vld [vmem:[#allocation3 + $0x2d0] sm:$0xff]
    %v238 = vld [vmem:[#allocation3 + $0x2d8] sm:$0xff]
    %v239 = vld [vmem:[#allocation3 + $0x2e0] sm:$0xff]
    %v240 = vld [vmem:[#allocation3 + $0x2e8] sm:$0xff]
    %v241 = vld [vmem:[#allocation3 + $0x2f0] sm:$0xff]
    %v242 = vld [vmem:[#allocation3 + $0x2f8] sm:$0xff]
    %v243 = vld [vmem:[#allocation3 + $0x300] sm:$0xff]
    %v244 = vld [vmem:[#allocation3 + $0x308] sm:$0xff]
    %v245 = vld [vmem:[#allocation3 + $0x310] sm:$0xff]
    %v246 = vld [vmem:[#allocation3 + $0x318] sm:$0xff]
    %v247 = vld [vmem:[#allocation3 + $0x320] sm:$0xff]
    %v248 = vld [vmem:[#allocation3 + $0x328] sm:$0xff]
    %v249 = vld [vmem:[#allocation3 + $0x330] sm:$0xff]
    %v250 = vld [vmem:[#allocation3 + $0x338] sm:$0xff]
    %v251 = vld [vmem:[#allocation3 + $0x340] sm:$0xff]
    %v252 = vld [vmem:[#allocation3 + $0x348] sm:$0xff]
    %v253 = vld [vmem:[#allocation3 + $0x350] sm:$0xff]
    %v254 = vld [vmem:[#allocation3 + $0x358] sm:$0xff]
    %v255 = vld [vmem:[#allocation3 + $0x360] sm:$0xff]
    %v256 = vld [vmem:[#allocation3 + $0x368] sm:$0xff]
    %v257 = vld [vmem:[#allocation3 + $0x370] sm:$0xff]
    %v258 = vld [vmem:[#allocation3 + $0x378] sm:$0xff]
    %v259 = vld [vmem:[#allocation3 + $0x380] sm:$0xff]
    %v260 = vld [vmem:[#allocation3 + $0x388] sm:$0xff]
    %v261 = vld [vmem:[#allocation3 + $0x390] sm:$0xff]
    %v262 = vld [vmem:[#allocation3 + $0x398] sm:$0xff]
    %v263 = vld [vmem:[#allocation3 + $0x3a0] sm:$0xff]
    %v264 = vld [vmem:[#allocation3 + $0x3a8] sm:$0xff]
    %v265 = vld [vmem:[#allocation3 + $0x3b0] sm:$0xff]
    %v266 = vld [vmem:[#allocation3 + $0x3b8] sm:$0xff]
    %v267 = vld [vmem:[#allocation3 + $0x3c0] sm:$0xff]
    %v268 = vld [vmem:[#allocation3 + $0x3c8] sm:$0xff]
    %v269 = vld [vmem:[#allocation3 + $0x3d0] sm:$0xff]
    %v270 = vld [vmem:[#allocation3 + $0x3d8] sm:$0xff]
    %v271 = vld [vmem:[#allocation3 + $0x3e0] sm:$0xff]
    %v272 = vld [vmem:[#allocation3 + $0x3e8] sm:$0xff]
    %v273 = vld [vmem:[#allocation3 + $0x3f0] sm:$0xff]
    %v274 = vld [vmem:[#allocation3 + $0x3f8] sm:$0xff]
    %v275 = vld [vmem:[#allocation3 + $0x400] sm:$0xff]
    %v276 = vld [vmem:[#allocation3 + $0x408] sm:$0xff]
    %v277 = vld [vmem:[#allocation3 + $0x410] sm:$0xff]
    %v278 = vld [vmem:[#allocation3 + $0x418] sm:$0xff]
    %v279 = vld [vmem:[#allocation3 + $0x420] sm:$0xff]
    %v280 = vld [vmem:[#allocation3 + $0x428] sm:$0xff]
    %v281 = vld [vmem:[#allocation3 + $0x430] sm:$0xff]
    %v282 = vld [vmem:[#allocation3 + $0x438] sm:$0xff]
    %v283 = vld [vmem:[#allocation3 + $0x440] sm:$0xff]
    %v284 = vld [vmem:[#allocation3 + $0x448] sm:$0xff]
    %v285 = vld [vmem:[#allocation3 + $0x450] sm:$0xff]
    %v286 = vld [vmem:[#allocation3 + $0x458] sm:$0xff]
    %v287 = vld [vmem:[#allocation3 + $0x460] sm:$0xff]
    %v288 = vld [vmem:[#allocation3 + $0x468] sm:$0xff]
    %v289 = vld [vmem:[#allocation3 + $0x470] sm:$0xff]
    %v290 = vld [vmem:[#allocation3 + $0x478] sm:$0xff]
    %v291 = vld [vmem:[#allocation3 + $0x480] sm:$0xff]
    %v292 = vld [vmem:[#allocation3 + $0x488] sm:$0xff]
    %v293 = vld [vmem:[#allocation3 + $0x490] sm:$0xff]
    %v294 = vld [vmem:[#allocation3 + $0x498] sm:$0xff]
    %v295 = vld [vmem:[#allocation3 + $0x4a0] sm:$0xff]
    %v296 = vld [vmem:[#allocation3 + $0x4a8] sm:$0xff]
    %v297 = vld [vmem:[#allocation3 + $0x4b0] sm:$0xff]
    %v298 = vld [vmem:[#allocation3 + $0x4b8] sm:$0xff]
    %v299 = vld [vmem:[#allocation3 + $0x4c0] sm:$0xff]
    %v300 = vld [vmem:[#allocation3 + $0x4c8] sm:$0xff]
    %v301 = vld [vmem:[#allocation3 + $0x4d0] sm:$0xff]
    %v302 = vld [vmem:[#allocation3 + $0x4d8] sm:$0xff]
    %v303 = vld [vmem:[#allocation3 + $0x4e0] sm:$0xff]
    %v304 = vld [vmem:[#allocation3 + $0x4e8] sm:$0xff]
    %v305 = vld [vmem:[#allocation3 + $0x4f0] sm:$0xff]
    %v306 = vld [vmem:[#allocation3 + $0x4f8] sm:$0xff]
    %v307 = vld [vmem:[#allocation3 + $0x500] sm:$0xff]
    %v308 = vld [vmem:[#allocation3 + $0x508] sm:$0xff]
    %v309 = vld [vmem:[#allocation3 + $0x510] sm:$0xff]
    %v310 = vld [vmem:[#allocation3 + $0x518] sm:$0xff]
    %v311 = vld [vmem:[#allocation3 + $0x520] sm:$0xff]
    %v312 = vld [vmem:[#allocation3 + $0x528] sm:$0xff]
    %v313 = vld [vmem:[#allocation3 + $0x530] sm:$0xff]
    %v314 = vld [vmem:[#allocation3 + $0x538] sm:$0xff]
    %v315 = vld [vmem:[#allocation3 + $0x540] sm:$0xff]
    %v316 = vld [vmem:[#allocation3 + $0x548] sm:$0xff]
    %v317 = vld [vmem:[#allocation3 + $0x550] sm:$0xff]
    %v318 = vld [vmem:[#allocation3 + $0x558] sm:$0xff]
    %v319 = vld [vmem:[#allocation3 + $0x560] sm:$0xff]
    %v320 = vld [vmem:[#allocation3 + $0x568] sm:$0xff]
    %v321 = vld [vmem:[#allocation3 + $0x570] sm:$0xff]
    %v322 = vld [vmem:[#allocation3 + $0x578] sm:$0xff]
    %v323 = vld [vmem:[#allocation3 + $0x580] sm:$0xff]
    %v324 = vld [vmem:[#allocation3 + $0x588] sm:$0xff]
    %v325 = vld [vmem:[#allocation3 + $0x590] sm:$0xff]
    %v326 = vld [vmem:[#allocation3 + $0x598] sm:$0xff]
    %v327 = vld [vmem:[#allocation3 + $0x5a0] sm:$0xff]
    %v328 = vld [vmem:[#allocation3 + $0x5a8] sm:$0xff]
    %v329 = vld [vmem:[#allocation3 + $0x5b0] sm:$0xff]
    %v330 = vld [vmem:[#allocation3 + $0x5b8] sm:$0xff]
    %v331 = vld [vmem:[#allocation3 + $0x5c0] sm:$0xff]
    %v332 = vld [vmem:[#allocation3 + $0x5c8] sm:$0xff]
    %v333 = vld [vmem:[#allocation3 + $0x5d0] sm:$0xff]
    %v334 = vld [vmem:[#allocation3 + $0x5d8] sm:$0xff]
    %v335 = vld [vmem:[#allocation3 + $0x5e0] sm:$0xff]
    %v336 = vld [vmem:[#allocation3 + $0x5e8] sm:$0xff]
    %v337 = vld [vmem:[#allocation3 + $0x5f0] sm:$0xff]
    %v338 = vld [vmem:[#allocation3 + $0x5f8] sm:$0xff]
    %v339 = vld [vmem:[#allocation3 + $0x600] sm:$0xff]
    %v340 = vld [vmem:[#allocation3 + $0x608] sm:$0xff]
    %v341 = vld [vmem:[#allocation3 + $0x610] sm:$0xff]
    %v342 = vld [vmem:[#allocation3 + $0x618] sm:$0xff]
    %v343 = vld [vmem:[#allocation3 + $0x620] sm:$0xff]
    %v344 = vld [vmem:[#allocation3 + $0x628] sm:$0xff]
    %v345 = vld [vmem:[#allocation3 + $0x630] sm:$0xff]
    %v346 = vld [vmem:[#allocation3 + $0x638] sm:$0xff]
    %v347 = vld [vmem:[#allocation3 + $0x640] sm:$0xff]
    %v348 = vld [vmem:[#allocation3 + $0x648] sm:$0xff]
    %v349 = vld [vmem:[#allocation3 + $0x650] sm:$0xff]
    %v350 = vld [vmem:[#allocation3 + $0x658] sm:$0xff]
    %v351 = vld [vmem:[#allocation3 + $0x660] sm:$0xff]
    %v352 = vld [vmem:[#allocation3 + $0x668] sm:$0xff]
    %v353 = vld [vmem:[#allocation3 + $0x670] sm:$0xff]
    %v354 = vld [vmem:[#allocation3 + $0x678] sm:$0xff]
    %v355 = vld [vmem:[#allocation3 + $0x680] sm:$0xff]
    %v356 = vld [vmem:[#allocation3 + $0x688] sm:$0xff]
    %v357 = vld [vmem:[#allocation3 + $0x690] sm:$0xff]
    %v358 = vld [vmem:[#allocation3 + $0x698] sm:$0xff]
    %v359 = vld [vmem:[#allocation3 + $0x6a0] sm:$0xff]
    %v360 = vld [vmem:[#allocation3 + $0x6a8] sm:$0xff]
    %v361 = vld [vmem:[#allocation3 + $0x6b0] sm:$0xff]
    %v362 = vld [vmem:[#allocation3 + $0x6b8] sm:$0xff]
    %v363 = vld [vmem:[#allocation3 + $0x6c0] sm:$0xff]
    %v364 = vld [vmem:[#allocation3 + $0x6c8] sm:$0xff]
    %v365 = vld [vmem:[#allocation3 + $0x6d0] sm:$0xff]
    %v366 = vld [vmem:[#allocation3 + $0x6d8] sm:$0xff]
    %v367 = vld [vmem:[#allocation3 + $0x6e0] sm:$0xff]
    %v368 = vld [vmem:[#allocation3 + $0x6e8] sm:$0xff]
    %v369 = vld [vmem:[#allocation3 + $0x6f0] sm:$0xff]
    %v370 = vld [vmem:[#allocation3 + $0x6f8] sm:$0xff]
    %v371 = vld [vmem:[#allocation3 + $0x700] sm:$0xff]
    %v372 = vld [vmem:[#allocation3 + $0x708] sm:$0xff]
    %v373 = vld [vmem:[#allocation3 + $0x710] sm:$0xff]
    %v374 = vld [vmem:[#allocation3 + $0x718] sm:$0xff]
    %v375 = vld [vmem:[#allocation3 + $0x720] sm:$0xff]
    %v376 = vld [vmem:[#allocation3 + $0x728] sm:$0xff]
    %v377 = vld [vmem:[#allocation3 + $0x730] sm:$0xff]
    %v378 = vld [vmem:[#allocation3 + $0x738] sm:$0xff]
    %v379 = vld [vmem:[#allocation3 + $0x740] sm:$0xff]
    %v380 = vld [vmem:[#allocation3 + $0x748] sm:$0xff]
    %v381 = vld [vmem:[#allocation3 + $0x750] sm:$0xff]
    %v382 = vld [vmem:[#allocation3 + $0x758] sm:$0xff]
    %v383 = vld [vmem:[#allocation3 + $0x760] sm:$0xff]
    %v384 = vld [vmem:[#allocation3 + $0x768] sm:$0xff]
    %v385 = vld [vmem:[#allocation3 + $0x770] sm:$0xff]
    %v386 = vld [vmem:[#allocation3 + $0x778] sm:$0xff]
    %v387 = vld [vmem:[#allocation3 + $0x780] sm:$0xff]
    %v388 = vld [vmem:[#allocation3 + $0x788] sm:$0xff]
    %v389 = vld [vmem:[#allocation3 + $0x790] sm:$0xff]
    %v390 = vld [vmem:[#allocation3 + $0x798] sm:$0xff]
    %v391 = vld [vmem:[#allocation3 + $0x7a0] sm:$0xff]
    %v392 = vld [vmem:[#allocation3 + $0x7a8] sm:$0xff]
    %v393 = vld [vmem:[#allocation3 + $0x7b0] sm:$0xff]
    %v394 = vld [vmem:[#allocation3 + $0x7b8] sm:$0xff]
    %v395 = vld [vmem:[#allocation3 + $0x7c0] sm:$0xff]
    %v396 = vld [vmem:[#allocation3 + $0x7c8] sm:$0xff]
    %v397 = vld [vmem:[#allocation3 + $0x7d0] sm:$0xff]
    %v398 = vld [vmem:[#allocation3 + $0x7d8] sm:$0xff]
    %v399 = vld [vmem:[#allocation3 + $0x7e0] sm:$0xff]
    %v400 = vld [vmem:[#allocation3 + $0x7e8] sm:$0xff]
    %v401 = vld [vmem:[#allocation3 + $0x7f0] sm:$0xff]
    %v402 = vld [vmem:[#allocation3 + $0x7f8] sm:$0xff]
    %v403 = vld [vmem:[#allocation3 + $0x800] sm:$0xff]
    %v404 = vld [vmem:[#allocation3 + $0x808] sm:$0xff]
    %v405 = vld [vmem:[#allocation3 + $0x810] sm:$0xff]
    %v406 = vld [vmem:[#allocation3 + $0x818] sm:$0xff]
    %v407 = vld [vmem:[#allocation3 + $0x820] sm:$0xff]
    %v408 = vld [vmem:[#allocation3 + $0x828] sm:$0xff]
    %v409 = vld [vmem:[#allocation3 + $0x830] sm:$0xff]
    %v410 = vld [vmem:[#allocation3 + $0x838] sm:$0xff]
    %v411 = vld [vmem:[#allocation3 + $0x840] sm:$0xff]
    %v412 = vld [vmem:[#allocation3 + $0x848] sm:$0xff]
    %v413 = vld [vmem:[#allocation3 + $0x850] sm:$0xff]
    %v414 = vld [vmem:[#allocation3 + $0x858] sm:$0xff]
    %v415 = vld [vmem:[#allocation3 + $0x860] sm:$0xff]
    %v416 = vld [vmem:[#allocation3 + $0x868] sm:$0xff]
    %v417 = vld [vmem:[#allocation3 + $0x870] sm:$0xff]
    %v418 = vld [vmem:[#allocation3 + $0x878] sm:$0xff]
    %v419 = vld [vmem:[#allocation3 + $0x880] sm:$0xff]
    %v420 = vld [vmem:[#allocation3 + $0x888] sm:$0xff]
    %v421 = vld [vmem:[#allocation3 + $0x890] sm:$0xff]
    %v422 = vld [vmem:[#allocation3 + $0x898] sm:$0xff]
    %v423 = vld [vmem:[#allocation3 + $0x8a0] sm:$0xff]
    %v424 = vld [vmem:[#allocation3 + $0x8a8] sm:$0xff]
    %v425 = vld [vmem:[#allocation3 + $0x8b0] sm:$0xff]
    %v426 = vld [vmem:[#allocation3 + $0x8b8] sm:$0xff]
    %v427 = vld [vmem:[#allocation3 + $0x8c0] sm:$0xff]
    %v428 = vld [vmem:[#allocation3 + $0x8c8] sm:$0xff]
    %v429 = vld [vmem:[#allocation3 + $0x8d0] sm:$0xff]
    %v430 = vld [vmem:[#allocation3 + $0x8d8] sm:$0xff]
    %v431 = vld [vmem:[#allocation3 + $0x8e0] sm:$0xff]
    %v432 = vld [vmem:[#allocation3 + $0x8e8] sm:$0xff]
    %v433 = vld [vmem:[#allocation3 + $0x8f0] sm:$0xff]
    %v434 = vld [vmem:[#allocation3 + $0x8f8] sm:$0xff]
    %v435 = vld [vmem:[#allocation3 + $0x900] sm:$0xff]
    %v436 = vld [vmem:[#allocation3 + $0x908] sm:$0xff]
    %v437 = vld [vmem:[#allocation3 + $0x910] sm:$0xff]
    %v438 = vld [vmem:[#allocation3 + $0x918] sm:$0xff]
    %v439 = vld [vmem:[#allocation3 + $0x920] sm:$0xff]
    %v440 = vld [vmem:[#allocation3 + $0x928] sm:$0xff]
    %v441 = vld [vmem:[#allocation3 + $0x930] sm:$0xff]
    %v442 = vld [vmem:[#allocation3 + $0x938] sm:$0xff]
    %v443 = vld [vmem:[#allocation3 + $0x940] sm:$0xff]
    %v444 = vld [vmem:[#allocation3 + $0x948] sm:$0xff]
    %v445 = vld [vmem:[#allocation3 + $0x950] sm:$0xff]
    %v446 = vld [vmem:[#allocation3 + $0x958] sm:$0xff]
    %v447 = vld [vmem:[#allocation3 + $0x960] sm:$0xff]
    %v448 = vld [vmem:[#allocation3 + $0x968] sm:$0xff]
    %v449 = vld [vmem:[#allocation3 + $0x970] sm:$0xff]
    %v450 = vld [vmem:[#allocation3 + $0x978] sm:$0xff]
    %v451 = vld [vmem:[#allocation3 + $0x980] sm:$0xff]
    %v452 = vld [vmem:[#allocation3 + $0x988] sm:$0xff]
    %v453 = vld [vmem:[#allocation3 + $0x990] sm:$0xff]
    %v454 = vld [vmem:[#allocation3 + $0x998] sm:$0xff]
    %v455 = vld [vmem:[#allocation3 + $0x9a0] sm:$0xff]
    %v456 = vld [vmem:[#allocation3 + $0x9a8] sm:$0xff]
    %v457 = vld [vmem:[#allocation3 + $0x9b0] sm:$0xff]
    %v458 = vld [vmem:[#allocation3 + $0x9b8] sm:$0xff]
    %v459 = vld [vmem:[#allocation3 + $0x9c0] sm:$0xff]
    %v460 = vld [vmem:[#allocation3 + $0x9c8] sm:$0xff]
    %v461 = vld [vmem:[#allocation3 + $0x9d0] sm:$0xff]
    %v462 = vld [vmem:[#allocation3 + $0x9d8] sm:$0xff]
    %v463 = vld [vmem:[#allocation3 + $0x9e0] sm:$0xff]
    %v464 = vld [vmem:[#allocation3 + $0x9e8] sm:$0xff]
    %v465 = vld [vmem:[#allocation3 + $0x9f0] sm:$0xff]
    %v466 = vld [vmem:[#allocation3 + $0x9f8] sm:$0xff]
    %v467 = vld [vmem:[#allocation3 + $0xa00] sm:$0xff]
    %v468 = vld [vmem:[#allocation3 + $0xa08] sm:$0xff]
    %v469 = vld [vmem:[#allocation3 + $0xa10] sm:$0xff]
    %v470 = vld [vmem:[#allocation3 + $0xa18] sm:$0xff]
    %v471 = vld [vmem:[#allocation3 + $0xa20] sm:$0xff]
    %v472 = vld [vmem:[#allocation3 + $0xa28] sm:$0xff]
    %v473 = vld [vmem:[#allocation3 + $0xa30] sm:$0xff]
    %v474 = vld [vmem:[#allocation3 + $0xa38] sm:$0xff]
    %v475 = vld [vmem:[#allocation3 + $0xa40] sm:$0xff]
    %v476 = vld [vmem:[#allocation3 + $0xa48] sm:$0xff]
    %v477 = vld [vmem:[#allocation3 + $0xa50] sm:$0xff]
    %v478 = vld [vmem:[#allocation3 + $0xa58] sm:$0xff]
    %v479 = vld [vmem:[#allocation3 + $0xa60] sm:$0xff]
    %v480 = vld [vmem:[#allocation3 + $0xa68] sm:$0xff]
    %v481 = vld [vmem:[#allocation3 + $0xa70] sm:$0xff]
    %v482 = vld [vmem:[#allocation3 + $0xa78] sm:$0xff]
    %v483 = vld [vmem:[#allocation3 + $0xa80] sm:$0xff]
    %v484 = vld [vmem:[#allocation3 + $0xa88] sm:$0xff]
    %v485 = vld [vmem:[#allocation3 + $0xa90] sm:$0xff]
    %v486 = vld [vmem:[#allocation3 + $0xa98] sm:$0xff]
    %v487 = vld [vmem:[#allocation3 + $0xaa0] sm:$0xff]
    %v488 = vld [vmem:[#allocation3 + $0xaa8] sm:$0xff]
    %v489 = vld [vmem:[#allocation3 + $0xab0] sm:$0xff]
    %v490 = vld [vmem:[#allocation3 + $0xab8] sm:$0xff]
    %v491 = vld [vmem:[#allocation3 + $0xac0] sm:$0xff]
    %v492 = vld [vmem:[#allocation3 + $0xac8] sm:$0xff]
    %v493 = vld [vmem:[#allocation3 + $0xad0] sm:$0xff]
    %v494 = vld [vmem:[#allocation3 + $0xad8] sm:$0xff]
    %v495 = vld [vmem:[#allocation3 + $0xae0] sm:$0xff]
    %v496 = vld [vmem:[#allocation3 + $0xae8] sm:$0xff]
    %v497 = vld [vmem:[#allocation3 + $0xaf0] sm:$0xff]
    %v498 = vld [vmem:[#allocation3 + $0xaf8] sm:$0xff]
    %v499 = vld [vmem:[#allocation3 + $0xb00] sm:$0xff]
    %v500 = vld [vmem:[#allocation3 + $0xb08] sm:$0xff]
    %v501 = vld [vmem:[#allocation3 + $0xb10] sm:$0xff]
    %v502 = vld [vmem:[#allocation3 + $0xb18] sm:$0xff]
    %v503 = vld [vmem:[#allocation3 + $0xb20] sm:$0xff]
    %v504 = vld [vmem:[#allocation3 + $0xb28] sm:$0xff]
    %v505 = vld [vmem:[#allocation3 + $0xb30] sm:$0xff]
    %v506 = vld [vmem:[#allocation3 + $0xb38] sm:$0xff]
    %v507 = vld [vmem:[#allocation3 + $0xb40] sm:$0xff]
    %v508 = vld [vmem:[#allocation3 + $0xb48] sm:$0xff]
    %v509 = vld [vmem:[#allocation3 + $0xb50] sm:$0xff]
    %v510 = vld [vmem:[#allocation3 + $0xb58] sm:$0xff]
    %v511 = vld [vmem:[#allocation3 + $0xb60] sm:$0xff]
    %v512 = vld [vmem:[#allocation3 + $0xb68] sm:$0xff]
    %v513 = vld [vmem:[#allocation3 + $0xb70] sm:$0xff]
    %v514 = vld [vmem:[#allocation3 + $0xb78] sm:$0xff]
    %v515 = vld [vmem:[#allocation3 + $0xb80] sm:$0xff]
    %v516 = vld [vmem:[#allocation3 + $0xb88] sm:$0xff]
    %v517 = vld [vmem:[#allocation3 + $0xb90] sm:$0xff]
    %v518 = vld [vmem:[#allocation3 + $0xb98] sm:$0xff]
    %v519 = vld [vmem:[#allocation3 + $0xba0] sm:$0xff]
    %v520 = vld [vmem:[#allocation3 + $0xba8] sm:$0xff]
    %v521 = vld [vmem:[#allocation3 + $0xbb0] sm:$0xff]
    %v522 = vld [vmem:[#allocation3 + $0xbb8] sm:$0xff]
    %v523 = vld [vmem:[#allocation3 + $0xbc0] sm:$0xff]
    %v524 = vld [vmem:[#allocation3 + $0xbc8] sm:$0xff]
    %v525 = vld [vmem:[#allocation3 + $0xbd0] sm:$0xff]
    %v526 = vld [vmem:[#allocation3 + $0xbd8] sm:$0xff]
    %v527 = vld [vmem:[#allocation3 + $0xbe0] sm:$0xff]
    %v528 = vld [vmem:[#allocation3 + $0xbe8] sm:$0xff]
    %v529 = vld [vmem:[#allocation3 + $0xbf0] sm:$0xff]
    %v530 = vld [vmem:[#allocation3 + $0xbf8] sm:$0xff]
    %v531 = vld [vmem:[#allocation3 + $0xc00] sm:$0xff]
    %v532 = vld [vmem:[#allocation3 + $0xc08] sm:$0xff]
    %v533 = vld [vmem:[#allocation3 + $0xc10] sm:$0xff]
    %v534 = vld [vmem:[#allocation3 + $0xc18] sm:$0xff]
    %v535 = vld [vmem:[#allocation3 + $0xc20] sm:$0xff]
    %v536 = vld [vmem:[#allocation3 + $0xc28] sm:$0xff]
    %v537 = vld [vmem:[#allocation3 + $0xc30] sm:$0xff]
    %v538 = vld [vmem:[#allocation3 + $0xc38] sm:$0xff]
    %v539 = vld [vmem:[#allocation3 + $0xc40] sm:$0xff]
    %v540 = vld [vmem:[#allocation3 + $0xc48] sm:$0xff]
    %v541 = vld [vmem:[#allocation3 + $0xc50] sm:$0xff]
    %v542 = vld [vmem:[#allocation3 + $0xc58] sm:$0xff]
    %v543 = vld [vmem:[#allocation3 + $0xc60] sm:$0xff]
    %v544 = vld [vmem:[#allocation3 + $0xc68] sm:$0xff]
    %v545 = vld [vmem:[#allocation3 + $0xc70] sm:$0xff]
    %v546 = vld [vmem:[#allocation3 + $0xc78] sm:$0xff]
    %v547 = vld [vmem:[#allocation3 + $0xc80] sm:$0xff]
    %v548 = vld [vmem:[#allocation3 + $0xc88] sm:$0xff]
    %v549 = vld [vmem:[#allocation3 + $0xc90] sm:$0xff]
    %v550 = vld [vmem:[#allocation3 + $0xc98] sm:$0xff]
    %v551 = vld [vmem:[#allocation3 + $0xca0] sm:$0xff]
    %v552 = vld [vmem:[#allocation3 + $0xca8] sm:$0xff]
    %v553 = vld [vmem:[#allocation3 + $0xcb0] sm:$0xff]
    %v554 = vld [vmem:[#allocation3 + $0xcb8] sm:$0xff]
    %v555 = vld [vmem:[#allocation3 + $0xcc0] sm:$0xff]
    %v556 = vld [vmem:[#allocation3 + $0xcc8] sm:$0xff]
    %v557 = vld [vmem:[#allocation3 + $0xcd0] sm:$0xff]
    %v558 = vld [vmem:[#allocation3 + $0xcd8] sm:$0xff]
    %v559 = vld [vmem:[#allocation3 + $0xce0] sm:$0xff]
    %v560 = vld [vmem:[#allocation3 + $0xce8] sm:$0xff]
    %v561 = vld [vmem:[#allocation3 + $0xcf0] sm:$0xff]
    %v562 = vld [vmem:[#allocation3 + $0xcf8] sm:$0xff]
    %v563 = vld [vmem:[#allocation3 + $0xd00] sm:$0xff]
    %v564 = vld [vmem:[#allocation3 + $0xd08] sm:$0xff]
    %v565 = vld [vmem:[#allocation3 + $0xd10] sm:$0xff]
    %v566 = vld [vmem:[#allocation3 + $0xd18] sm:$0xff]
    %v567 = vld [vmem:[#allocation3 + $0xd20] sm:$0xff]
    %v568 = vld [vmem:[#allocation3 + $0xd28] sm:$0xff]
    %v569 = vld [vmem:[#allocation3 + $0xd30] sm:$0xff]
    %v570 = vld [vmem:[#allocation3 + $0xd38] sm:$0xff]
    %v571 = vld [vmem:[#allocation3 + $0xd40] sm:$0xff]
    %v572 = vld [vmem:[#allocation3 + $0xd48] sm:$0xff]
    %v573 = vld [vmem:[#allocation3 + $0xd50] sm:$0xff]
    %v574 = vld [vmem:[#allocation3 + $0xd58] sm:$0xff]
    %v575 = vld [vmem:[#allocation3 + $0xd60] sm:$0xff]
    %v576 = vld [vmem:[#allocation3 + $0xd68] sm:$0xff]
    %v577 = vld [vmem:[#allocation3 + $0xd70] sm:$0xff]
    %v578 = vld [vmem:[#allocation3 + $0xd78] sm:$0xff]
    %v579 = vld [vmem:[#allocation3 + $0xd80] sm:$0xff]
    %v580 = vld [vmem:[#allocation3 + $0xd88] sm:$0xff]
    %v581 = vld [vmem:[#allocation3 + $0xd90] sm:$0xff]
    %v582 = vld [vmem:[#allocation3 + $0xd98] sm:$0xff]
    %v583 = vld [vmem:[#allocation3 + $0xda0] sm:$0xff]
    %v584 = vld [vmem:[#allocation3 + $0xda8] sm:$0xff]
    %v585 = vld [vmem:[#allocation3 + $0xdb0] sm:$0xff]
    %v586 = vld [vmem:[#allocation3 + $0xdb8] sm:$0xff]
    %v587 = vld [vmem:[#allocation3 + $0xdc0] sm:$0xff]
    %v588 = vld [vmem:[#allocation3 + $0xdc8] sm:$0xff]
    %v589 = vld [vmem:[#allocation3 + $0xdd0] sm:$0xff]
    %v590 = vld [vmem:[#allocation3 + $0xdd8] sm:$0xff]
    %v591 = vld [vmem:[#allocation3 + $0xde0] sm:$0xff]
    %v592 = vld [vmem:[#allocation3 + $0xde8] sm:$0xff]
    %v593 = vld [vmem:[#allocation3 + $0xdf0] sm:$0xff]
    %v594 = vld [vmem:[#allocation3 + $0xdf8] sm:$0xff]
    %v595 = vld [vmem:[#allocation3 + $0xe00] sm:$0xff]
    %v596 = vld [vmem:[#allocation3 + $0xe08] sm:$0xff]
    %v597 = vld [vmem:[#allocation3 + $0xe10] sm:$0xff]
    %v598 = vld [vmem:[#allocation3 + $0xe18] sm:$0xff]
    %v599 = vld [vmem:[#allocation3 + $0xe20] sm:$0xff]
    %v600 = vld [vmem:[#allocation3 + $0xe28] sm:$0xff]
    %v601 = vld [vmem:[#allocation3 + $0xe30] sm:$0xff]
    %v602 = vld [vmem:[#allocation3 + $0xe38] sm:$0xff]
    %v603 = vld [vmem:[#allocation3 + $0xe40] sm:$0xff]
    %v604 = vld [vmem:[#allocation3 + $0xe48] sm:$0xff]
    %v605 = vld [vmem:[#allocation3 + $0xe50] sm:$0xff]
    %v606 = vld [vmem:[#allocation3 + $0xe58] sm:$0xff]
    %v607 = vld [vmem:[#allocation3 + $0xe60] sm:$0xff]
    %v608 = vld [vmem:[#allocation3 + $0xe68] sm:$0xff]
    %v609 = vld [vmem:[#allocation3 + $0xe70] sm:$0xff]
    %v610 = vld [vmem:[#allocation3 + $0xe78] sm:$0xff]
    %v611 = vld [vmem:[#allocation3 + $0xe80] sm:$0xff]
    %v612 = vld [vmem:[#allocation3 + $0xe88] sm:$0xff]
    %v613 = vld [vmem:[#allocation3 + $0xe90] sm:$0xff]
    %v614 = vld [vmem:[#allocation3 + $0xe98] sm:$0xff]
    %v615 = vld [vmem:[#allocation3 + $0xea0] sm:$0xff]
    %v616 = vld [vmem:[#allocation3 + $0xea8] sm:$0xff]
    %v617 = vld [vmem:[#allocation3 + $0xeb0] sm:$0xff]
    %v618 = vld [vmem:[#allocation3 + $0xeb8] sm:$0xff]
    %v619 = vld [vmem:[#allocation3 + $0xec0] sm:$0xff]
    %v620 = vld [vmem:[#allocation3 + $0xec8] sm:$0xff]
    %v621 = vld [vmem:[#allocation3 + $0xed0] sm:$0xff]
    %v622 = vld [vmem:[#allocation3 + $0xed8] sm:$0xff]
    %v623 = vld [vmem:[#allocation3 + $0xee0] sm:$0xff]
    %v624 = vld [vmem:[#allocation3 + $0xee8] sm:$0xff]
    %v625 = vld [vmem:[#allocation3 + $0xef0] sm:$0xff]
    %v626 = vld [vmem:[#allocation3 + $0xef8] sm:$0xff]
    %v627 = vld [vmem:[#allocation3 + $0xf00] sm:$0xff]
    %v628 = vld [vmem:[#allocation3 + $0xf08] sm:$0xff]
    %v629 = vld [vmem:[#allocation3 + $0xf10] sm:$0xff]
    %v630 = vld [vmem:[#allocation3 + $0xf18] sm:$0xff]
    %v631 = vld [vmem:[#allocation3 + $0xf20] sm:$0xff]
    %v632 = vld [vmem:[#allocation3 + $0xf28] sm:$0xff]
    %v633 = vld [vmem:[#allocation3 + $0xf30] sm:$0xff]
    %v634 = vld [vmem:[#allocation3 + $0xf38] sm:$0xff]
    %v635 = vld [vmem:[#allocation3 + $0xf40] sm:$0xff]
    %v636 = vld [vmem:[#allocation3 + $0xf48] sm:$0xff]
    %v637 = vld [vmem:[#allocation3 + $0xf50] sm:$0xff]
    %v638 = vld [vmem:[#allocation3 + $0xf58] sm:$0xff]
    %v639 = vld [vmem:[#allocation3 + $0xf60] sm:$0xff]
    %v640 = vld [vmem:[#allocation3 + $0xf68] sm:$0xff]
    %v641 = vld [vmem:[#allocation3 + $0xf70] sm:$0xff]
    %v642 = vld [vmem:[#allocation3 + $0xf78] sm:$0xff]
    %v643 = vld [vmem:[#allocation3 + $0xf80] sm:$0xff]
    %v644 = vld [vmem:[#allocation3 + $0xf88] sm:$0xff]
    %v645 = vld [vmem:[#allocation3 + $0xf90] sm:$0xff]
    %v646 = vld [vmem:[#allocation3 + $0xf98] sm:$0xff]
    %v647 = vld [vmem:[#allocation3 + $0xfa0] sm:$0xff]
    %v648 = vld [vmem:[#allocation3 + $0xfa8] sm:$0xff]
    %v649 = vld [vmem:[#allocation3 + $0xfb0] sm:$0xff]
    %v650 = vld [vmem:[#allocation3 + $0xfb8] sm:$0xff]
    %v651 = vld [vmem:[#allocation3 + $0xfc0] sm:$0xff]
    %v652 = vld [vmem:[#allocation3 + $0xfc8] sm:$0xff]
    %v653 = vld [vmem:[#allocation3 + $0xfd0] sm:$0xff]
    %v654 = vld [vmem:[#allocation3 + $0xfd8] sm:$0xff]
    %v655 = vld [vmem:[#allocation3 + $0xfe0] sm:$0xff]
    %v656 = vld [vmem:[#allocation3 + $0xfe8] sm:$0xff]
    %v657 = vld [vmem:[#allocation3 + $0xff0] sm:$0xff]
    %v658 = vld [vmem:[#allocation3 + $0xff8] sm:$0xff]
    %v659 = vld [vmem:[#allocation3 + $0x1000] sm:$0xff]
    %v660 = vld [vmem:[#allocation3 + $0x1008] sm:$0xff]
    %v661 = vld [vmem:[#allocation3 + $0x1010] sm:$0xff]
    %v662 = vld [vmem:[#allocation3 + $0x1018] sm:$0xff]
    %v663 = vld [vmem:[#allocation3 + $0x1020] sm:$0xff]
    %v664 = vld [vmem:[#allocation3 + $0x1028] sm:$0xff]
    %v665 = vld [vmem:[#allocation3 + $0x1030] sm:$0xff]
    %v666 = vld [vmem:[#allocation3 + $0x1038] sm:$0xff]
    %v667 = vld [vmem:[#allocation3 + $0x1040] sm:$0xff]
    %v668 = vld [vmem:[#allocation3 + $0x1048] sm:$0xff]
    %v669 = vld [vmem:[#allocation3 + $0x1050] sm:$0xff]
    %v670 = vld [vmem:[#allocation3 + $0x1058] sm:$0xff]
    %v671 = vld [vmem:[#allocation3 + $0x1060] sm:$0xff]
    %v672 = vld [vmem:[#allocation3 + $0x1068] sm:$0xff]
    %v673 = vld [vmem:[#allocation3 + $0x1070] sm:$0xff]
    %v674 = vld [vmem:[#allocation3 + $0x1078] sm:$0xff]
    %v675 = vld [vmem:[#allocation3 + $0x1080] sm:$0xff]
    %v676 = vld [vmem:[#allocation3 + $0x1088] sm:$0xff]
    %v677 = vld [vmem:[#allocation3 + $0x1090] sm:$0xff]
    %v678 = vld [vmem:[#allocation3 + $0x1098] sm:$0xff]
    %v679 = vld [vmem:[#allocation3 + $0x10a0] sm:$0xff]
    %v680 = vld [vmem:[#allocation3 + $0x10a8] sm:$0xff]
    %v681 = vld [vmem:[#allocation3 + $0x10b0] sm:$0xff]
    %v682 = vld [vmem:[#allocation3 + $0x10b8] sm:$0xff]
    %v683 = vld [vmem:[#allocation3 + $0x10c0] sm:$0xff]
    %v684 = vld [vmem:[#allocation3 + $0x10c8] sm:$0xff]
    %v685 = vld [vmem:[#allocation3 + $0x10d0] sm:$0xff]
    %v686 = vld [vmem:[#allocation3 + $0x10d8] sm:$0xff]
    %v687 = vld [vmem:[#allocation3 + $0x10e0] sm:$0xff]
    %v688 = vld [vmem:[#allocation3 + $0x10e8] sm:$0xff]
    %v689 = vld [vmem:[#allocation3 + $0x10f0] sm:$0xff]
    %v690 = vld [vmem:[#allocation3 + $0x10f8] sm:$0xff]
    %v691 = vld [vmem:[#allocation3 + $0x1100] sm:$0xff]
    %v692 = vld [vmem:[#allocation3 + $0x1108] sm:$0xff]
    %v693 = vld [vmem:[#allocation3 + $0x1110] sm:$0xff]
    %v694 = vld [vmem:[#allocation3 + $0x1118] sm:$0xff]
    %v695 = vld [vmem:[#allocation3 + $0x1120] sm:$0xff]
    %v696 = vld [vmem:[#allocation3 + $0x1128] sm:$0xff]
    %v697 = vld [vmem:[#allocation3 + $0x1130] sm:$0xff]
    %v698 = vld [vmem:[#allocation3 + $0x1138] sm:$0xff]
    %v699 = vld [vmem:[#allocation3 + $0x1140] sm:$0xff]
    %v700 = vld [vmem:[#allocation3 + $0x1148] sm:$0xff]
    %v701 = vld [vmem:[#allocation3 + $0x1150] sm:$0xff]
    %v702 = vld [vmem:[#allocation3 + $0x1158] sm:$0xff]
    %v703 = vld [vmem:[#allocation3 + $0x1160] sm:$0xff]
    %v704 = vld [vmem:[#allocation3 + $0x1168] sm:$0xff]
    %v705 = vld [vmem:[#allocation3 + $0x1170] sm:$0xff]
    %v706 = vld [vmem:[#allocation3 + $0x1178] sm:$0xff]
    %v707 = vld [vmem:[#allocation3 + $0x1180] sm:$0xff]
    %v708 = vld [vmem:[#allocation3 + $0x1188] sm:$0xff]
    %v709 = vld [vmem:[#allocation3 + $0x1190] sm:$0xff]
    %v710 = vld [vmem:[#allocation3 + $0x1198] sm:$0xff]
    %v711 = vld [vmem:[#allocation3 + $0x11a0] sm:$0xff]
    %v712 = vld [vmem:[#allocation3 + $0x11a8] sm:$0xff]
    %v713 = vld [vmem:[#allocation3 + $0x11b0] sm:$0xff]
    %v714 = vld [vmem:[#allocation3 + $0x11b8] sm:$0xff]
    %v715 = vld [vmem:[#allocation3 + $0x11c0] sm:$0xff]
    %v716 = vld [vmem:[#allocation3 + $0x11c8] sm:$0xff]
    %v717 = vld [vmem:[#allocation3 + $0x11d0] sm:$0xff]
    %v718 = vld [vmem:[#allocation3 + $0x11d8] sm:$0xff]
    %v719 = vld [vmem:[#allocation3 + $0x11e0] sm:$0xff]
    %v720 = vld [vmem:[#allocation3 + $0x11e8] sm:$0xff]
    %v721 = vld [vmem:[#allocation3 + $0x11f0] sm:$0xff]
    %v722 = vld [vmem:[#allocation3 + $0x11f8] sm:$0xff]
    %v723 = vld [vmem:[#allocation3 + $0x1200] sm:$0xff]
    %v724 = vld [vmem:[#allocation3 + $0x1208] sm:$0xff]
    %v725 = vld [vmem:[#allocation3 + $0x1210] sm:$0xff]
    %v726 = vld [vmem:[#allocation3 + $0x1218] sm:$0xff]
    %v727 = vld [vmem:[#allocation3 + $0x1220] sm:$0xff]
    %v728 = vld [vmem:[#allocation3 + $0x1228] sm:$0xff]
    %v729 = vld [vmem:[#allocation3 + $0x1230] sm:$0xff]
    %v730 = vld [vmem:[#allocation3 + $0x1238] sm:$0xff]
    %v731 = vld [vmem:[#allocation3 + $0x1240] sm:$0xff]
    %v732 = vld [vmem:[#allocation3 + $0x1248] sm:$0xff]
    %v733 = vld [vmem:[#allocation3 + $0x1250] sm:$0xff]
    %v734 = vld [vmem:[#allocation3 + $0x1258] sm:$0xff]
    %v735 = vld [vmem:[#allocation3 + $0x1260] sm:$0xff]
    %v736 = vld [vmem:[#allocation3 + $0x1268] sm:$0xff]
    %v737 = vld [vmem:[#allocation3 + $0x1270] sm:$0xff]
    %v738 = vld [vmem:[#allocation3 + $0x1278] sm:$0xff]
    %v739 = vld [vmem:[#allocation3 + $0x1280] sm:$0xff]
    %v740 = vld [vmem:[#allocation3 + $0x1288] sm:$0xff]
    %v741 = vld [vmem:[#allocation3 + $0x1290] sm:$0xff]
    %v742 = vld [vmem:[#allocation3 + $0x1298] sm:$0xff]
    %v743 = vld [vmem:[#allocation3 + $0x12a0] sm:$0xff]
    %v744 = vld [vmem:[#allocation3 + $0x12a8] sm:$0xff]
    %v745 = vld [vmem:[#allocation3 + $0x12b0] sm:$0xff]
    %v746 = vld [vmem:[#allocation3 + $0x12b8] sm:$0xff]
    %v747 = vld [vmem:[#allocation3 + $0x12c0] sm:$0xff]
    %v748 = vld [vmem:[#allocation3 + $0x12c8] sm:$0xff]
    %v749 = vld [vmem:[#allocation3 + $0x12d0] sm:$0xff]
    %v750 = vld [vmem:[#allocation3 + $0x12d8] sm:$0xff]
    %v751 = vld [vmem:[#allocation3 + $0x12e0] sm:$0xff]
    %v752 = vld [vmem:[#allocation3 + $0x12e8] sm:$0xff]
    %v753 = vld [vmem:[#allocation3 + $0x12f0] sm:$0xff]
    %v754 = vld [vmem:[#allocation3 + $0x12f8] sm:$0xff]
    %v755 = vld [vmem:[#allocation3 + $0x1300] sm:$0xff]
    %v756 = vld [vmem:[#allocation3 + $0x1308] sm:$0xff]
    %v757 = vld [vmem:[#allocation3 + $0x1310] sm:$0xff]
    %v758 = vld [vmem:[#allocation3 + $0x1318] sm:$0xff]
    %v759 = vld [vmem:[#allocation3 + $0x1320] sm:$0xff]
    %v760 = vld [vmem:[#allocation3 + $0x1328] sm:$0xff]
    %v761 = vld [vmem:[#allocation3 + $0x1330] sm:$0xff]
    %v762 = vld [vmem:[#allocation3 + $0x1338] sm:$0xff]
    %v763 = vld [vmem:[#allocation3 + $0x1340] sm:$0xff]
    %v764 = vld [vmem:[#allocation3 + $0x1348] sm:$0xff]
    %v765 = vld [vmem:[#allocation3 + $0x1350] sm:$0xff]
    %v766 = vld [vmem:[#allocation3 + $0x1358] sm:$0xff]
    %v767 = vld [vmem:[#allocation3 + $0x1360] sm:$0xff]
    %v768 = vld [vmem:[#allocation3 + $0x1368] sm:$0xff]
    %v769 = vld [vmem:[#allocation3 + $0x1370] sm:$0xff]
    %v770 = vld [vmem:[#allocation3 + $0x1378] sm:$0xff]
    %v771 = vld [vmem:[#allocation3 + $0x1380] sm:$0xff]
    %v772 = vld [vmem:[#allocation3 + $0x1388] sm:$0xff]
    %v773 = vld [vmem:[#allocation3 + $0x1390] sm:$0xff]
    %v774 = vld [vmem:[#allocation3 + $0x1398] sm:$0xff]
    %v775 = vld [vmem:[#allocation3 + $0x13a0] sm:$0xff]
    %v776 = vld [vmem:[#allocation3 + $0x13a8] sm:$0xff]
    %v777 = vld [vmem:[#allocation3 + $0x13b0] sm:$0xff]
    %v778 = vld [vmem:[#allocation3 + $0x13b8] sm:$0xff]
    %v779 = vld [vmem:[#allocation3 + $0x13c0] sm:$0xff]
    %v780 = vld [vmem:[#allocation3 + $0x13c8] sm:$0xff]
    %v781 = vld [vmem:[#allocation3 + $0x13d0] sm:$0xff]
    %v782 = vld [vmem:[#allocation3 + $0x13d8] sm:$0xff]
    %v783 = vld [vmem:[#allocation3 + $0x13e0] sm:$0xff]
    %v784 = vld [vmem:[#allocation3 + $0x13e8] sm:$0xff]
    %v785 = vld [vmem:[#allocation3 + $0x13f0] sm:$0xff]
    %v786 = vld [vmem:[#allocation3 + $0x13f8] sm:$0xff]
    %v787 = vld [vmem:[#allocation5] sm:$0xff]
    %v788 = vld [vmem:[#allocation5 + $0x8] sm:$0x3]
    %v791 = vlaneseq
    %v792 = vshrl.u32 %v791, 7
    %v793 = vsub.s32 0, %v792
    %v794 = vrot.slane %v787, %v793
    %v795 = vlaneseq
    %v796 = vshrl.u32 %v795, 7
    %v797 = vsub.s32 1, %v796
    %v798 = vrot.slane %v787, %v797
    %v799 = vlaneseq
    %v800 = vshrl.u32 %v799, 7
    %v801 = vsub.s32 2, %v800
    %v802 = vrot.slane %v787, %v801
    %v803 = vlaneseq
    %v804 = vshrl.u32 %v803, 7
    %v805 = vsub.s32 3, %v804
    %v806 = vrot.slane %v787, %v805
    %v807 = vlaneseq
    %v808 = vshrl.u32 %v807, 7
    %v809 = vsub.s32 4, %v808
    %v810 = vrot.slane %v787, %v809
    %v811 = vlaneseq
    %v812 = vshrl.u32 %v811, 7
    %v813 = vsub.s32 5, %v812
    %v814 = vrot.slane %v787, %v813
    %v815 = vlaneseq
    %v816 = vshrl.u32 %v815, 7
    %v817 = vsub.s32 6, %v816
    %v818 = vrot.slane %v787, %v817
    %v819 = vlaneseq
    %v820 = vshrl.u32 %v819, 7
    %v821 = vsub.s32 7, %v820
    %v822 = vrot.slane %v787, %v821
    %v823 = vlaneseq
    %v824 = vshrl.u32 %v823, 7
    %v825 = vsub.s32 0, %v824
    %v826 = vrot.slane %v788, %v825
    %v827 = vlaneseq
    %v828 = vshrl.u32 %v827, 7
    %v829 = vsub.s32 1, %v828
    %v830 = vrot.slane %v788, %v829
    %v845 = vunpack.c.l.b16 %v142
    %v846 = vunpack.c.h.b16 %v142
    %v847 = vunpack.c.l.b16 %v143
    %v848 = vunpack.c.h.b16 %v143
    %v849 = vunpack.c.l.b16 %v144
    %v850 = vunpack.c.h.b16 %v144
    %v851 = vunpack.c.l.b16 %v145
    %v852 = vunpack.c.h.b16 %v145
    %v853 = vpack.c.b16 %v845, %v845
    %v854 = vpack.c.b16 %v846, %v846
    %v855 = vpack.c.b16 %v847, %v847
    %v856 = vpack.c.b16 %v848, %v848
    %v857 = vpack.c.b16 %v849, %v849
    %v858 = vpack.c.b16 %v850, %v850
    %v859 = vpack.c.b16 %v851, %v851
    %v860 = vpack.c.b16 %v852, %v852
    %v1509 = vunpack.c.l.b16 %v147
    %v1510 = vunpack.c.h.b16 %v147
    %v1511 = vunpack.c.l.b16 %v148
    %v1512 = vunpack.c.h.b16 %v148
    %v1513 = vunpack.c.l.b16 %v149
    %v1514 = vunpack.c.h.b16 %v149
    %v1515 = vunpack.c.l.b16 %v150
    %v1516 = vunpack.c.h.b16 %v150
    %v1517 = vunpack.c.l.b16 %v151
    %v1518 = vunpack.c.h.b16 %v151
    %v1519 = vunpack.c.l.b16 %v152
    %v1520 = vunpack.c.h.b16 %v152
    %v1521 = vunpack.c.l.b16 %v153
    %v1522 = vunpack.c.h.b16 %v153
    %v1523 = vunpack.c.l.b16 %v154
    %v1524 = vunpack.c.h.b16 %v154
    %v1525 = vunpack.c.l.b16 %v155
    %v1526 = vunpack.c.h.b16 %v155
    %v1527 = vunpack.c.l.b16 %v156
    %v1528 = vunpack.c.h.b16 %v156
    %v1529 = vunpack.c.l.b16 %v157
    %v1530 = vunpack.c.h.b16 %v157
    %v1531 = vunpack.c.l.b16 %v158
    %v1532 = vunpack.c.h.b16 %v158
    %v1533 = vunpack.c.l.b16 %v159
    %v1534 = vunpack.c.h.b16 %v159
    %v1535 = vunpack.c.l.b16 %v160
    %v1536 = vunpack.c.h.b16 %v160
    %v1537 = vunpack.c.l.b16 %v161
    %v1538 = vunpack.c.h.b16 %v161
    %v1539 = vunpack.c.l.b16 %v162
    %v1540 = vunpack.c.h.b16 %v162
    %v1541 = vunpack.c.l.b16 %v163
    %v1542 = vunpack.c.h.b16 %v163
    %v1543 = vunpack.c.l.b16 %v164
    %v1544 = vunpack.c.h.b16 %v164
    %v1545 = vunpack.c.l.b16 %v165
    %v1546 = vunpack.c.h.b16 %v165
    %v1547 = vunpack.c.l.b16 %v166
    %v1548 = vunpack.c.h.b16 %v166
    %v1549 = vunpack.c.l.b16 %v167
    %v1550 = vunpack.c.h.b16 %v167
    %v1551 = vunpack.c.l.b16 %v168
    %v1552 = vunpack.c.h.b16 %v168
    %v1553 = vunpack.c.l.b16 %v169
    %v1554 = vunpack.c.h.b16 %v169
    %v1555 = vunpack.c.l.b16 %v170
    %v1556 = vunpack.c.h.b16 %v170
    %v1557 = vunpack.c.l.b16 %v171
    %v1558 = vunpack.c.h.b16 %v171
    %v1559 = vunpack.c.l.b16 %v172
    %v1560 = vunpack.c.h.b16 %v172
    %v1561 = vunpack.c.l.b16 %v173
    %v1562 = vunpack.c.h.b16 %v173
    %v1563 = vunpack.c.l.b16 %v174
    %v1564 = vunpack.c.h.b16 %v174
    %v1565 = vunpack.c.l.b16 %v175
    %v1566 = vunpack.c.h.b16 %v175
    %v1567 = vunpack.c.l.b16 %v176
    %v1568 = vunpack.c.h.b16 %v176
    %v1569 = vunpack.c.l.b16 %v177
    %v1570 = vunpack.c.h.b16 %v177
    %v1571 = vunpack.c.l.b16 %v178
    %v1572 = vunpack.c.h.b16 %v178
    %v1573 = vunpack.c.l.b16 %v179
    %v1574 = vunpack.c.h.b16 %v179
    %v1575 = vunpack.c.l.b16 %v180
    %v1576 = vunpack.c.h.b16 %v180
    %v1577 = vunpack.c.l.b16 %v181
    %v1578 = vunpack.c.h.b16 %v181
    %v1579 = vunpack.c.l.b16 %v182
    %v1580 = vunpack.c.h.b16 %v182
    %v1581 = vunpack.c.l.b16 %v183
    %v1582 = vunpack.c.h.b16 %v183
    %v1583 = vunpack.c.l.b16 %v184
    %v1584 = vunpack.c.h.b16 %v184
    %v1585 = vunpack.c.l.b16 %v185
    %v1586 = vunpack.c.h.b16 %v185
    %v1587 = vunpack.c.l.b16 %v186
    %v1588 = vunpack.c.h.b16 %v186
    %v1589 = vunpack.c.l.b16 %v187
    %v1590 = vunpack.c.h.b16 %v187
    %v1591 = vunpack.c.l.b16 %v188
    %v1592 = vunpack.c.h.b16 %v188
    %v1593 = vunpack.c.l.b16 %v189
    %v1594 = vunpack.c.h.b16 %v189
    %v1595 = vunpack.c.l.b16 %v190
    %v1596 = vunpack.c.h.b16 %v190
    %v1597 = vunpack.c.l.b16 %v191
    %v1598 = vunpack.c.h.b16 %v191
    %v1599 = vunpack.c.l.b16 %v192
    %v1600 = vunpack.c.h.b16 %v192
    %v1601 = vunpack.c.l.b16 %v193
    %v1602 = vunpack.c.h.b16 %v193
    %v1603 = vunpack.c.l.b16 %v194
    %v1604 = vunpack.c.h.b16 %v194
    %v1605 = vunpack.c.l.b16 %v195
    %v1606 = vunpack.c.h.b16 %v195
    %v1607 = vunpack.c.l.b16 %v196
    %v1608 = vunpack.c.h.b16 %v196
    %v1609 = vunpack.c.l.b16 %v197
    %v1610 = vunpack.c.h.b16 %v197
    %v1611 = vunpack.c.l.b16 %v198
    %v1612 = vunpack.c.h.b16 %v198
    %v1613 = vunpack.c.l.b16 %v199
    %v1614 = vunpack.c.h.b16 %v199
    %v1615 = vunpack.c.l.b16 %v200
    %v1616 = vunpack.c.h.b16 %v200
    %v1617 = vunpack.c.l.b16 %v201
    %v1618 = vunpack.c.h.b16 %v201
    %v1619 = vunpack.c.l.b16 %v202
    %v1620 = vunpack.c.h.b16 %v202
    %v1621 = vunpack.c.l.b16 %v203
    %v1622 = vunpack.c.h.b16 %v203
    %v1623 = vunpack.c.l.b16 %v204
    %v1624 = vunpack.c.h.b16 %v204
    %v1625 = vunpack.c.l.b16 %v205
    %v1626 = vunpack.c.h.b16 %v205
    %v1627 = vunpack.c.l.b16 %v206
    %v1628 = vunpack.c.h.b16 %v206
    %v1629 = vunpack.c.l.b16 %v207
    %v1630 = vunpack.c.h.b16 %v207
    %v1631 = vunpack.c.l.b16 %v208
    %v1632 = vunpack.c.h.b16 %v208
    %v1633 = vunpack.c.l.b16 %v209
    %v1634 = vunpack.c.h.b16 %v209
    %v1635 = vunpack.c.l.b16 %v210
    %v1636 = vunpack.c.h.b16 %v210
    %v1637 = vunpack.c.l.b16 %v211
    %v1638 = vunpack.c.h.b16 %v211
    %v1639 = vunpack.c.l.b16 %v212
    %v1640 = vunpack.c.h.b16 %v212
    %v1641 = vunpack.c.l.b16 %v213
    %v1642 = vunpack.c.h.b16 %v213
    %v1643 = vunpack.c.l.b16 %v214
    %v1644 = vunpack.c.h.b16 %v214
    %v1645 = vunpack.c.l.b16 %v215
    %v1646 = vunpack.c.h.b16 %v215
    %v1647 = vunpack.c.l.b16 %v216
    %v1648 = vunpack.c.h.b16 %v216
    %v1649 = vunpack.c.l.b16 %v217
    %v1650 = vunpack.c.h.b16 %v217
    %v1651 = vunpack.c.l.b16 %v218
    %v1652 = vunpack.c.h.b16 %v218
    %v1653 = vunpack.c.l.b16 %v219
    %v1654 = vunpack.c.h.b16 %v219
    %v1655 = vunpack.c.l.b16 %v220
    %v1656 = vunpack.c.h.b16 %v220
    %v1657 = vunpack.c.l.b16 %v221
    %v1658 = vunpack.c.h.b16 %v221
    %v1659 = vunpack.c.l.b16 %v222
    %v1660 = vunpack.c.h.b16 %v222
    %v1661 = vunpack.c.l.b16 %v223
    %v1662 = vunpack.c.h.b16 %v223
    %v1663 = vunpack.c.l.b16 %v224
    %v1664 = vunpack.c.h.b16 %v224
    %v1665 = vunpack.c.l.b16 %v225
    %v1666 = vunpack.c.h.b16 %v225
    %v1667 = vunpack.c.l.b16 %v226
    %v1668 = vunpack.c.h.b16 %v226
    %v1669 = vunpack.c.l.b16 %v227
    %v1670 = vunpack.c.h.b16 %v227
    %v1671 = vunpack.c.l.b16 %v228
    %v1672 = vunpack.c.h.b16 %v228
    %v1673 = vunpack.c.l.b16 %v229
    %v1674 = vunpack.c.h.b16 %v229
    %v1675 = vunpack.c.l.b16 %v230
    %v1676 = vunpack.c.h.b16 %v230
    %v1677 = vunpack.c.l.b16 %v231
    %v1678 = vunpack.c.h.b16 %v231
    %v1679 = vunpack.c.l.b16 %v232
    %v1680 = vunpack.c.h.b16 %v232
    %v1681 = vunpack.c.l.b16 %v233
    %v1682 = vunpack.c.h.b16 %v233
    %v1683 = vunpack.c.l.b16 %v234
    %v1684 = vunpack.c.h.b16 %v234
    %v1685 = vunpack.c.l.b16 %v235
    %v1686 = vunpack.c.h.b16 %v235
    %v1687 = vunpack.c.l.b16 %v236
    %v1688 = vunpack.c.h.b16 %v236
    %v1689 = vunpack.c.l.b16 %v237
    %v1690 = vunpack.c.h.b16 %v237
    %v1691 = vunpack.c.l.b16 %v238
    %v1692 = vunpack.c.h.b16 %v238
    %v1693 = vunpack.c.l.b16 %v239
    %v1694 = vunpack.c.h.b16 %v239
    %v1695 = vunpack.c.l.b16 %v240
    %v1696 = vunpack.c.h.b16 %v240
    %v1697 = vunpack.c.l.b16 %v241
    %v1698 = vunpack.c.h.b16 %v241
    %v1699 = vunpack.c.l.b16 %v242
    %v1700 = vunpack.c.h.b16 %v242
    %v1701 = vunpack.c.l.b16 %v243
    %v1702 = vunpack.c.h.b16 %v243
    %v1703 = vunpack.c.l.b16 %v244
    %v1704 = vunpack.c.h.b16 %v244
    %v1705 = vunpack.c.l.b16 %v245
    %v1706 = vunpack.c.h.b16 %v245
    %v1707 = vunpack.c.l.b16 %v246
    %v1708 = vunpack.c.h.b16 %v246
    %v1709 = vunpack.c.l.b16 %v247
    %v1710 = vunpack.c.h.b16 %v247
    %v1711 = vunpack.c.l.b16 %v248
    %v1712 = vunpack.c.h.b16 %v248
    %v1713 = vunpack.c.l.b16 %v249
    %v1714 = vunpack.c.h.b16 %v249
    %v1715 = vunpack.c.l.b16 %v250
    %v1716 = vunpack.c.h.b16 %v250
    %v1717 = vunpack.c.l.b16 %v251
    %v1718 = vunpack.c.h.b16 %v251
    %v1719 = vunpack.c.l.b16 %v252
    %v1720 = vunpack.c.h.b16 %v252
    %v1721 = vunpack.c.l.b16 %v253
    %v1722 = vunpack.c.h.b16 %v253
    %v1723 = vunpack.c.l.b16 %v254
    %v1724 = vunpack.c.h.b16 %v254
    %v1725 = vunpack.c.l.b16 %v255
    %v1726 = vunpack.c.h.b16 %v255
    %v1727 = vunpack.c.l.b16 %v256
    %v1728 = vunpack.c.h.b16 %v256
    %v1729 = vunpack.c.l.b16 %v257
    %v1730 = vunpack.c.h.b16 %v257
    %v1731 = vunpack.c.l.b16 %v258
    %v1732 = vunpack.c.h.b16 %v258
    %v1733 = vunpack.c.l.b16 %v259
    %v1734 = vunpack.c.h.b16 %v259
    %v1735 = vunpack.c.l.b16 %v260
    %v1736 = vunpack.c.h.b16 %v260
    %v1737 = vunpack.c.l.b16 %v261
    %v1738 = vunpack.c.h.b16 %v261
    %v1739 = vunpack.c.l.b16 %v262
    %v1740 = vunpack.c.h.b16 %v262
    %v1741 = vunpack.c.l.b16 %v263
    %v1742 = vunpack.c.h.b16 %v263
    %v1743 = vunpack.c.l.b16 %v264
    %v1744 = vunpack.c.h.b16 %v264
    %v1745 = vunpack.c.l.b16 %v265
    %v1746 = vunpack.c.h.b16 %v265
    %v1747 = vunpack.c.l.b16 %v266
    %v1748 = vunpack.c.h.b16 %v266
    %v1749 = vunpack.c.l.b16 %v267
    %v1750 = vunpack.c.h.b16 %v267
    %v1751 = vunpack.c.l.b16 %v268
    %v1752 = vunpack.c.h.b16 %v268
    %v1753 = vunpack.c.l.b16 %v269
    %v1754 = vunpack.c.h.b16 %v269
    %v1755 = vunpack.c.l.b16 %v270
    %v1756 = vunpack.c.h.b16 %v270
    %v1757 = vunpack.c.l.b16 %v271
    %v1758 = vunpack.c.h.b16 %v271
    %v1759 = vunpack.c.l.b16 %v272
    %v1760 = vunpack.c.h.b16 %v272
    %v1761 = vunpack.c.l.b16 %v273
    %v1762 = vunpack.c.h.b16 %v273
    %v1763 = vunpack.c.l.b16 %v274
    %v1764 = vunpack.c.h.b16 %v274
    %v1765 = vunpack.c.l.b16 %v275
    %v1766 = vunpack.c.h.b16 %v275
    %v1767 = vunpack.c.l.b16 %v276
    %v1768 = vunpack.c.h.b16 %v276
    %v1769 = vunpack.c.l.b16 %v277
    %v1770 = vunpack.c.h.b16 %v277
    %v1771 = vunpack.c.l.b16 %v278
    %v1772 = vunpack.c.h.b16 %v278
    %v1773 = vunpack.c.l.b16 %v279
    %v1774 = vunpack.c.h.b16 %v279
    %v1775 = vunpack.c.l.b16 %v280
    %v1776 = vunpack.c.h.b16 %v280
    %v1777 = vunpack.c.l.b16 %v281
    %v1778 = vunpack.c.h.b16 %v281
    %v1779 = vunpack.c.l.b16 %v282
    %v1780 = vunpack.c.h.b16 %v282
    %v1781 = vunpack.c.l.b16 %v283
    %v1782 = vunpack.c.h.b16 %v283
    %v1783 = vunpack.c.l.b16 %v284
    %v1784 = vunpack.c.h.b16 %v284
    %v1785 = vunpack.c.l.b16 %v285
    %v1786 = vunpack.c.h.b16 %v285
    %v1787 = vunpack.c.l.b16 %v286
    %v1788 = vunpack.c.h.b16 %v286
    %v1789 = vunpack.c.l.b16 %v287
    %v1790 = vunpack.c.h.b16 %v287
    %v1791 = vunpack.c.l.b16 %v288
    %v1792 = vunpack.c.h.b16 %v288
    %v1793 = vunpack.c.l.b16 %v289
    %v1794 = vunpack.c.h.b16 %v289
    %v1795 = vunpack.c.l.b16 %v290
    %v1796 = vunpack.c.h.b16 %v290
    %v1797 = vunpack.c.l.b16 %v291
    %v1798 = vunpack.c.h.b16 %v291
    %v1799 = vunpack.c.l.b16 %v292
    %v1800 = vunpack.c.h.b16 %v292
    %v1801 = vunpack.c.l.b16 %v293
    %v1802 = vunpack.c.h.b16 %v293
    %v1803 = vunpack.c.l.b16 %v294
    %v1804 = vunpack.c.h.b16 %v294
    %v1805 = vunpack.c.l.b16 %v295
    %v1806 = vunpack.c.h.b16 %v295
    %v1807 = vunpack.c.l.b16 %v296
    %v1808 = vunpack.c.h.b16 %v296
    %v1809 = vunpack.c.l.b16 %v297
    %v1810 = vunpack.c.h.b16 %v297
    %v1811 = vunpack.c.l.b16 %v298
    %v1812 = vunpack.c.h.b16 %v298
    %v1813 = vunpack.c.l.b16 %v299
    %v1814 = vunpack.c.h.b16 %v299
    %v1815 = vunpack.c.l.b16 %v300
    %v1816 = vunpack.c.h.b16 %v300
    %v1817 = vunpack.c.l.b16 %v301
    %v1818 = vunpack.c.h.b16 %v301
    %v1819 = vunpack.c.l.b16 %v302
    %v1820 = vunpack.c.h.b16 %v302
    %v1821 = vunpack.c.l.b16 %v303
    %v1822 = vunpack.c.h.b16 %v303
    %v1823 = vunpack.c.l.b16 %v304
    %v1824 = vunpack.c.h.b16 %v304
    %v1825 = vunpack.c.l.b16 %v305
    %v1826 = vunpack.c.h.b16 %v305
    %v1827 = vunpack.c.l.b16 %v306
    %v1828 = vunpack.c.h.b16 %v306
    %v1829 = vunpack.c.l.b16 %v307
    %v1830 = vunpack.c.h.b16 %v307
    %v1831 = vunpack.c.l.b16 %v308
    %v1832 = vunpack.c.h.b16 %v308
    %v1833 = vunpack.c.l.b16 %v309
    %v1834 = vunpack.c.h.b16 %v309
    %v1835 = vunpack.c.l.b16 %v310
    %v1836 = vunpack.c.h.b16 %v310
    %v1837 = vunpack.c.l.b16 %v311
    %v1838 = vunpack.c.h.b16 %v311
    %v1839 = vunpack.c.l.b16 %v312
    %v1840 = vunpack.c.h.b16 %v312
    %v1841 = vunpack.c.l.b16 %v313
    %v1842 = vunpack.c.h.b16 %v313
    %v1843 = vunpack.c.l.b16 %v314
    %v1844 = vunpack.c.h.b16 %v314
    %v1845 = vunpack.c.l.b16 %v315
    %v1846 = vunpack.c.h.b16 %v315
    %v1847 = vunpack.c.l.b16 %v316
    %v1848 = vunpack.c.h.b16 %v316
    %v1849 = vunpack.c.l.b16 %v317
    %v1850 = vunpack.c.h.b16 %v317
    %v1851 = vunpack.c.l.b16 %v318
    %v1852 = vunpack.c.h.b16 %v318
    %v1853 = vunpack.c.l.b16 %v319
    %v1854 = vunpack.c.h.b16 %v319
    %v1855 = vunpack.c.l.b16 %v320
    %v1856 = vunpack.c.h.b16 %v320
    %v1857 = vunpack.c.l.b16 %v321
    %v1858 = vunpack.c.h.b16 %v321
    %v1859 = vunpack.c.l.b16 %v322
    %v1860 = vunpack.c.h.b16 %v322
    %v1861 = vunpack.c.l.b16 %v323
    %v1862 = vunpack.c.h.b16 %v323
    %v1863 = vunpack.c.l.b16 %v324
    %v1864 = vunpack.c.h.b16 %v324
    %v1865 = vunpack.c.l.b16 %v325
    %v1866 = vunpack.c.h.b16 %v325
    %v1867 = vunpack.c.l.b16 %v326
    %v1868 = vunpack.c.h.b16 %v326
    %v1869 = vunpack.c.l.b16 %v327
    %v1870 = vunpack.c.h.b16 %v327
    %v1871 = vunpack.c.l.b16 %v328
    %v1872 = vunpack.c.h.b16 %v328
    %v1873 = vunpack.c.l.b16 %v329
    %v1874 = vunpack.c.h.b16 %v329
    %v1875 = vunpack.c.l.b16 %v330
    %v1876 = vunpack.c.h.b16 %v330
    %v1877 = vunpack.c.l.b16 %v331
    %v1878 = vunpack.c.h.b16 %v331
    %v1879 = vunpack.c.l.b16 %v332
    %v1880 = vunpack.c.h.b16 %v332
    %v1881 = vunpack.c.l.b16 %v333
    %v1882 = vunpack.c.h.b16 %v333
    %v1883 = vunpack.c.l.b16 %v334
    %v1884 = vunpack.c.h.b16 %v334
    %v1885 = vunpack.c.l.b16 %v335
    %v1886 = vunpack.c.h.b16 %v335
    %v1887 = vunpack.c.l.b16 %v336
    %v1888 = vunpack.c.h.b16 %v336
    %v1889 = vunpack.c.l.b16 %v337
    %v1890 = vunpack.c.h.b16 %v337
    %v1891 = vunpack.c.l.b16 %v338
    %v1892 = vunpack.c.h.b16 %v338
    %v1893 = vunpack.c.l.b16 %v339
    %v1894 = vunpack.c.h.b16 %v339
    %v1895 = vunpack.c.l.b16 %v340
    %v1896 = vunpack.c.h.b16 %v340
    %v1897 = vunpack.c.l.b16 %v341
    %v1898 = vunpack.c.h.b16 %v341
    %v1899 = vunpack.c.l.b16 %v342
    %v1900 = vunpack.c.h.b16 %v342
    %v1901 = vunpack.c.l.b16 %v343
    %v1902 = vunpack.c.h.b16 %v343
    %v1903 = vunpack.c.l.b16 %v344
    %v1904 = vunpack.c.h.b16 %v344
    %v1905 = vunpack.c.l.b16 %v345
    %v1906 = vunpack.c.h.b16 %v345
    %v1907 = vunpack.c.l.b16 %v346
    %v1908 = vunpack.c.h.b16 %v346
    %v1909 = vunpack.c.l.b16 %v347
    %v1910 = vunpack.c.h.b16 %v347
    %v1911 = vunpack.c.l.b16 %v348
    %v1912 = vunpack.c.h.b16 %v348
    %v1913 = vunpack.c.l.b16 %v349
    %v1914 = vunpack.c.h.b16 %v349
    %v1915 = vunpack.c.l.b16 %v350
    %v1916 = vunpack.c.h.b16 %v350
    %v1917 = vunpack.c.l.b16 %v351
    %v1918 = vunpack.c.h.b16 %v351
    %v1919 = vunpack.c.l.b16 %v352
    %v1920 = vunpack.c.h.b16 %v352
    %v1921 = vunpack.c.l.b16 %v353
    %v1922 = vunpack.c.h.b16 %v353
    %v1923 = vunpack.c.l.b16 %v354
    %v1924 = vunpack.c.h.b16 %v354
    %v1925 = vunpack.c.l.b16 %v355
    %v1926 = vunpack.c.h.b16 %v355
    %v1927 = vunpack.c.l.b16 %v356
    %v1928 = vunpack.c.h.b16 %v356
    %v1929 = vunpack.c.l.b16 %v357
    %v1930 = vunpack.c.h.b16 %v357
    %v1931 = vunpack.c.l.b16 %v358
    %v1932 = vunpack.c.h.b16 %v358
    %v1933 = vunpack.c.l.b16 %v359
    %v1934 = vunpack.c.h.b16 %v359
    %v1935 = vunpack.c.l.b16 %v360
    %v1936 = vunpack.c.h.b16 %v360
    %v1937 = vunpack.c.l.b16 %v361
    %v1938 = vunpack.c.h.b16 %v361
    %v1939 = vunpack.c.l.b16 %v362
    %v1940 = vunpack.c.h.b16 %v362
    %v1941 = vunpack.c.l.b16 %v363
    %v1942 = vunpack.c.h.b16 %v363
    %v1943 = vunpack.c.l.b16 %v364
    %v1944 = vunpack.c.h.b16 %v364
    %v1945 = vunpack.c.l.b16 %v365
    %v1946 = vunpack.c.h.b16 %v365
    %v1947 = vunpack.c.l.b16 %v366
    %v1948 = vunpack.c.h.b16 %v366
    %v1949 = vunpack.c.l.b16 %v367
    %v1950 = vunpack.c.h.b16 %v367
    %v1951 = vunpack.c.l.b16 %v368
    %v1952 = vunpack.c.h.b16 %v368
    %v1953 = vunpack.c.l.b16 %v369
    %v1954 = vunpack.c.h.b16 %v369
    %v1955 = vunpack.c.l.b16 %v370
    %v1956 = vunpack.c.h.b16 %v370
    %v1957 = vunpack.c.l.b16 %v371
    %v1958 = vunpack.c.h.b16 %v371
    %v1959 = vunpack.c.l.b16 %v372
    %v1960 = vunpack.c.h.b16 %v372
    %v1961 = vunpack.c.l.b16 %v373
    %v1962 = vunpack.c.h.b16 %v373
    %v1963 = vunpack.c.l.b16 %v374
    %v1964 = vunpack.c.h.b16 %v374
    %v1965 = vunpack.c.l.b16 %v375
    %v1966 = vunpack.c.h.b16 %v375
    %v1967 = vunpack.c.l.b16 %v376
    %v1968 = vunpack.c.h.b16 %v376
    %v1969 = vunpack.c.l.b16 %v377
    %v1970 = vunpack.c.h.b16 %v377
    %v1971 = vunpack.c.l.b16 %v378
    %v1972 = vunpack.c.h.b16 %v378
    %v1973 = vunpack.c.l.b16 %v379
    %v1974 = vunpack.c.h.b16 %v379
    %v1975 = vunpack.c.l.b16 %v380
    %v1976 = vunpack.c.h.b16 %v380
    %v1977 = vunpack.c.l.b16 %v381
    %v1978 = vunpack.c.h.b16 %v381
    %v1979 = vunpack.c.l.b16 %v382
    %v1980 = vunpack.c.h.b16 %v382
    %v1981 = vunpack.c.l.b16 %v383
    %v1982 = vunpack.c.h.b16 %v383
    %v1983 = vunpack.c.l.b16 %v384
    %v1984 = vunpack.c.h.b16 %v384
    %v1985 = vunpack.c.l.b16 %v385
    %v1986 = vunpack.c.h.b16 %v385
    %v1987 = vunpack.c.l.b16 %v386
    %v1988 = vunpack.c.h.b16 %v386
    %v1989 = vunpack.c.l.b16 %v387
    %v1990 = vunpack.c.h.b16 %v387
    %v1991 = vunpack.c.l.b16 %v388
    %v1992 = vunpack.c.h.b16 %v388
    %v1993 = vunpack.c.l.b16 %v389
    %v1994 = vunpack.c.h.b16 %v389
    %v1995 = vunpack.c.l.b16 %v390
    %v1996 = vunpack.c.h.b16 %v390
    %v1997 = vunpack.c.l.b16 %v391
    %v1998 = vunpack.c.h.b16 %v391
    %v1999 = vunpack.c.l.b16 %v392
    %v2000 = vunpack.c.h.b16 %v392
    %v2001 = vunpack.c.l.b16 %v393
    %v2002 = vunpack.c.h.b16 %v393
    %v2003 = vunpack.c.l.b16 %v394
    %v2004 = vunpack.c.h.b16 %v394
    %v2005 = vunpack.c.l.b16 %v395
    %v2006 = vunpack.c.h.b16 %v395
    %v2007 = vunpack.c.l.b16 %v396
    %v2008 = vunpack.c.h.b16 %v396
    %v2009 = vunpack.c.l.b16 %v397
    %v2010 = vunpack.c.h.b16 %v397
    %v2011 = vunpack.c.l.b16 %v398
    %v2012 = vunpack.c.h.b16 %v398
    %v2013 = vunpack.c.l.b16 %v399
    %v2014 = vunpack.c.h.b16 %v399
    %v2015 = vunpack.c.l.b16 %v400
    %v2016 = vunpack.c.h.b16 %v400
    %v2017 = vunpack.c.l.b16 %v401
    %v2018 = vunpack.c.h.b16 %v401
    %v2019 = vunpack.c.l.b16 %v402
    %v2020 = vunpack.c.h.b16 %v402
    %v2021 = vunpack.c.l.b16 %v403
    %v2022 = vunpack.c.h.b16 %v403
    %v2023 = vunpack.c.l.b16 %v404
    %v2024 = vunpack.c.h.b16 %v404
    %v2025 = vunpack.c.l.b16 %v405
    %v2026 = vunpack.c.h.b16 %v405
    %v2027 = vunpack.c.l.b16 %v406
    %v2028 = vunpack.c.h.b16 %v406
    %v2029 = vunpack.c.l.b16 %v407
    %v2030 = vunpack.c.h.b16 %v407
    %v2031 = vunpack.c.l.b16 %v408
    %v2032 = vunpack.c.h.b16 %v408
    %v2033 = vunpack.c.l.b16 %v409
    %v2034 = vunpack.c.h.b16 %v409
    %v2035 = vunpack.c.l.b16 %v410
    %v2036 = vunpack.c.h.b16 %v410
    %v2037 = vunpack.c.l.b16 %v411
    %v2038 = vunpack.c.h.b16 %v411
    %v2039 = vunpack.c.l.b16 %v412
    %v2040 = vunpack.c.h.b16 %v412
    %v2041 = vunpack.c.l.b16 %v413
    %v2042 = vunpack.c.h.b16 %v413
    %v2043 = vunpack.c.l.b16 %v414
    %v2044 = vunpack.c.h.b16 %v414
    %v2045 = vunpack.c.l.b16 %v415
    %v2046 = vunpack.c.h.b16 %v415
    %v2047 = vunpack.c.l.b16 %v416
    %v2048 = vunpack.c.h.b16 %v416
    %v2049 = vunpack.c.l.b16 %v417
    %v2050 = vunpack.c.h.b16 %v417
    %v2051 = vunpack.c.l.b16 %v418
    %v2052 = vunpack.c.h.b16 %v418
    %v2053 = vunpack.c.l.b16 %v419
    %v2054 = vunpack.c.h.b16 %v419
    %v2055 = vunpack.c.l.b16 %v420
    %v2056 = vunpack.c.h.b16 %v420
    %v2057 = vunpack.c.l.b16 %v421
    %v2058 = vunpack.c.h.b16 %v421
    %v2059 = vunpack.c.l.b16 %v422
    %v2060 = vunpack.c.h.b16 %v422
    %v2061 = vunpack.c.l.b16 %v423
    %v2062 = vunpack.c.h.b16 %v423
    %v2063 = vunpack.c.l.b16 %v424
    %v2064 = vunpack.c.h.b16 %v424
    %v2065 = vunpack.c.l.b16 %v425
    %v2066 = vunpack.c.h.b16 %v425
    %v2067 = vunpack.c.l.b16 %v426
    %v2068 = vunpack.c.h.b16 %v426
    %v2069 = vunpack.c.l.b16 %v427
    %v2070 = vunpack.c.h.b16 %v427
    %v2071 = vunpack.c.l.b16 %v428
    %v2072 = vunpack.c.h.b16 %v428
    %v2073 = vunpack.c.l.b16 %v429
    %v2074 = vunpack.c.h.b16 %v429
    %v2075 = vunpack.c.l.b16 %v430
    %v2076 = vunpack.c.h.b16 %v430
    %v2077 = vunpack.c.l.b16 %v431
    %v2078 = vunpack.c.h.b16 %v431
    %v2079 = vunpack.c.l.b16 %v432
    %v2080 = vunpack.c.h.b16 %v432
    %v2081 = vunpack.c.l.b16 %v433
    %v2082 = vunpack.c.h.b16 %v433
    %v2083 = vunpack.c.l.b16 %v434
    %v2084 = vunpack.c.h.b16 %v434
    %v2085 = vunpack.c.l.b16 %v435
    %v2086 = vunpack.c.h.b16 %v435
    %v2087 = vunpack.c.l.b16 %v436
    %v2088 = vunpack.c.h.b16 %v436
    %v2089 = vunpack.c.l.b16 %v437
    %v2090 = vunpack.c.h.b16 %v437
    %v2091 = vunpack.c.l.b16 %v438
    %v2092 = vunpack.c.h.b16 %v438
    %v2093 = vunpack.c.l.b16 %v439
    %v2094 = vunpack.c.h.b16 %v439
    %v2095 = vunpack.c.l.b16 %v440
    %v2096 = vunpack.c.h.b16 %v440
    %v2097 = vunpack.c.l.b16 %v441
    %v2098 = vunpack.c.h.b16 %v441
    %v2099 = vunpack.c.l.b16 %v442
    %v2100 = vunpack.c.h.b16 %v442
    %v2101 = vunpack.c.l.b16 %v443
    %v2102 = vunpack.c.h.b16 %v443
    %v2103 = vunpack.c.l.b16 %v444
    %v2104 = vunpack.c.h.b16 %v444
    %v2105 = vunpack.c.l.b16 %v445
    %v2106 = vunpack.c.h.b16 %v445
    %v2107 = vunpack.c.l.b16 %v446
    %v2108 = vunpack.c.h.b16 %v446
    %v2109 = vunpack.c.l.b16 %v447
    %v2110 = vunpack.c.h.b16 %v447
    %v2111 = vunpack.c.l.b16 %v448
    %v2112 = vunpack.c.h.b16 %v448
    %v2113 = vunpack.c.l.b16 %v449
    %v2114 = vunpack.c.h.b16 %v449
    %v2115 = vunpack.c.l.b16 %v450
    %v2116 = vunpack.c.h.b16 %v450
    %v2117 = vunpack.c.l.b16 %v451
    %v2118 = vunpack.c.h.b16 %v451
    %v2119 = vunpack.c.l.b16 %v452
    %v2120 = vunpack.c.h.b16 %v452
    %v2121 = vunpack.c.l.b16 %v453
    %v2122 = vunpack.c.h.b16 %v453
    %v2123 = vunpack.c.l.b16 %v454
    %v2124 = vunpack.c.h.b16 %v454
    %v2125 = vunpack.c.l.b16 %v455
    %v2126 = vunpack.c.h.b16 %v455
    %v2127 = vunpack.c.l.b16 %v456
    %v2128 = vunpack.c.h.b16 %v456
    %v2129 = vunpack.c.l.b16 %v457
    %v2130 = vunpack.c.h.b16 %v457
    %v2131 = vunpack.c.l.b16 %v458
    %v2132 = vunpack.c.h.b16 %v458
    %v2133 = vunpack.c.l.b16 %v459
    %v2134 = vunpack.c.h.b16 %v459
    %v2135 = vunpack.c.l.b16 %v460
    %v2136 = vunpack.c.h.b16 %v460
    %v2137 = vunpack.c.l.b16 %v461
    %v2138 = vunpack.c.h.b16 %v461
    %v2139 = vunpack.c.l.b16 %v462
    %v2140 = vunpack.c.h.b16 %v462
    %v2141 = vunpack.c.l.b16 %v463
    %v2142 = vunpack.c.h.b16 %v463
    %v2143 = vunpack.c.l.b16 %v464
    %v2144 = vunpack.c.h.b16 %v464
    %v2145 = vunpack.c.l.b16 %v465
    %v2146 = vunpack.c.h.b16 %v465
    %v2147 = vunpack.c.l.b16 %v466
    %v2148 = vunpack.c.h.b16 %v466
    %v2149 = vunpack.c.l.b16 %v467
    %v2150 = vunpack.c.h.b16 %v467
    %v2151 = vunpack.c.l.b16 %v468
    %v2152 = vunpack.c.h.b16 %v468
    %v2153 = vunpack.c.l.b16 %v469
    %v2154 = vunpack.c.h.b16 %v469
    %v2155 = vunpack.c.l.b16 %v470
    %v2156 = vunpack.c.h.b16 %v470
    %v2157 = vunpack.c.l.b16 %v471
    %v2158 = vunpack.c.h.b16 %v471
    %v2159 = vunpack.c.l.b16 %v472
    %v2160 = vunpack.c.h.b16 %v472
    %v2161 = vunpack.c.l.b16 %v473
    %v2162 = vunpack.c.h.b16 %v473
    %v2163 = vunpack.c.l.b16 %v474
    %v2164 = vunpack.c.h.b16 %v474
    %v2165 = vunpack.c.l.b16 %v475
    %v2166 = vunpack.c.h.b16 %v475
    %v2167 = vunpack.c.l.b16 %v476
    %v2168 = vunpack.c.h.b16 %v476
    %v2169 = vunpack.c.l.b16 %v477
    %v2170 = vunpack.c.h.b16 %v477
    %v2171 = vunpack.c.l.b16 %v478
    %v2172 = vunpack.c.h.b16 %v478
    %v2173 = vunpack.c.l.b16 %v479
    %v2174 = vunpack.c.h.b16 %v479
    %v2175 = vunpack.c.l.b16 %v480
    %v2176 = vunpack.c.h.b16 %v480
    %v2177 = vunpack.c.l.b16 %v481
    %v2178 = vunpack.c.h.b16 %v481
    %v2179 = vunpack.c.l.b16 %v482
    %v2180 = vunpack.c.h.b16 %v482
    %v2181 = vunpack.c.l.b16 %v483
    %v2182 = vunpack.c.h.b16 %v483
    %v2183 = vunpack.c.l.b16 %v484
    %v2184 = vunpack.c.h.b16 %v484
    %v2185 = vunpack.c.l.b16 %v485
    %v2186 = vunpack.c.h.b16 %v485
    %v2187 = vunpack.c.l.b16 %v486
    %v2188 = vunpack.c.h.b16 %v486
    %v2189 = vunpack.c.l.b16 %v487
    %v2190 = vunpack.c.h.b16 %v487
    %v2191 = vunpack.c.l.b16 %v488
    %v2192 = vunpack.c.h.b16 %v488
    %v2193 = vunpack.c.l.b16 %v489
    %v2194 = vunpack.c.h.b16 %v489
    %v2195 = vunpack.c.l.b16 %v490
    %v2196 = vunpack.c.h.b16 %v490
    %v2197 = vunpack.c.l.b16 %v491
    %v2198 = vunpack.c.h.b16 %v491
    %v2199 = vunpack.c.l.b16 %v492
    %v2200 = vunpack.c.h.b16 %v492
    %v2201 = vunpack.c.l.b16 %v493
    %v2202 = vunpack.c.h.b16 %v493
    %v2203 = vunpack.c.l.b16 %v494
    %v2204 = vunpack.c.h.b16 %v494
    %v2205 = vunpack.c.l.b16 %v495
    %v2206 = vunpack.c.h.b16 %v495
    %v2207 = vunpack.c.l.b16 %v496
    %v2208 = vunpack.c.h.b16 %v496
    %v2209 = vunpack.c.l.b16 %v497
    %v2210 = vunpack.c.h.b16 %v497
    %v2211 = vunpack.c.l.b16 %v498
    %v2212 = vunpack.c.h.b16 %v498
    %v2213 = vunpack.c.l.b16 %v499
    %v2214 = vunpack.c.h.b16 %v499
    %v2215 = vunpack.c.l.b16 %v500
    %v2216 = vunpack.c.h.b16 %v500
    %v2217 = vunpack.c.l.b16 %v501
    %v2218 = vunpack.c.h.b16 %v501
    %v2219 = vunpack.c.l.b16 %v502
    %v2220 = vunpack.c.h.b16 %v502
    %v2221 = vunpack.c.l.b16 %v503
    %v2222 = vunpack.c.h.b16 %v503
    %v2223 = vunpack.c.l.b16 %v504
    %v2224 = vunpack.c.h.b16 %v504
    %v2225 = vunpack.c.l.b16 %v505
    %v2226 = vunpack.c.h.b16 %v505
    %v2227 = vunpack.c.l.b16 %v506
    %v2228 = vunpack.c.h.b16 %v506
    %v2229 = vunpack.c.l.b16 %v507
    %v2230 = vunpack.c.h.b16 %v507
    %v2231 = vunpack.c.l.b16 %v508
    %v2232 = vunpack.c.h.b16 %v508
    %v2233 = vunpack.c.l.b16 %v509
    %v2234 = vunpack.c.h.b16 %v509
    %v2235 = vunpack.c.l.b16 %v510
    %v2236 = vunpack.c.h.b16 %v510
    %v2237 = vunpack.c.l.b16 %v511
    %v2238 = vunpack.c.h.b16 %v511
    %v2239 = vunpack.c.l.b16 %v512
    %v2240 = vunpack.c.h.b16 %v512
    %v2241 = vunpack.c.l.b16 %v513
    %v2242 = vunpack.c.h.b16 %v513
    %v2243 = vunpack.c.l.b16 %v514
    %v2244 = vunpack.c.h.b16 %v514
    %v2245 = vunpack.c.l.b16 %v515
    %v2246 = vunpack.c.h.b16 %v515
    %v2247 = vunpack.c.l.b16 %v516
    %v2248 = vunpack.c.h.b16 %v516
    %v2249 = vunpack.c.l.b16 %v517
    %v2250 = vunpack.c.h.b16 %v517
    %v2251 = vunpack.c.l.b16 %v518
    %v2252 = vunpack.c.h.b16 %v518
    %v2253 = vunpack.c.l.b16 %v519
    %v2254 = vunpack.c.h.b16 %v519
    %v2255 = vunpack.c.l.b16 %v520
    %v2256 = vunpack.c.h.b16 %v520
    %v2257 = vunpack.c.l.b16 %v521
    %v2258 = vunpack.c.h.b16 %v521
    %v2259 = vunpack.c.l.b16 %v522
    %v2260 = vunpack.c.h.b16 %v522
    %v2261 = vunpack.c.l.b16 %v523
    %v2262 = vunpack.c.h.b16 %v523
    %v2263 = vunpack.c.l.b16 %v524
    %v2264 = vunpack.c.h.b16 %v524
    %v2265 = vunpack.c.l.b16 %v525
    %v2266 = vunpack.c.h.b16 %v525
    %v2267 = vunpack.c.l.b16 %v526
    %v2268 = vunpack.c.h.b16 %v526
    %v2269 = vunpack.c.l.b16 %v527
    %v2270 = vunpack.c.h.b16 %v527
    %v2271 = vunpack.c.l.b16 %v528
    %v2272 = vunpack.c.h.b16 %v528
    %v2273 = vunpack.c.l.b16 %v529
    %v2274 = vunpack.c.h.b16 %v529
    %v2275 = vunpack.c.l.b16 %v530
    %v2276 = vunpack.c.h.b16 %v530
    %v2277 = vunpack.c.l.b16 %v531
    %v2278 = vunpack.c.h.b16 %v531
    %v2279 = vunpack.c.l.b16 %v532
    %v2280 = vunpack.c.h.b16 %v532
    %v2281 = vunpack.c.l.b16 %v533
    %v2282 = vunpack.c.h.b16 %v533
    %v2283 = vunpack.c.l.b16 %v534
    %v2284 = vunpack.c.h.b16 %v534
    %v2285 = vunpack.c.l.b16 %v535
    %v2286 = vunpack.c.h.b16 %v535
    %v2287 = vunpack.c.l.b16 %v536
    %v2288 = vunpack.c.h.b16 %v536
    %v2289 = vunpack.c.l.b16 %v537
    %v2290 = vunpack.c.h.b16 %v537
    %v2291 = vunpack.c.l.b16 %v538
    %v2292 = vunpack.c.h.b16 %v538
    %v2293 = vunpack.c.l.b16 %v539
    %v2294 = vunpack.c.h.b16 %v539
    %v2295 = vunpack.c.l.b16 %v540
    %v2296 = vunpack.c.h.b16 %v540
    %v2297 = vunpack.c.l.b16 %v541
    %v2298 = vunpack.c.h.b16 %v541
    %v2299 = vunpack.c.l.b16 %v542
    %v2300 = vunpack.c.h.b16 %v542
    %v2301 = vunpack.c.l.b16 %v543
    %v2302 = vunpack.c.h.b16 %v543
    %v2303 = vunpack.c.l.b16 %v544
    %v2304 = vunpack.c.h.b16 %v544
    %v2305 = vunpack.c.l.b16 %v545
    %v2306 = vunpack.c.h.b16 %v545
    %v2307 = vunpack.c.l.b16 %v546
    %v2308 = vunpack.c.h.b16 %v546
    %v2309 = vunpack.c.l.b16 %v547
    %v2310 = vunpack.c.h.b16 %v547
    %v2311 = vunpack.c.l.b16 %v548
    %v2312 = vunpack.c.h.b16 %v548
    %v2313 = vunpack.c.l.b16 %v549
    %v2314 = vunpack.c.h.b16 %v549
    %v2315 = vunpack.c.l.b16 %v550
    %v2316 = vunpack.c.h.b16 %v550
    %v2317 = vunpack.c.l.b16 %v551
    %v2318 = vunpack.c.h.b16 %v551
    %v2319 = vunpack.c.l.b16 %v552
    %v2320 = vunpack.c.h.b16 %v552
    %v2321 = vunpack.c.l.b16 %v553
    %v2322 = vunpack.c.h.b16 %v553
    %v2323 = vunpack.c.l.b16 %v554
    %v2324 = vunpack.c.h.b16 %v554
    %v2325 = vunpack.c.l.b16 %v555
    %v2326 = vunpack.c.h.b16 %v555
    %v2327 = vunpack.c.l.b16 %v556
    %v2328 = vunpack.c.h.b16 %v556
    %v2329 = vunpack.c.l.b16 %v557
    %v2330 = vunpack.c.h.b16 %v557
    %v2331 = vunpack.c.l.b16 %v558
    %v2332 = vunpack.c.h.b16 %v558
    %v2333 = vunpack.c.l.b16 %v559
    %v2334 = vunpack.c.h.b16 %v559
    %v2335 = vunpack.c.l.b16 %v560
    %v2336 = vunpack.c.h.b16 %v560
    %v2337 = vunpack.c.l.b16 %v561
    %v2338 = vunpack.c.h.b16 %v561
    %v2339 = vunpack.c.l.b16 %v562
    %v2340 = vunpack.c.h.b16 %v562
    %v2341 = vunpack.c.l.b16 %v563
    %v2342 = vunpack.c.h.b16 %v563
    %v2343 = vunpack.c.l.b16 %v564
    %v2344 = vunpack.c.h.b16 %v564
    %v2345 = vunpack.c.l.b16 %v565
    %v2346 = vunpack.c.h.b16 %v565
    %v2347 = vunpack.c.l.b16 %v566
    %v2348 = vunpack.c.h.b16 %v566
    %v2349 = vunpack.c.l.b16 %v567
    %v2350 = vunpack.c.h.b16 %v567
    %v2351 = vunpack.c.l.b16 %v568
    %v2352 = vunpack.c.h.b16 %v568
    %v2353 = vunpack.c.l.b16 %v569
    %v2354 = vunpack.c.h.b16 %v569
    %v2355 = vunpack.c.l.b16 %v570
    %v2356 = vunpack.c.h.b16 %v570
    %v2357 = vunpack.c.l.b16 %v571
    %v2358 = vunpack.c.h.b16 %v571
    %v2359 = vunpack.c.l.b16 %v572
    %v2360 = vunpack.c.h.b16 %v572
    %v2361 = vunpack.c.l.b16 %v573
    %v2362 = vunpack.c.h.b16 %v573
    %v2363 = vunpack.c.l.b16 %v574
    %v2364 = vunpack.c.h.b16 %v574
    %v2365 = vunpack.c.l.b16 %v575
    %v2366 = vunpack.c.h.b16 %v575
    %v2367 = vunpack.c.l.b16 %v576
    %v2368 = vunpack.c.h.b16 %v576
    %v2369 = vunpack.c.l.b16 %v577
    %v2370 = vunpack.c.h.b16 %v577
    %v2371 = vunpack.c.l.b16 %v578
    %v2372 = vunpack.c.h.b16 %v578
    %v2373 = vunpack.c.l.b16 %v579
    %v2374 = vunpack.c.h.b16 %v579
    %v2375 = vunpack.c.l.b16 %v580
    %v2376 = vunpack.c.h.b16 %v580
    %v2377 = vunpack.c.l.b16 %v581
    %v2378 = vunpack.c.h.b16 %v581
    %v2379 = vunpack.c.l.b16 %v582
    %v2380 = vunpack.c.h.b16 %v582
    %v2381 = vunpack.c.l.b16 %v583
    %v2382 = vunpack.c.h.b16 %v583
    %v2383 = vunpack.c.l.b16 %v584
    %v2384 = vunpack.c.h.b16 %v584
    %v2385 = vunpack.c.l.b16 %v585
    %v2386 = vunpack.c.h.b16 %v585
    %v2387 = vunpack.c.l.b16 %v586
    %v2388 = vunpack.c.h.b16 %v586
    %v2389 = vunpack.c.l.b16 %v587
    %v2390 = vunpack.c.h.b16 %v587
    %v2391 = vunpack.c.l.b16 %v588
    %v2392 = vunpack.c.h.b16 %v588
    %v2393 = vunpack.c.l.b16 %v589
    %v2394 = vunpack.c.h.b16 %v589
    %v2395 = vunpack.c.l.b16 %v590
    %v2396 = vunpack.c.h.b16 %v590
    %v2397 = vunpack.c.l.b16 %v591
    %v2398 = vunpack.c.h.b16 %v591
    %v2399 = vunpack.c.l.b16 %v592
    %v2400 = vunpack.c.h.b16 %v592
    %v2401 = vunpack.c.l.b16 %v593
    %v2402 = vunpack.c.h.b16 %v593
    %v2403 = vunpack.c.l.b16 %v594
    %v2404 = vunpack.c.h.b16 %v594
    %v2405 = vunpack.c.l.b16 %v595
    %v2406 = vunpack.c.h.b16 %v595
    %v2407 = vunpack.c.l.b16 %v596
    %v2408 = vunpack.c.h.b16 %v596
    %v2409 = vunpack.c.l.b16 %v597
    %v2410 = vunpack.c.h.b16 %v597
    %v2411 = vunpack.c.l.b16 %v598
    %v2412 = vunpack.c.h.b16 %v598
    %v2413 = vunpack.c.l.b16 %v599
    %v2414 = vunpack.c.h.b16 %v599
    %v2415 = vunpack.c.l.b16 %v600
    %v2416 = vunpack.c.h.b16 %v600
    %v2417 = vunpack.c.l.b16 %v601
    %v2418 = vunpack.c.h.b16 %v601
    %v2419 = vunpack.c.l.b16 %v602
    %v2420 = vunpack.c.h.b16 %v602
    %v2421 = vunpack.c.l.b16 %v603
    %v2422 = vunpack.c.h.b16 %v603
    %v2423 = vunpack.c.l.b16 %v604
    %v2424 = vunpack.c.h.b16 %v604
    %v2425 = vunpack.c.l.b16 %v605
    %v2426 = vunpack.c.h.b16 %v605
    %v2427 = vunpack.c.l.b16 %v606
    %v2428 = vunpack.c.h.b16 %v606
    %v2429 = vunpack.c.l.b16 %v607
    %v2430 = vunpack.c.h.b16 %v607
    %v2431 = vunpack.c.l.b16 %v608
    %v2432 = vunpack.c.h.b16 %v608
    %v2433 = vunpack.c.l.b16 %v609
    %v2434 = vunpack.c.h.b16 %v609
    %v2435 = vunpack.c.l.b16 %v610
    %v2436 = vunpack.c.h.b16 %v610
    %v2437 = vunpack.c.l.b16 %v611
    %v2438 = vunpack.c.h.b16 %v611
    %v2439 = vunpack.c.l.b16 %v612
    %v2440 = vunpack.c.h.b16 %v612
    %v2441 = vunpack.c.l.b16 %v613
    %v2442 = vunpack.c.h.b16 %v613
    %v2443 = vunpack.c.l.b16 %v614
    %v2444 = vunpack.c.h.b16 %v614
    %v2445 = vunpack.c.l.b16 %v615
    %v2446 = vunpack.c.h.b16 %v615
    %v2447 = vunpack.c.l.b16 %v616
    %v2448 = vunpack.c.h.b16 %v616
    %v2449 = vunpack.c.l.b16 %v617
    %v2450 = vunpack.c.h.b16 %v617
    %v2451 = vunpack.c.l.b16 %v618
    %v2452 = vunpack.c.h.b16 %v618
    %v2453 = vunpack.c.l.b16 %v619
    %v2454 = vunpack.c.h.b16 %v619
    %v2455 = vunpack.c.l.b16 %v620
    %v2456 = vunpack.c.h.b16 %v620
    %v2457 = vunpack.c.l.b16 %v621
    %v2458 = vunpack.c.h.b16 %v621
    %v2459 = vunpack.c.l.b16 %v622
    %v2460 = vunpack.c.h.b16 %v622
    %v2461 = vunpack.c.l.b16 %v623
    %v2462 = vunpack.c.h.b16 %v623
    %v2463 = vunpack.c.l.b16 %v624
    %v2464 = vunpack.c.h.b16 %v624
    %v2465 = vunpack.c.l.b16 %v625
    %v2466 = vunpack.c.h.b16 %v625
    %v2467 = vunpack.c.l.b16 %v626
    %v2468 = vunpack.c.h.b16 %v626
    %v2469 = vunpack.c.l.b16 %v627
    %v2470 = vunpack.c.h.b16 %v627
    %v2471 = vunpack.c.l.b16 %v628
    %v2472 = vunpack.c.h.b16 %v628
    %v2473 = vunpack.c.l.b16 %v629
    %v2474 = vunpack.c.h.b16 %v629
    %v2475 = vunpack.c.l.b16 %v630
    %v2476 = vunpack.c.h.b16 %v630
    %v2477 = vunpack.c.l.b16 %v631
    %v2478 = vunpack.c.h.b16 %v631
    %v2479 = vunpack.c.l.b16 %v632
    %v2480 = vunpack.c.h.b16 %v632
    %v2481 = vunpack.c.l.b16 %v633
    %v2482 = vunpack.c.h.b16 %v633
    %v2483 = vunpack.c.l.b16 %v634
    %v2484 = vunpack.c.h.b16 %v634
    %v2485 = vunpack.c.l.b16 %v635
    %v2486 = vunpack.c.h.b16 %v635
    %v2487 = vunpack.c.l.b16 %v636
    %v2488 = vunpack.c.h.b16 %v636
    %v2489 = vunpack.c.l.b16 %v637
    %v2490 = vunpack.c.h.b16 %v637
    %v2491 = vunpack.c.l.b16 %v638
    %v2492 = vunpack.c.h.b16 %v638
    %v2493 = vunpack.c.l.b16 %v639
    %v2494 = vunpack.c.h.b16 %v639
    %v2495 = vunpack.c.l.b16 %v640
    %v2496 = vunpack.c.h.b16 %v640
    %v2497 = vunpack.c.l.b16 %v641
    %v2498 = vunpack.c.h.b16 %v641
    %v2499 = vunpack.c.l.b16 %v642
    %v2500 = vunpack.c.h.b16 %v642
    %v2501 = vunpack.c.l.b16 %v643
    %v2502 = vunpack.c.h.b16 %v643
    %v2503 = vunpack.c.l.b16 %v644
    %v2504 = vunpack.c.h.b16 %v644
    %v2505 = vunpack.c.l.b16 %v645
    %v2506 = vunpack.c.h.b16 %v645
    %v2507 = vunpack.c.l.b16 %v646
    %v2508 = vunpack.c.h.b16 %v646
    %v2509 = vunpack.c.l.b16 %v647
    %v2510 = vunpack.c.h.b16 %v647
    %v2511 = vunpack.c.l.b16 %v648
    %v2512 = vunpack.c.h.b16 %v648
    %v2513 = vunpack.c.l.b16 %v649
    %v2514 = vunpack.c.h.b16 %v649
    %v2515 = vunpack.c.l.b16 %v650
    %v2516 = vunpack.c.h.b16 %v650
    %v2517 = vunpack.c.l.b16 %v651
    %v2518 = vunpack.c.h.b16 %v651
    %v2519 = vunpack.c.l.b16 %v652
    %v2520 = vunpack.c.h.b16 %v652
    %v2521 = vunpack.c.l.b16 %v653
    %v2522 = vunpack.c.h.b16 %v653
    %v2523 = vunpack.c.l.b16 %v654
    %v2524 = vunpack.c.h.b16 %v654
    %v2525 = vunpack.c.l.b16 %v655
    %v2526 = vunpack.c.h.b16 %v655
    %v2527 = vunpack.c.l.b16 %v656
    %v2528 = vunpack.c.h.b16 %v656
    %v2529 = vunpack.c.l.b16 %v657
    %v2530 = vunpack.c.h.b16 %v657
    %v2531 = vunpack.c.l.b16 %v658
    %v2532 = vunpack.c.h.b16 %v658
    %v2533 = vunpack.c.l.b16 %v659
    %v2534 = vunpack.c.h.b16 %v659
    %v2535 = vunpack.c.l.b16 %v660
    %v2536 = vunpack.c.h.b16 %v660
    %v2537 = vunpack.c.l.b16 %v661
    %v2538 = vunpack.c.h.b16 %v661
    %v2539 = vunpack.c.l.b16 %v662
    %v2540 = vunpack.c.h.b16 %v662
    %v2541 = vunpack.c.l.b16 %v663
    %v2542 = vunpack.c.h.b16 %v663
    %v2543 = vunpack.c.l.b16 %v664
    %v2544 = vunpack.c.h.b16 %v664
    %v2545 = vunpack.c.l.b16 %v665
    %v2546 = vunpack.c.h.b16 %v665
    %v2547 = vunpack.c.l.b16 %v666
    %v2548 = vunpack.c.h.b16 %v666
    %v2549 = vunpack.c.l.b16 %v667
    %v2550 = vunpack.c.h.b16 %v667
    %v2551 = vunpack.c.l.b16 %v668
    %v2552 = vunpack.c.h.b16 %v668
    %v2553 = vunpack.c.l.b16 %v669
    %v2554 = vunpack.c.h.b16 %v669
    %v2555 = vunpack.c.l.b16 %v670
    %v2556 = vunpack.c.h.b16 %v670
    %v2557 = vunpack.c.l.b16 %v671
    %v2558 = vunpack.c.h.b16 %v671
    %v2559 = vunpack.c.l.b16 %v672
    %v2560 = vunpack.c.h.b16 %v672
    %v2561 = vunpack.c.l.b16 %v673
    %v2562 = vunpack.c.h.b16 %v673
    %v2563 = vunpack.c.l.b16 %v674
    %v2564 = vunpack.c.h.b16 %v674
    %v2565 = vunpack.c.l.b16 %v675
    %v2566 = vunpack.c.h.b16 %v675
    %v2567 = vunpack.c.l.b16 %v676
    %v2568 = vunpack.c.h.b16 %v676
    %v2569 = vunpack.c.l.b16 %v677
    %v2570 = vunpack.c.h.b16 %v677
    %v2571 = vunpack.c.l.b16 %v678
    %v2572 = vunpack.c.h.b16 %v678
    %v2573 = vunpack.c.l.b16 %v679
    %v2574 = vunpack.c.h.b16 %v679
    %v2575 = vunpack.c.l.b16 %v680
    %v2576 = vunpack.c.h.b16 %v680
    %v2577 = vunpack.c.l.b16 %v681
    %v2578 = vunpack.c.h.b16 %v681
    %v2579 = vunpack.c.l.b16 %v682
    %v2580 = vunpack.c.h.b16 %v682
    %v2581 = vunpack.c.l.b16 %v683
    %v2582 = vunpack.c.h.b16 %v683
    %v2583 = vunpack.c.l.b16 %v684
    %v2584 = vunpack.c.h.b16 %v684
    %v2585 = vunpack.c.l.b16 %v685
    %v2586 = vunpack.c.h.b16 %v685
    %v2587 = vunpack.c.l.b16 %v686
    %v2588 = vunpack.c.h.b16 %v686
    %v2589 = vunpack.c.l.b16 %v687
    %v2590 = vunpack.c.h.b16 %v687
    %v2591 = vunpack.c.l.b16 %v688
    %v2592 = vunpack.c.h.b16 %v688
    %v2593 = vunpack.c.l.b16 %v689
    %v2594 = vunpack.c.h.b16 %v689
    %v2595 = vunpack.c.l.b16 %v690
    %v2596 = vunpack.c.h.b16 %v690
    %v2597 = vunpack.c.l.b16 %v691
    %v2598 = vunpack.c.h.b16 %v691
    %v2599 = vunpack.c.l.b16 %v692
    %v2600 = vunpack.c.h.b16 %v692
    %v2601 = vunpack.c.l.b16 %v693
    %v2602 = vunpack.c.h.b16 %v693
    %v2603 = vunpack.c.l.b16 %v694
    %v2604 = vunpack.c.h.b16 %v694
    %v2605 = vunpack.c.l.b16 %v695
    %v2606 = vunpack.c.h.b16 %v695
    %v2607 = vunpack.c.l.b16 %v696
    %v2608 = vunpack.c.h.b16 %v696
    %v2609 = vunpack.c.l.b16 %v697
    %v2610 = vunpack.c.h.b16 %v697
    %v2611 = vunpack.c.l.b16 %v698
    %v2612 = vunpack.c.h.b16 %v698
    %v2613 = vunpack.c.l.b16 %v699
    %v2614 = vunpack.c.h.b16 %v699
    %v2615 = vunpack.c.l.b16 %v700
    %v2616 = vunpack.c.h.b16 %v700
    %v2617 = vunpack.c.l.b16 %v701
    %v2618 = vunpack.c.h.b16 %v701
    %v2619 = vunpack.c.l.b16 %v702
    %v2620 = vunpack.c.h.b16 %v702
    %v2621 = vunpack.c.l.b16 %v703
    %v2622 = vunpack.c.h.b16 %v703
    %v2623 = vunpack.c.l.b16 %v704
    %v2624 = vunpack.c.h.b16 %v704
    %v2625 = vunpack.c.l.b16 %v705
    %v2626 = vunpack.c.h.b16 %v705
    %v2627 = vunpack.c.l.b16 %v706
    %v2628 = vunpack.c.h.b16 %v706
    %v2629 = vunpack.c.l.b16 %v707
    %v2630 = vunpack.c.h.b16 %v707
    %v2631 = vunpack.c.l.b16 %v708
    %v2632 = vunpack.c.h.b16 %v708
    %v2633 = vunpack.c.l.b16 %v709
    %v2634 = vunpack.c.h.b16 %v709
    %v2635 = vunpack.c.l.b16 %v710
    %v2636 = vunpack.c.h.b16 %v710
    %v2637 = vunpack.c.l.b16 %v711
    %v2638 = vunpack.c.h.b16 %v711
    %v2639 = vunpack.c.l.b16 %v712
    %v2640 = vunpack.c.h.b16 %v712
    %v2641 = vunpack.c.l.b16 %v713
    %v2642 = vunpack.c.h.b16 %v713
    %v2643 = vunpack.c.l.b16 %v714
    %v2644 = vunpack.c.h.b16 %v714
    %v2645 = vunpack.c.l.b16 %v715
    %v2646 = vunpack.c.h.b16 %v715
    %v2647 = vunpack.c.l.b16 %v716
    %v2648 = vunpack.c.h.b16 %v716
    %v2649 = vunpack.c.l.b16 %v717
    %v2650 = vunpack.c.h.b16 %v717
    %v2651 = vunpack.c.l.b16 %v718
    %v2652 = vunpack.c.h.b16 %v718
    %v2653 = vunpack.c.l.b16 %v719
    %v2654 = vunpack.c.h.b16 %v719
    %v2655 = vunpack.c.l.b16 %v720
    %v2656 = vunpack.c.h.b16 %v720
    %v2657 = vunpack.c.l.b16 %v721
    %v2658 = vunpack.c.h.b16 %v721
    %v2659 = vunpack.c.l.b16 %v722
    %v2660 = vunpack.c.h.b16 %v722
    %v2661 = vunpack.c.l.b16 %v723
    %v2662 = vunpack.c.h.b16 %v723
    %v2663 = vunpack.c.l.b16 %v724
    %v2664 = vunpack.c.h.b16 %v724
    %v2665 = vunpack.c.l.b16 %v725
    %v2666 = vunpack.c.h.b16 %v725
    %v2667 = vunpack.c.l.b16 %v726
    %v2668 = vunpack.c.h.b16 %v726
    %v2669 = vunpack.c.l.b16 %v727
    %v2670 = vunpack.c.h.b16 %v727
    %v2671 = vunpack.c.l.b16 %v728
    %v2672 = vunpack.c.h.b16 %v728
    %v2673 = vunpack.c.l.b16 %v729
    %v2674 = vunpack.c.h.b16 %v729
    %v2675 = vunpack.c.l.b16 %v730
    %v2676 = vunpack.c.h.b16 %v730
    %v2677 = vunpack.c.l.b16 %v731
    %v2678 = vunpack.c.h.b16 %v731
    %v2679 = vunpack.c.l.b16 %v732
    %v2680 = vunpack.c.h.b16 %v732
    %v2681 = vunpack.c.l.b16 %v733
    %v2682 = vunpack.c.h.b16 %v733
    %v2683 = vunpack.c.l.b16 %v734
    %v2684 = vunpack.c.h.b16 %v734
    %v2685 = vunpack.c.l.b16 %v735
    %v2686 = vunpack.c.h.b16 %v735
    %v2687 = vunpack.c.l.b16 %v736
    %v2688 = vunpack.c.h.b16 %v736
    %v2689 = vunpack.c.l.b16 %v737
    %v2690 = vunpack.c.h.b16 %v737
    %v2691 = vunpack.c.l.b16 %v738
    %v2692 = vunpack.c.h.b16 %v738
    %v2693 = vunpack.c.l.b16 %v739
    %v2694 = vunpack.c.h.b16 %v739
    %v2695 = vunpack.c.l.b16 %v740
    %v2696 = vunpack.c.h.b16 %v740
    %v2697 = vunpack.c.l.b16 %v741
    %v2698 = vunpack.c.h.b16 %v741
    %v2699 = vunpack.c.l.b16 %v742
    %v2700 = vunpack.c.h.b16 %v742
    %v2701 = vunpack.c.l.b16 %v743
    %v2702 = vunpack.c.h.b16 %v743
    %v2703 = vunpack.c.l.b16 %v744
    %v2704 = vunpack.c.h.b16 %v744
    %v2705 = vunpack.c.l.b16 %v745
    %v2706 = vunpack.c.h.b16 %v745
    %v2707 = vunpack.c.l.b16 %v746
    %v2708 = vunpack.c.h.b16 %v746
    %v2709 = vunpack.c.l.b16 %v747
    %v2710 = vunpack.c.h.b16 %v747
    %v2711 = vunpack.c.l.b16 %v748
    %v2712 = vunpack.c.h.b16 %v748
    %v2713 = vunpack.c.l.b16 %v749
    %v2714 = vunpack.c.h.b16 %v749
    %v2715 = vunpack.c.l.b16 %v750
    %v2716 = vunpack.c.h.b16 %v750
    %v2717 = vunpack.c.l.b16 %v751
    %v2718 = vunpack.c.h.b16 %v751
    %v2719 = vunpack.c.l.b16 %v752
    %v2720 = vunpack.c.h.b16 %v752
    %v2721 = vunpack.c.l.b16 %v753
    %v2722 = vunpack.c.h.b16 %v753
    %v2723 = vunpack.c.l.b16 %v754
    %v2724 = vunpack.c.h.b16 %v754
    %v2725 = vunpack.c.l.b16 %v755
    %v2726 = vunpack.c.h.b16 %v755
    %v2727 = vunpack.c.l.b16 %v756
    %v2728 = vunpack.c.h.b16 %v756
    %v2729 = vunpack.c.l.b16 %v757
    %v2730 = vunpack.c.h.b16 %v757
    %v2731 = vunpack.c.l.b16 %v758
    %v2732 = vunpack.c.h.b16 %v758
    %v2733 = vunpack.c.l.b16 %v759
    %v2734 = vunpack.c.h.b16 %v759
    %v2735 = vunpack.c.l.b16 %v760
    %v2736 = vunpack.c.h.b16 %v760
    %v2737 = vunpack.c.l.b16 %v761
    %v2738 = vunpack.c.h.b16 %v761
    %v2739 = vunpack.c.l.b16 %v762
    %v2740 = vunpack.c.h.b16 %v762
    %v2741 = vunpack.c.l.b16 %v763
    %v2742 = vunpack.c.h.b16 %v763
    %v2743 = vunpack.c.l.b16 %v764
    %v2744 = vunpack.c.h.b16 %v764
    %v2745 = vunpack.c.l.b16 %v765
    %v2746 = vunpack.c.h.b16 %v765
    %v2747 = vunpack.c.l.b16 %v766
    %v2748 = vunpack.c.h.b16 %v766
    %v2749 = vunpack.c.l.b16 %v767
    %v2750 = vunpack.c.h.b16 %v767
    %v2751 = vunpack.c.l.b16 %v768
    %v2752 = vunpack.c.h.b16 %v768
    %v2753 = vunpack.c.l.b16 %v769
    %v2754 = vunpack.c.h.b16 %v769
    %v2755 = vunpack.c.l.b16 %v770
    %v2756 = vunpack.c.h.b16 %v770
    %v2757 = vunpack.c.l.b16 %v771
    %v2758 = vunpack.c.h.b16 %v771
    %v2759 = vunpack.c.l.b16 %v772
    %v2760 = vunpack.c.h.b16 %v772
    %v2761 = vunpack.c.l.b16 %v773
    %v2762 = vunpack.c.h.b16 %v773
    %v2763 = vunpack.c.l.b16 %v774
    %v2764 = vunpack.c.h.b16 %v774
    %v2765 = vunpack.c.l.b16 %v775
    %v2766 = vunpack.c.h.b16 %v775
    %v2767 = vunpack.c.l.b16 %v776
    %v2768 = vunpack.c.h.b16 %v776
    %v2769 = vunpack.c.l.b16 %v777
    %v2770 = vunpack.c.h.b16 %v777
    %v2771 = vunpack.c.l.b16 %v778
    %v2772 = vunpack.c.h.b16 %v778
    %v2773 = vunpack.c.l.b16 %v779
    %v2774 = vunpack.c.h.b16 %v779
    %v2775 = vunpack.c.l.b16 %v780
    %v2776 = vunpack.c.h.b16 %v780
    %v2777 = vunpack.c.l.b16 %v781
    %v2778 = vunpack.c.h.b16 %v781
    %v2779 = vunpack.c.l.b16 %v782
    %v2780 = vunpack.c.h.b16 %v782
    %v2781 = vunpack.c.l.b16 %v783
    %v2782 = vunpack.c.h.b16 %v783
    %v2783 = vunpack.c.l.b16 %v784
    %v2784 = vunpack.c.h.b16 %v784
    %v2785 = vunpack.c.l.b16 %v785
    %v2786 = vunpack.c.h.b16 %v785
    %v2787 = vunpack.c.l.b16 %v786
    %v2788 = vunpack.c.h.b16 %v786
    %v2789 = vpack.c.b16 %v1519, %v1509
    %v2790 = vpack.c.b16 %v1520, %v1510
    %v2791 = vpack.c.b16 %v1521, %v1511
    %v2792 = vpack.c.b16 %v1522, %v1512
    %v2793 = vpack.c.b16 %v1523, %v1513
    %v2794 = vpack.c.b16 %v1524, %v1514
    %v2795 = vpack.c.b16 %v1525, %v1515
    %v2796 = vpack.c.b16 %v1526, %v1516
    %v2797 = vpack.c.b16 %v1527, %v1517
    %v2798 = vpack.c.b16 %v1528, %v1518
    %v2799 = vpack.c.b16 %v1539, %v1529
    %v2800 = vpack.c.b16 %v1540, %v1530
    %v2801 = vpack.c.b16 %v1541, %v1531
    %v2802 = vpack.c.b16 %v1542, %v1532
    %v2803 = vpack.c.b16 %v1543, %v1533
    %v2804 = vpack.c.b16 %v1544, %v1534
    %v2805 = vpack.c.b16 %v1545, %v1535
    %v2806 = vpack.c.b16 %v1546, %v1536
    %v2807 = vpack.c.b16 %v1547, %v1537
    %v2808 = vpack.c.b16 %v1548, %v1538
    %v2809 = vpack.c.b16 %v1559, %v1549
    %v2810 = vpack.c.b16 %v1560, %v1550
    %v2811 = vpack.c.b16 %v1561, %v1551
    %v2812 = vpack.c.b16 %v1562, %v1552
    %v2813 = vpack.c.b16 %v1563, %v1553
    %v2814 = vpack.c.b16 %v1564, %v1554
    %v2815 = vpack.c.b16 %v1565, %v1555
    %v2816 = vpack.c.b16 %v1566, %v1556
    %v2817 = vpack.c.b16 %v1567, %v1557
    %v2818 = vpack.c.b16 %v1568, %v1558
    %v2819 = vpack.c.b16 %v1579, %v1569
    %v2820 = vpack.c.b16 %v1580, %v1570
    %v2821 = vpack.c.b16 %v1581, %v1571
    %v2822 = vpack.c.b16 %v1582, %v1572
    %v2823 = vpack.c.b16 %v1583, %v1573
    %v2824 = vpack.c.b16 %v1584, %v1574
    %v2825 = vpack.c.b16 %v1585, %v1575
    %v2826 = vpack.c.b16 %v1586, %v1576
    %v2827 = vpack.c.b16 %v1587, %v1577
    %v2828 = vpack.c.b16 %v1588, %v1578
    %v2829 = vpack.c.b16 %v1599, %v1589
    %v2830 = vpack.c.b16 %v1600, %v1590
    %v2831 = vpack.c.b16 %v1601, %v1591
    %v2832 = vpack.c.b16 %v1602, %v1592
    %v2833 = vpack.c.b16 %v1603, %v1593
    %v2834 = vpack.c.b16 %v1604, %v1594
    %v2835 = vpack.c.b16 %v1605, %v1595
    %v2836 = vpack.c.b16 %v1606, %v1596
    %v2837 = vpack.c.b16 %v1607, %v1597
    %v2838 = vpack.c.b16 %v1608, %v1598
    %v2839 = vpack.c.b16 %v1619, %v1609
    %v2840 = vpack.c.b16 %v1620, %v1610
    %v2841 = vpack.c.b16 %v1621, %v1611
    %v2842 = vpack.c.b16 %v1622, %v1612
    %v2843 = vpack.c.b16 %v1623, %v1613
    %v2844 = vpack.c.b16 %v1624, %v1614
    %v2845 = vpack.c.b16 %v1625, %v1615
    %v2846 = vpack.c.b16 %v1626, %v1616
    %v2847 = vpack.c.b16 %v1627, %v1617
    %v2848 = vpack.c.b16 %v1628, %v1618
    %v2849 = vpack.c.b16 %v1639, %v1629
    %v2850 = vpack.c.b16 %v1640, %v1630
    %v2851 = vpack.c.b16 %v1641, %v1631
    %v2852 = vpack.c.b16 %v1642, %v1632
    %v2853 = vpack.c.b16 %v1643, %v1633
    %v2854 = vpack.c.b16 %v1644, %v1634
    %v2855 = vpack.c.b16 %v1645, %v1635
    %v2856 = vpack.c.b16 %v1646, %v1636
    %v2857 = vpack.c.b16 %v1647, %v1637
    %v2858 = vpack.c.b16 %v1648, %v1638
    %v2859 = vpack.c.b16 %v1659, %v1649
    %v2860 = vpack.c.b16 %v1660, %v1650
    %v2861 = vpack.c.b16 %v1661, %v1651
    %v2862 = vpack.c.b16 %v1662, %v1652
    %v2863 = vpack.c.b16 %v1663, %v1653
    %v2864 = vpack.c.b16 %v1664, %v1654
    %v2865 = vpack.c.b16 %v1665, %v1655
    %v2866 = vpack.c.b16 %v1666, %v1656
    %v2867 = vpack.c.b16 %v1667, %v1657
    %v2868 = vpack.c.b16 %v1668, %v1658
    %v2869 = vpack.c.b16 %v1679, %v1669
    %v2870 = vpack.c.b16 %v1680, %v1670
    %v2871 = vpack.c.b16 %v1681, %v1671
    %v2872 = vpack.c.b16 %v1682, %v1672
    %v2873 = vpack.c.b16 %v1683, %v1673
    %v2874 = vpack.c.b16 %v1684, %v1674
    %v2875 = vpack.c.b16 %v1685, %v1675
    %v2876 = vpack.c.b16 %v1686, %v1676
    %v2877 = vpack.c.b16 %v1687, %v1677
    %v2878 = vpack.c.b16 %v1688, %v1678
    %v2879 = vpack.c.b16 %v1699, %v1689
    %v2880 = vpack.c.b16 %v1700, %v1690
    %v2881 = vpack.c.b16 %v1701, %v1691
    %v2882 = vpack.c.b16 %v1702, %v1692
    %v2883 = vpack.c.b16 %v1703, %v1693
    %v2884 = vpack.c.b16 %v1704, %v1694
    %v2885 = vpack.c.b16 %v1705, %v1695
    %v2886 = vpack.c.b16 %v1706, %v1696
    %v2887 = vpack.c.b16 %v1707, %v1697
    %v2888 = vpack.c.b16 %v1708, %v1698
    %v2889 = vpack.c.b16 %v1719, %v1709
    %v2890 = vpack.c.b16 %v1720, %v1710
    %v2891 = vpack.c.b16 %v1721, %v1711
    %v2892 = vpack.c.b16 %v1722, %v1712
    %v2893 = vpack.c.b16 %v1723, %v1713
    %v2894 = vpack.c.b16 %v1724, %v1714
    %v2895 = vpack.c.b16 %v1725, %v1715
    %v2896 = vpack.c.b16 %v1726, %v1716
    %v2897 = vpack.c.b16 %v1727, %v1717
    %v2898 = vpack.c.b16 %v1728, %v1718
    %v2899 = vpack.c.b16 %v1739, %v1729
    %v2900 = vpack.c.b16 %v1740, %v1730
    %v2901 = vpack.c.b16 %v1741, %v1731
    %v2902 = vpack.c.b16 %v1742, %v1732
    %v2903 = vpack.c.b16 %v1743, %v1733
    %v2904 = vpack.c.b16 %v1744, %v1734
    %v2905 = vpack.c.b16 %v1745, %v1735
    %v2906 = vpack.c.b16 %v1746, %v1736
    %v2907 = vpack.c.b16 %v1747, %v1737
    %v2908 = vpack.c.b16 %v1748, %v1738
    %v2909 = vpack.c.b16 %v1759, %v1749
    %v2910 = vpack.c.b16 %v1760, %v1750
    %v2911 = vpack.c.b16 %v1761, %v1751
    %v2912 = vpack.c.b16 %v1762, %v1752
    %v2913 = vpack.c.b16 %v1763, %v1753
    %v2914 = vpack.c.b16 %v1764, %v1754
    %v2915 = vpack.c.b16 %v1765, %v1755
    %v2916 = vpack.c.b16 %v1766, %v1756
    %v2917 = vpack.c.b16 %v1767, %v1757
    %v2918 = vpack.c.b16 %v1768, %v1758
    %v2919 = vpack.c.b16 %v1779, %v1769
    %v2920 = vpack.c.b16 %v1780, %v1770
    %v2921 = vpack.c.b16 %v1781, %v1771
    %v2922 = vpack.c.b16 %v1782, %v1772
    %v2923 = vpack.c.b16 %v1783, %v1773
    %v2924 = vpack.c.b16 %v1784, %v1774
    %v2925 = vpack.c.b16 %v1785, %v1775
    %v2926 = vpack.c.b16 %v1786, %v1776
    %v2927 = vpack.c.b16 %v1787, %v1777
    %v2928 = vpack.c.b16 %v1788, %v1778
    %v2929 = vpack.c.b16 %v1799, %v1789
    %v2930 = vpack.c.b16 %v1800, %v1790
    %v2931 = vpack.c.b16 %v1801, %v1791
    %v2932 = vpack.c.b16 %v1802, %v1792
    %v2933 = vpack.c.b16 %v1803, %v1793
    %v2934 = vpack.c.b16 %v1804, %v1794
    %v2935 = vpack.c.b16 %v1805, %v1795
    %v2936 = vpack.c.b16 %v1806, %v1796
    %v2937 = vpack.c.b16 %v1807, %v1797
    %v2938 = vpack.c.b16 %v1808, %v1798
    %v2939 = vpack.c.b16 %v1819, %v1809
    %v2940 = vpack.c.b16 %v1820, %v1810
    %v2941 = vpack.c.b16 %v1821, %v1811
    %v2942 = vpack.c.b16 %v1822, %v1812
    %v2943 = vpack.c.b16 %v1823, %v1813
    %v2944 = vpack.c.b16 %v1824, %v1814
    %v2945 = vpack.c.b16 %v1825, %v1815
    %v2946 = vpack.c.b16 %v1826, %v1816
    %v2947 = vpack.c.b16 %v1827, %v1817
    %v2948 = vpack.c.b16 %v1828, %v1818
    %v2949 = vpack.c.b16 %v1839, %v1829
    %v2950 = vpack.c.b16 %v1840, %v1830
    %v2951 = vpack.c.b16 %v1841, %v1831
    %v2952 = vpack.c.b16 %v1842, %v1832
    %v2953 = vpack.c.b16 %v1843, %v1833
    %v2954 = vpack.c.b16 %v1844, %v1834
    %v2955 = vpack.c.b16 %v1845, %v1835
    %v2956 = vpack.c.b16 %v1846, %v1836
    %v2957 = vpack.c.b16 %v1847, %v1837
    %v2958 = vpack.c.b16 %v1848, %v1838
    %v2959 = vpack.c.b16 %v1859, %v1849
    %v2960 = vpack.c.b16 %v1860, %v1850
    %v2961 = vpack.c.b16 %v1861, %v1851
    %v2962 = vpack.c.b16 %v1862, %v1852
    %v2963 = vpack.c.b16 %v1863, %v1853
    %v2964 = vpack.c.b16 %v1864, %v1854
    %v2965 = vpack.c.b16 %v1865, %v1855
    %v2966 = vpack.c.b16 %v1866, %v1856
    %v2967 = vpack.c.b16 %v1867, %v1857
    %v2968 = vpack.c.b16 %v1868, %v1858
    %v2969 = vpack.c.b16 %v1879, %v1869
    %v2970 = vpack.c.b16 %v1880, %v1870
    %v2971 = vpack.c.b16 %v1881, %v1871
    %v2972 = vpack.c.b16 %v1882, %v1872
    %v2973 = vpack.c.b16 %v1883, %v1873
    %v2974 = vpack.c.b16 %v1884, %v1874
    %v2975 = vpack.c.b16 %v1885, %v1875
    %v2976 = vpack.c.b16 %v1886, %v1876
    %v2977 = vpack.c.b16 %v1887, %v1877
    %v2978 = vpack.c.b16 %v1888, %v1878
    %v2979 = vpack.c.b16 %v1899, %v1889
    %v2980 = vpack.c.b16 %v1900, %v1890
    %v2981 = vpack.c.b16 %v1901, %v1891
    %v2982 = vpack.c.b16 %v1902, %v1892
    %v2983 = vpack.c.b16 %v1903, %v1893
    %v2984 = vpack.c.b16 %v1904, %v1894
    %v2985 = vpack.c.b16 %v1905, %v1895
    %v2986 = vpack.c.b16 %v1906, %v1896
    %v2987 = vpack.c.b16 %v1907, %v1897
    %v2988 = vpack.c.b16 %v1908, %v1898
    %v2989 = vpack.c.b16 %v1919, %v1909
    %v2990 = vpack.c.b16 %v1920, %v1910
    %v2991 = vpack.c.b16 %v1921, %v1911
    %v2992 = vpack.c.b16 %v1922, %v1912
    %v2993 = vpack.c.b16 %v1923, %v1913
    %v2994 = vpack.c.b16 %v1924, %v1914
    %v2995 = vpack.c.b16 %v1925, %v1915
    %v2996 = vpack.c.b16 %v1926, %v1916
    %v2997 = vpack.c.b16 %v1927, %v1917
    %v2998 = vpack.c.b16 %v1928, %v1918
    %v2999 = vpack.c.b16 %v1939, %v1929
    %v3000 = vpack.c.b16 %v1940, %v1930
    %v3001 = vpack.c.b16 %v1941, %v1931
    %v3002 = vpack.c.b16 %v1942, %v1932
    %v3003 = vpack.c.b16 %v1943, %v1933
    %v3004 = vpack.c.b16 %v1944, %v1934
    %v3005 = vpack.c.b16 %v1945, %v1935
    %v3006 = vpack.c.b16 %v1946, %v1936
    %v3007 = vpack.c.b16 %v1947, %v1937
    %v3008 = vpack.c.b16 %v1948, %v1938
    %v3009 = vpack.c.b16 %v1959, %v1949
    %v3010 = vpack.c.b16 %v1960, %v1950
    %v3011 = vpack.c.b16 %v1961, %v1951
    %v3012 = vpack.c.b16 %v1962, %v1952
    %v3013 = vpack.c.b16 %v1963, %v1953
    %v3014 = vpack.c.b16 %v1964, %v1954
    %v3015 = vpack.c.b16 %v1965, %v1955
    %v3016 = vpack.c.b16 %v1966, %v1956
    %v3017 = vpack.c.b16 %v1967, %v1957
    %v3018 = vpack.c.b16 %v1968, %v1958
    %v3019 = vpack.c.b16 %v1979, %v1969
    %v3020 = vpack.c.b16 %v1980, %v1970
    %v3021 = vpack.c.b16 %v1981, %v1971
    %v3022 = vpack.c.b16 %v1982, %v1972
    %v3023 = vpack.c.b16 %v1983, %v1973
    %v3024 = vpack.c.b16 %v1984, %v1974
    %v3025 = vpack.c.b16 %v1985, %v1975
    %v3026 = vpack.c.b16 %v1986, %v1976
    %v3027 = vpack.c.b16 %v1987, %v1977
    %v3028 = vpack.c.b16 %v1988, %v1978
    %v3029 = vpack.c.b16 %v1999, %v1989
    %v3030 = vpack.c.b16 %v2000, %v1990
    %v3031 = vpack.c.b16 %v2001, %v1991
    %v3032 = vpack.c.b16 %v2002, %v1992
    %v3033 = vpack.c.b16 %v2003, %v1993
    %v3034 = vpack.c.b16 %v2004, %v1994
    %v3035 = vpack.c.b16 %v2005, %v1995
    %v3036 = vpack.c.b16 %v2006, %v1996
    %v3037 = vpack.c.b16 %v2007, %v1997
    %v3038 = vpack.c.b16 %v2008, %v1998
    %v3039 = vpack.c.b16 %v2019, %v2009
    %v3040 = vpack.c.b16 %v2020, %v2010
    %v3041 = vpack.c.b16 %v2021, %v2011
    %v3042 = vpack.c.b16 %v2022, %v2012
    %v3043 = vpack.c.b16 %v2023, %v2013
    %v3044 = vpack.c.b16 %v2024, %v2014
    %v3045 = vpack.c.b16 %v2025, %v2015
    %v3046 = vpack.c.b16 %v2026, %v2016
    %v3047 = vpack.c.b16 %v2027, %v2017
    %v3048 = vpack.c.b16 %v2028, %v2018
    %v3049 = vpack.c.b16 %v2039, %v2029
    %v3050 = vpack.c.b16 %v2040, %v2030
    %v3051 = vpack.c.b16 %v2041, %v2031
    %v3052 = vpack.c.b16 %v2042, %v2032
    %v3053 = vpack.c.b16 %v2043, %v2033
    %v3054 = vpack.c.b16 %v2044, %v2034
    %v3055 = vpack.c.b16 %v2045, %v2035
    %v3056 = vpack.c.b16 %v2046, %v2036
    %v3057 = vpack.c.b16 %v2047, %v2037
    %v3058 = vpack.c.b16 %v2048, %v2038
    %v3059 = vpack.c.b16 %v2059, %v2049
    %v3060 = vpack.c.b16 %v2060, %v2050
    %v3061 = vpack.c.b16 %v2061, %v2051
    %v3062 = vpack.c.b16 %v2062, %v2052
    %v3063 = vpack.c.b16 %v2063, %v2053
    %v3064 = vpack.c.b16 %v2064, %v2054
    %v3065 = vpack.c.b16 %v2065, %v2055
    %v3066 = vpack.c.b16 %v2066, %v2056
    %v3067 = vpack.c.b16 %v2067, %v2057
    %v3068 = vpack.c.b16 %v2068, %v2058
    %v3069 = vpack.c.b16 %v2079, %v2069
    %v3070 = vpack.c.b16 %v2080, %v2070
    %v3071 = vpack.c.b16 %v2081, %v2071
    %v3072 = vpack.c.b16 %v2082, %v2072
    %v3073 = vpack.c.b16 %v2083, %v2073
    %v3074 = vpack.c.b16 %v2084, %v2074
    %v3075 = vpack.c.b16 %v2085, %v2075
    %v3076 = vpack.c.b16 %v2086, %v2076
    %v3077 = vpack.c.b16 %v2087, %v2077
    %v3078 = vpack.c.b16 %v2088, %v2078
    %v3079 = vpack.c.b16 %v2099, %v2089
    %v3080 = vpack.c.b16 %v2100, %v2090
    %v3081 = vpack.c.b16 %v2101, %v2091
    %v3082 = vpack.c.b16 %v2102, %v2092
    %v3083 = vpack.c.b16 %v2103, %v2093
    %v3084 = vpack.c.b16 %v2104, %v2094
    %v3085 = vpack.c.b16 %v2105, %v2095
    %v3086 = vpack.c.b16 %v2106, %v2096
    %v3087 = vpack.c.b16 %v2107, %v2097
    %v3088 = vpack.c.b16 %v2108, %v2098
    %v3089 = vpack.c.b16 %v2119, %v2109
    %v3090 = vpack.c.b16 %v2120, %v2110
    %v3091 = vpack.c.b16 %v2121, %v2111
    %v3092 = vpack.c.b16 %v2122, %v2112
    %v3093 = vpack.c.b16 %v2123, %v2113
    %v3094 = vpack.c.b16 %v2124, %v2114
    %v3095 = vpack.c.b16 %v2125, %v2115
    %v3096 = vpack.c.b16 %v2126, %v2116
    %v3097 = vpack.c.b16 %v2127, %v2117
    %v3098 = vpack.c.b16 %v2128, %v2118
    %v3099 = vpack.c.b16 %v2139, %v2129
    %v3100 = vpack.c.b16 %v2140, %v2130
    %v3101 = vpack.c.b16 %v2141, %v2131
    %v3102 = vpack.c.b16 %v2142, %v2132
    %v3103 = vpack.c.b16 %v2143, %v2133
    %v3104 = vpack.c.b16 %v2144, %v2134
    %v3105 = vpack.c.b16 %v2145, %v2135
    %v3106 = vpack.c.b16 %v2146, %v2136
    %v3107 = vpack.c.b16 %v2147, %v2137
    %v3108 = vpack.c.b16 %v2148, %v2138
    %v3109 = vpack.c.b16 %v2159, %v2149
    %v3110 = vpack.c.b16 %v2160, %v2150
    %v3111 = vpack.c.b16 %v2161, %v2151
    %v3112 = vpack.c.b16 %v2162, %v2152
    %v3113 = vpack.c.b16 %v2163, %v2153
    %v3114 = vpack.c.b16 %v2164, %v2154
    %v3115 = vpack.c.b16 %v2165, %v2155
    %v3116 = vpack.c.b16 %v2166, %v2156
    %v3117 = vpack.c.b16 %v2167, %v2157
    %v3118 = vpack.c.b16 %v2168, %v2158
    %v3119 = vpack.c.b16 %v2179, %v2169
    %v3120 = vpack.c.b16 %v2180, %v2170
    %v3121 = vpack.c.b16 %v2181, %v2171
    %v3122 = vpack.c.b16 %v2182, %v2172
    %v3123 = vpack.c.b16 %v2183, %v2173
    %v3124 = vpack.c.b16 %v2184, %v2174
    %v3125 = vpack.c.b16 %v2185, %v2175
    %v3126 = vpack.c.b16 %v2186, %v2176
    %v3127 = vpack.c.b16 %v2187, %v2177
    %v3128 = vpack.c.b16 %v2188, %v2178
    %v3129 = vpack.c.b16 %v2199, %v2189
    %v3130 = vpack.c.b16 %v2200, %v2190
    %v3131 = vpack.c.b16 %v2201, %v2191
    %v3132 = vpack.c.b16 %v2202, %v2192
    %v3133 = vpack.c.b16 %v2203, %v2193
    %v3134 = vpack.c.b16 %v2204, %v2194
    %v3135 = vpack.c.b16 %v2205, %v2195
    %v3136 = vpack.c.b16 %v2206, %v2196
    %v3137 = vpack.c.b16 %v2207, %v2197
    %v3138 = vpack.c.b16 %v2208, %v2198
    %v3139 = vpack.c.b16 %v2219, %v2209
    %v3140 = vpack.c.b16 %v2220, %v2210
    %v3141 = vpack.c.b16 %v2221, %v2211
    %v3142 = vpack.c.b16 %v2222, %v2212
    %v3143 = vpack.c.b16 %v2223, %v2213
    %v3144 = vpack.c.b16 %v2224, %v2214
    %v3145 = vpack.c.b16 %v2225, %v2215
    %v3146 = vpack.c.b16 %v2226, %v2216
    %v3147 = vpack.c.b16 %v2227, %v2217
    %v3148 = vpack.c.b16 %v2228, %v2218
    %v3149 = vpack.c.b16 %v2239, %v2229
    %v3150 = vpack.c.b16 %v2240, %v2230
    %v3151 = vpack.c.b16 %v2241, %v2231
    %v3152 = vpack.c.b16 %v2242, %v2232
    %v3153 = vpack.c.b16 %v2243, %v2233
    %v3154 = vpack.c.b16 %v2244, %v2234
    %v3155 = vpack.c.b16 %v2245, %v2235
    %v3156 = vpack.c.b16 %v2246, %v2236
    %v3157 = vpack.c.b16 %v2247, %v2237
    %v3158 = vpack.c.b16 %v2248, %v2238
    %v3159 = vpack.c.b16 %v2259, %v2249
    %v3160 = vpack.c.b16 %v2260, %v2250
    %v3161 = vpack.c.b16 %v2261, %v2251
    %v3162 = vpack.c.b16 %v2262, %v2252
    %v3163 = vpack.c.b16 %v2263, %v2253
    %v3164 = vpack.c.b16 %v2264, %v2254
    %v3165 = vpack.c.b16 %v2265, %v2255
    %v3166 = vpack.c.b16 %v2266, %v2256
    %v3167 = vpack.c.b16 %v2267, %v2257
    %v3168 = vpack.c.b16 %v2268, %v2258
    %v3169 = vpack.c.b16 %v2279, %v2269
    %v3170 = vpack.c.b16 %v2280, %v2270
    %v3171 = vpack.c.b16 %v2281, %v2271
    %v3172 = vpack.c.b16 %v2282, %v2272
    %v3173 = vpack.c.b16 %v2283, %v2273
    %v3174 = vpack.c.b16 %v2284, %v2274
    %v3175 = vpack.c.b16 %v2285, %v2275
    %v3176 = vpack.c.b16 %v2286, %v2276
    %v3177 = vpack.c.b16 %v2287, %v2277
    %v3178 = vpack.c.b16 %v2288, %v2278
    %v3179 = vpack.c.b16 %v2299, %v2289
    %v3180 = vpack.c.b16 %v2300, %v2290
    %v3181 = vpack.c.b16 %v2301, %v2291
    %v3182 = vpack.c.b16 %v2302, %v2292
    %v3183 = vpack.c.b16 %v2303, %v2293
    %v3184 = vpack.c.b16 %v2304, %v2294
    %v3185 = vpack.c.b16 %v2305, %v2295
    %v3186 = vpack.c.b16 %v2306, %v2296
    %v3187 = vpack.c.b16 %v2307, %v2297
    %v3188 = vpack.c.b16 %v2308, %v2298
    %v3189 = vpack.c.b16 %v2319, %v2309
    %v3190 = vpack.c.b16 %v2320, %v2310
    %v3191 = vpack.c.b16 %v2321, %v2311
    %v3192 = vpack.c.b16 %v2322, %v2312
    %v3193 = vpack.c.b16 %v2323, %v2313
    %v3194 = vpack.c.b16 %v2324, %v2314
    %v3195 = vpack.c.b16 %v2325, %v2315
    %v3196 = vpack.c.b16 %v2326, %v2316
    %v3197 = vpack.c.b16 %v2327, %v2317
    %v3198 = vpack.c.b16 %v2328, %v2318
    %v3199 = vpack.c.b16 %v2339, %v2329
    %v3200 = vpack.c.b16 %v2340, %v2330
    %v3201 = vpack.c.b16 %v2341, %v2331
    %v3202 = vpack.c.b16 %v2342, %v2332
    %v3203 = vpack.c.b16 %v2343, %v2333
    %v3204 = vpack.c.b16 %v2344, %v2334
    %v3205 = vpack.c.b16 %v2345, %v2335
    %v3206 = vpack.c.b16 %v2346, %v2336
    %v3207 = vpack.c.b16 %v2347, %v2337
    %v3208 = vpack.c.b16 %v2348, %v2338
    %v3209 = vpack.c.b16 %v2359, %v2349
    %v3210 = vpack.c.b16 %v2360, %v2350
    %v3211 = vpack.c.b16 %v2361, %v2351
    %v3212 = vpack.c.b16 %v2362, %v2352
    %v3213 = vpack.c.b16 %v2363, %v2353
    %v3214 = vpack.c.b16 %v2364, %v2354
    %v3215 = vpack.c.b16 %v2365, %v2355
    %v3216 = vpack.c.b16 %v2366, %v2356
    %v3217 = vpack.c.b16 %v2367, %v2357
    %v3218 = vpack.c.b16 %v2368, %v2358
    %v3219 = vpack.c.b16 %v2379, %v2369
    %v3220 = vpack.c.b16 %v2380, %v2370
    %v3221 = vpack.c.b16 %v2381, %v2371
    %v3222 = vpack.c.b16 %v2382, %v2372
    %v3223 = vpack.c.b16 %v2383, %v2373
    %v3224 = vpack.c.b16 %v2384, %v2374
    %v3225 = vpack.c.b16 %v2385, %v2375
    %v3226 = vpack.c.b16 %v2386, %v2376
    %v3227 = vpack.c.b16 %v2387, %v2377
    %v3228 = vpack.c.b16 %v2388, %v2378
    %v3229 = vpack.c.b16 %v2399, %v2389
    %v3230 = vpack.c.b16 %v2400, %v2390
    %v3231 = vpack.c.b16 %v2401, %v2391
    %v3232 = vpack.c.b16 %v2402, %v2392
    %v3233 = vpack.c.b16 %v2403, %v2393
    %v3234 = vpack.c.b16 %v2404, %v2394
    %v3235 = vpack.c.b16 %v2405, %v2395
    %v3236 = vpack.c.b16 %v2406, %v2396
    %v3237 = vpack.c.b16 %v2407, %v2397
    %v3238 = vpack.c.b16 %v2408, %v2398
    %v3239 = vpack.c.b16 %v2419, %v2409
    %v3240 = vpack.c.b16 %v2420, %v2410
    %v3241 = vpack.c.b16 %v2421, %v2411
    %v3242 = vpack.c.b16 %v2422, %v2412
    %v3243 = vpack.c.b16 %v2423, %v2413
    %v3244 = vpack.c.b16 %v2424, %v2414
    %v3245 = vpack.c.b16 %v2425, %v2415
    %v3246 = vpack.c.b16 %v2426, %v2416
    %v3247 = vpack.c.b16 %v2427, %v2417
    %v3248 = vpack.c.b16 %v2428, %v2418
    %v3249 = vpack.c.b16 %v2439, %v2429
    %v3250 = vpack.c.b16 %v2440, %v2430
    %v3251 = vpack.c.b16 %v2441, %v2431
    %v3252 = vpack.c.b16 %v2442, %v2432
    %v3253 = vpack.c.b16 %v2443, %v2433
    %v3254 = vpack.c.b16 %v2444, %v2434
    %v3255 = vpack.c.b16 %v2445, %v2435
    %v3256 = vpack.c.b16 %v2446, %v2436
    %v3257 = vpack.c.b16 %v2447, %v2437
    %v3258 = vpack.c.b16 %v2448, %v2438
    %v3259 = vpack.c.b16 %v2459, %v2449
    %v3260 = vpack.c.b16 %v2460, %v2450
    %v3261 = vpack.c.b16 %v2461, %v2451
    %v3262 = vpack.c.b16 %v2462, %v2452
    %v3263 = vpack.c.b16 %v2463, %v2453
    %v3264 = vpack.c.b16 %v2464, %v2454
    %v3265 = vpack.c.b16 %v2465, %v2455
    %v3266 = vpack.c.b16 %v2466, %v2456
    %v3267 = vpack.c.b16 %v2467, %v2457
    %v3268 = vpack.c.b16 %v2468, %v2458
    %v3269 = vpack.c.b16 %v2479, %v2469
    %v3270 = vpack.c.b16 %v2480, %v2470
    %v3271 = vpack.c.b16 %v2481, %v2471
    %v3272 = vpack.c.b16 %v2482, %v2472
    %v3273 = vpack.c.b16 %v2483, %v2473
    %v3274 = vpack.c.b16 %v2484, %v2474
    %v3275 = vpack.c.b16 %v2485, %v2475
    %v3276 = vpack.c.b16 %v2486, %v2476
    %v3277 = vpack.c.b16 %v2487, %v2477
    %v3278 = vpack.c.b16 %v2488, %v2478
    %v3279 = vpack.c.b16 %v2499, %v2489
    %v3280 = vpack.c.b16 %v2500, %v2490
    %v3281 = vpack.c.b16 %v2501, %v2491
    %v3282 = vpack.c.b16 %v2502, %v2492
    %v3283 = vpack.c.b16 %v2503, %v2493
    %v3284 = vpack.c.b16 %v2504, %v2494
    %v3285 = vpack.c.b16 %v2505, %v2495
    %v3286 = vpack.c.b16 %v2506, %v2496
    %v3287 = vpack.c.b16 %v2507, %v2497
    %v3288 = vpack.c.b16 %v2508, %v2498
    %v3289 = vpack.c.b16 %v2519, %v2509
    %v3290 = vpack.c.b16 %v2520, %v2510
    %v3291 = vpack.c.b16 %v2521, %v2511
    %v3292 = vpack.c.b16 %v2522, %v2512
    %v3293 = vpack.c.b16 %v2523, %v2513
    %v3294 = vpack.c.b16 %v2524, %v2514
    %v3295 = vpack.c.b16 %v2525, %v2515
    %v3296 = vpack.c.b16 %v2526, %v2516
    %v3297 = vpack.c.b16 %v2527, %v2517
    %v3298 = vpack.c.b16 %v2528, %v2518
    %v3299 = vpack.c.b16 %v2539, %v2529
    %v3300 = vpack.c.b16 %v2540, %v2530
    %v3301 = vpack.c.b16 %v2541, %v2531
    %v3302 = vpack.c.b16 %v2542, %v2532
    %v3303 = vpack.c.b16 %v2543, %v2533
    %v3304 = vpack.c.b16 %v2544, %v2534
    %v3305 = vpack.c.b16 %v2545, %v2535
    %v3306 = vpack.c.b16 %v2546, %v2536
    %v3307 = vpack.c.b16 %v2547, %v2537
    %v3308 = vpack.c.b16 %v2548, %v2538
    %v3309 = vpack.c.b16 %v2559, %v2549
    %v3310 = vpack.c.b16 %v2560, %v2550
    %v3311 = vpack.c.b16 %v2561, %v2551
    %v3312 = vpack.c.b16 %v2562, %v2552
    %v3313 = vpack.c.b16 %v2563, %v2553
    %v3314 = vpack.c.b16 %v2564, %v2554
    %v3315 = vpack.c.b16 %v2565, %v2555
    %v3316 = vpack.c.b16 %v2566, %v2556
    %v3317 = vpack.c.b16 %v2567, %v2557
    %v3318 = vpack.c.b16 %v2568, %v2558
    %v3319 = vpack.c.b16 %v2579, %v2569
    %v3320 = vpack.c.b16 %v2580, %v2570
    %v3321 = vpack.c.b16 %v2581, %v2571
    %v3322 = vpack.c.b16 %v2582, %v2572
    %v3323 = vpack.c.b16 %v2583, %v2573
    %v3324 = vpack.c.b16 %v2584, %v2574
    %v3325 = vpack.c.b16 %v2585, %v2575
    %v3326 = vpack.c.b16 %v2586, %v2576
    %v3327 = vpack.c.b16 %v2587, %v2577
    %v3328 = vpack.c.b16 %v2588, %v2578
    %v3329 = vpack.c.b16 %v2599, %v2589
    %v3330 = vpack.c.b16 %v2600, %v2590
    %v3331 = vpack.c.b16 %v2601, %v2591
    %v3332 = vpack.c.b16 %v2602, %v2592
    %v3333 = vpack.c.b16 %v2603, %v2593
    %v3334 = vpack.c.b16 %v2604, %v2594
    %v3335 = vpack.c.b16 %v2605, %v2595
    %v3336 = vpack.c.b16 %v2606, %v2596
    %v3337 = vpack.c.b16 %v2607, %v2597
    %v3338 = vpack.c.b16 %v2608, %v2598
    %v3339 = vpack.c.b16 %v2619, %v2609
    %v3340 = vpack.c.b16 %v2620, %v2610
    %v3341 = vpack.c.b16 %v2621, %v2611
    %v3342 = vpack.c.b16 %v2622, %v2612
    %v3343 = vpack.c.b16 %v2623, %v2613
    %v3344 = vpack.c.b16 %v2624, %v2614
    %v3345 = vpack.c.b16 %v2625, %v2615
    %v3346 = vpack.c.b16 %v2626, %v2616
    %v3347 = vpack.c.b16 %v2627, %v2617
    %v3348 = vpack.c.b16 %v2628, %v2618
    %v3349 = vpack.c.b16 %v2639, %v2629
    %v3350 = vpack.c.b16 %v2640, %v2630
    %v3351 = vpack.c.b16 %v2641, %v2631
    %v3352 = vpack.c.b16 %v2642, %v2632
    %v3353 = vpack.c.b16 %v2643, %v2633
    %v3354 = vpack.c.b16 %v2644, %v2634
    %v3355 = vpack.c.b16 %v2645, %v2635
    %v3356 = vpack.c.b16 %v2646, %v2636
    %v3357 = vpack.c.b16 %v2647, %v2637
    %v3358 = vpack.c.b16 %v2648, %v2638
    %v3359 = vpack.c.b16 %v2659, %v2649
    %v3360 = vpack.c.b16 %v2660, %v2650
    %v3361 = vpack.c.b16 %v2661, %v2651
    %v3362 = vpack.c.b16 %v2662, %v2652
    %v3363 = vpack.c.b16 %v2663, %v2653
    %v3364 = vpack.c.b16 %v2664, %v2654
    %v3365 = vpack.c.b16 %v2665, %v2655
    %v3366 = vpack.c.b16 %v2666, %v2656
    %v3367 = vpack.c.b16 %v2667, %v2657
    %v3368 = vpack.c.b16 %v2668, %v2658
    %v3369 = vpack.c.b16 %v2679, %v2669
    %v3370 = vpack.c.b16 %v2680, %v2670
    %v3371 = vpack.c.b16 %v2681, %v2671
    %v3372 = vpack.c.b16 %v2682, %v2672
    %v3373 = vpack.c.b16 %v2683, %v2673
    %v3374 = vpack.c.b16 %v2684, %v2674
    %v3375 = vpack.c.b16 %v2685, %v2675
    %v3376 = vpack.c.b16 %v2686, %v2676
    %v3377 = vpack.c.b16 %v2687, %v2677
    %v3378 = vpack.c.b16 %v2688, %v2678
    %v3379 = vpack.c.b16 %v2699, %v2689
    %v3380 = vpack.c.b16 %v2700, %v2690
    %v3381 = vpack.c.b16 %v2701, %v2691
    %v3382 = vpack.c.b16 %v2702, %v2692
    %v3383 = vpack.c.b16 %v2703, %v2693
    %v3384 = vpack.c.b16 %v2704, %v2694
    %v3385 = vpack.c.b16 %v2705, %v2695
    %v3386 = vpack.c.b16 %v2706, %v2696
    %v3387 = vpack.c.b16 %v2707, %v2697
    %v3388 = vpack.c.b16 %v2708, %v2698
    %v3389 = vpack.c.b16 %v2719, %v2709
    %v3390 = vpack.c.b16 %v2720, %v2710
    %v3391 = vpack.c.b16 %v2721, %v2711
    %v3392 = vpack.c.b16 %v2722, %v2712
    %v3393 = vpack.c.b16 %v2723, %v2713
    %v3394 = vpack.c.b16 %v2724, %v2714
    %v3395 = vpack.c.b16 %v2725, %v2715
    %v3396 = vpack.c.b16 %v2726, %v2716
    %v3397 = vpack.c.b16 %v2727, %v2717
    %v3398 = vpack.c.b16 %v2728, %v2718
    %v3399 = vpack.c.b16 %v2739, %v2729
    %v3400 = vpack.c.b16 %v2740, %v2730
    %v3401 = vpack.c.b16 %v2741, %v2731
    %v3402 = vpack.c.b16 %v2742, %v2732
    %v3403 = vpack.c.b16 %v2743, %v2733
    %v3404 = vpack.c.b16 %v2744, %v2734
    %v3405 = vpack.c.b16 %v2745, %v2735
    %v3406 = vpack.c.b16 %v2746, %v2736
    %v3407 = vpack.c.b16 %v2747, %v2737
    %v3408 = vpack.c.b16 %v2748, %v2738
    %v3409 = vpack.c.b16 %v2759, %v2749
    %v3410 = vpack.c.b16 %v2760, %v2750
    %v3411 = vpack.c.b16 %v2761, %v2751
    %v3412 = vpack.c.b16 %v2762, %v2752
    %v3413 = vpack.c.b16 %v2763, %v2753
    %v3414 = vpack.c.b16 %v2764, %v2754
    %v3415 = vpack.c.b16 %v2765, %v2755
    %v3416 = vpack.c.b16 %v2766, %v2756
    %v3417 = vpack.c.b16 %v2767, %v2757
    %v3418 = vpack.c.b16 %v2768, %v2758
    %v3419 = vpack.c.b16 %v2779, %v2769
    %v3420 = vpack.c.b16 %v2780, %v2770
    %v3421 = vpack.c.b16 %v2781, %v2771
    %v3422 = vpack.c.b16 %v2782, %v2772
    %v3423 = vpack.c.b16 %v2783, %v2773
    %v3424 = vpack.c.b16 %v2784, %v2774
    %v3425 = vpack.c.b16 %v2785, %v2775
    %v3426 = vpack.c.b16 %v2786, %v2776
    %v3427 = vpack.c.b16 %v2787, %v2777
    %v3428 = vpack.c.b16 %v2788, %v2778
    %4069 = vmatprep.subr.bf16.mxu0 %v2790
    %4070 = vmatpush1.bf16.msra.mxu0 %v2789
    %4071 = vmatprep.subr.bf16.mxu0 %v2800
    %4072 = vmatpush1.bf16.msra.mxu0 %v2799
    %4073 = vmatprep.subr.bf16.mxu0 %v2810
    %4074 = vmatpush1.bf16.msra.mxu0 %v2809
    %4075 = vmatprep.subr.bf16.mxu0 %v2820
    %4076 = vmatpush1.bf16.msra.mxu0 %v2819
    %4077 = vmatprep.subr.bf16.mxu0 %v2830
    %4078 = vmatpush1.bf16.msra.mxu0 %v2829
    %4079 = vmatprep.subr.bf16.mxu0 %v2840
    %4080 = vmatpush1.bf16.msra.mxu0 %v2839
    %4081 = vmatprep.subr.bf16.mxu0 %v2850
    %4082 = vmatpush1.bf16.msra.mxu0 %v2849
    %4083 = vmatprep.subr.bf16.mxu0 %v2860
    %4084 = vmatpush1.bf16.msra.mxu0 %v2859
    %4085 = vmatprep.subr.bf16.mxu0 %v2870
    %4086 = vmatpush1.bf16.msra.mxu0 %v2869
    %4087 = vmatprep.subr.bf16.mxu0 %v2880
    %4088 = vmatpush1.bf16.msra.mxu0 %v2879
    %4089 = vmatprep.subr.bf16.mxu0 %v2890
    %4090 = vmatpush1.bf16.msra.mxu0 %v2889
    %4091 = vmatprep.subr.bf16.mxu0 %v2900
    %4092 = vmatpush1.bf16.msra.mxu0 %v2899
    %4093 = vmatprep.subr.bf16.mxu0 %v2910
    %4094 = vmatpush1.bf16.msra.mxu0 %v2909
    %4095 = vmatprep.subr.bf16.mxu0 %v2920
    %4096 = vmatpush1.bf16.msra.mxu0 %v2919
    %4097 = vmatprep.subr.bf16.mxu0 %v2930
    %4098 = vmatpush1.bf16.msra.mxu0 %v2929
    %4099 = vmatprep.subr.bf16.mxu0 %v2940
    %4100 = vmatpush1.bf16.msra.mxu0 %v2939
    %4101 = vmatprep.mubr.bf16.mxu0 %v854
    %4102 = vmatmul.mubr.bf16.gmra.mrb[0].mxu0 %v853
    %v4103 = vpop.f32.mrb[0].mxu0
    %v4104 = vadd.f32 %v794, %v4103
    %v4105 = vpop.f32.mrb[0].mxu0
    %v4106 = vadd.f32 %v798, %v4105
    %v4107 = vpop.f32.mrb[0].mxu0
    %v4108 = vpop.f32.mrb[0].mxu0
    %4109 = vdwg.mxu0
    %4110 = vmatprep.subr.bf16.mxu0 %v2950
    %4111 = vmatpush1.bf16.msra.mxu0 %v2949
    %4112 = vmatprep.subr.bf16.mxu0 %v2960
    %4113 = vmatpush1.bf16.msra.mxu0 %v2959
    %4114 = vmatprep.subr.bf16.mxu0 %v2970
    %4115 = vmatpush1.bf16.msra.mxu0 %v2969
    %4116 = vmatprep.subr.bf16.mxu0 %v2980
    %4117 = vmatpush1.bf16.msra.mxu0 %v2979
    %4118 = vmatprep.subr.bf16.mxu0 %v2990
    %4119 = vmatpush1.bf16.msra.mxu0 %v2989
    %4120 = vmatprep.subr.bf16.mxu0 %v3000
    %4121 = vmatpush1.bf16.msra.mxu0 %v2999
    %4122 = vmatprep.subr.bf16.mxu0 %v3010
    %4123 = vmatpush1.bf16.msra.mxu0 %v3009
    %4124 = vmatprep.subr.bf16.mxu0 %v3020
    %4125 = vmatpush1.bf16.msra.mxu0 %v3019
    %4126 = vmatprep.subr.bf16.mxu0 %v3030
    %4127 = vmatpush1.bf16.msra.mxu0 %v3029
    %4128 = vmatprep.subr.bf16.mxu0 %v3040
    %4129 = vmatpush1.bf16.msra.mxu0 %v3039
    %4130 = vmatprep.subr.bf16.mxu0 %v3050
    %4131 = vmatpush1.bf16.msra.mxu0 %v3049
    %4132 = vmatprep.subr.bf16.mxu0 %v3060
    %4133 = vmatpush1.bf16.msra.mxu0 %v3059
    %4134 = vmatprep.subr.bf16.mxu0 %v3070
    %4135 = vmatpush1.bf16.msra.mxu0 %v3069
    %4136 = vmatprep.subr.bf16.mxu0 %v3080
    %4137 = vmatpush1.bf16.msra.mxu0 %v3079
    %4138 = vmatprep.subr.bf16.mxu0 %v3090
    %4139 = vmatpush1.bf16.msra.mxu0 %v3089
    %4140 = vmatprep.subr.bf16.mxu0 %v3100
    %4141 = vmatpush1.bf16.msra.mxu0 %v3099
    %4142 = vmatprep.mubr.bf16.mxu0 %v856
    %4143 = vmatmul.mubr.bf16.gmra.mrb[0].mxu0 %v855
    %v4144 = vpop.f32.mrb[0].mxu0
    %v4145 = vadd.f32 %v4104, %v4144
    %v4146 = vpop.f32.mrb[0].mxu0
    %v4147 = vadd.f32 %v4106, %v4146
    %v4148 = vpop.f32.mrb[0].mxu0
    %v4149 = vpop.f32.mrb[0].mxu0
    %4150 = vdwg.mxu0
    %4151 = vmatprep.subr.bf16.mxu0 %v3110
    %4152 = vmatpush1.bf16.msra.mxu0 %v3109
    %4153 = vmatprep.subr.bf16.mxu0 %v3120
    %4154 = vmatpush1.bf16.msra.mxu0 %v3119
    %4155 = vmatprep.subr.bf16.mxu0 %v3130
    %4156 = vmatpush1.bf16.msra.mxu0 %v3129
    %4157 = vmatprep.subr.bf16.mxu0 %v3140
    %4158 = vmatpush1.bf16.msra.mxu0 %v3139
    %4159 = vmatprep.subr.bf16.mxu0 %v3150
    %4160 = vmatpush1.bf16.msra.mxu0 %v3149
    %4161 = vmatprep.subr.bf16.mxu0 %v3160
    %4162 = vmatpush1.bf16.msra.mxu0 %v3159
    %4163 = vmatprep.subr.bf16.mxu0 %v3170
    %4164 = vmatpush1.bf16.msra.mxu0 %v3169
    %4165 = vmatprep.subr.bf16.mxu0 %v3180
    %4166 = vmatpush1.bf16.msra.mxu0 %v3179
    %4167 = vmatprep.subr.bf16.mxu0 %v3190
    %4168 = vmatpush1.bf16.msra.mxu0 %v3189
    %4169 = vmatprep.subr.bf16.mxu0 %v3200
    %4170 = vmatpush1.bf16.msra.mxu0 %v3199
    %4171 = vmatprep.subr.bf16.mxu0 %v3210
    %4172 = vmatpush1.bf16.msra.mxu0 %v3209
    %4173 = vmatprep.subr.bf16.mxu0 %v3220
    %4174 = vmatpush1.bf16.msra.mxu0 %v3219
    %4175 = vmatprep.subr.bf16.mxu0 %v3230
    %4176 = vmatpush1.bf16.msra.mxu0 %v3229
    %4177 = vmatprep.subr.bf16.mxu0 %v3240
    %4178 = vmatpush1.bf16.msra.mxu0 %v3239
    %4179 = vmatprep.subr.bf16.mxu0 %v3250
    %4180 = vmatpush1.bf16.msra.mxu0 %v3249
    %4181 = vmatprep.subr.bf16.mxu0 %v3260
    %4182 = vmatpush1.bf16.msra.mxu0 %v3259
    %4183 = vmatprep.mubr.bf16.mxu0 %v858
    %4184 = vmatmul.mubr.bf16.gmra.mrb[0].mxu0 %v857
    %v4185 = vpop.f32.mrb[0].mxu0
    %v4186 = vadd.f32 %v4145, %v4185
    %v4187 = vpop.f32.mrb[0].mxu0
    %v4188 = vadd.f32 %v4147, %v4187
    %v4189 = vpop.f32.mrb[0].mxu0
    %v4190 = vpop.f32.mrb[0].mxu0
    %4191 = vdwg.mxu0
    %4192 = vmatprep.subr.bf16.mxu0 %v3270
    %4193 = vmatpush1.bf16.msra.mxu0 %v3269
    %4194 = vmatprep.subr.bf16.mxu0 %v3280
    %4195 = vmatpush1.bf16.msra.mxu0 %v3279
    %4196 = vmatprep.subr.bf16.mxu0 %v3290
    %4197 = vmatpush1.bf16.msra.mxu0 %v3289
    %4198 = vmatprep.subr.bf16.mxu0 %v3300
    %4199 = vmatpush1.bf16.msra.mxu0 %v3299
    %4200 = vmatprep.subr.bf16.mxu0 %v3310
    %4201 = vmatpush1.bf16.msra.mxu0 %v3309
    %4202 = vmatprep.subr.bf16.mxu0 %v3320
    %4203 = vmatpush1.bf16.msra.mxu0 %v3319
    %4204 = vmatprep.subr.bf16.mxu0 %v3330
    %4205 = vmatpush1.bf16.msra.mxu0 %v3329
    %4206 = vmatprep.subr.bf16.mxu0 %v3340
    %4207 = vmatpush1.bf16.msra.mxu0 %v3339
    %4208 = vmatprep.subr.bf16.mxu0 %v3350
    %4209 = vmatpush1.bf16.msra.mxu0 %v3349
    %4210 = vmatprep.subr.bf16.mxu0 %v3360
    %4211 = vmatpush1.bf16.msra.mxu0 %v3359
    %4212 = vmatprep.subr.bf16.mxu0 %v3370
    %4213 = vmatpush1.bf16.msra.mxu0 %v3369
    %4214 = vmatprep.subr.bf16.mxu0 %v3380
    %4215 = vmatpush1.bf16.msra.mxu0 %v3379
    %4216 = vmatprep.subr.bf16.mxu0 %v3390
    %4217 = vmatpush1.bf16.msra.mxu0 %v3389
    %4218 = vmatprep.subr.bf16.mxu0 %v3400
    %4219 = vmatpush1.bf16.msra.mxu0 %v3399
    %4220 = vmatprep.subr.bf16.mxu0 %v3410
    %4221 = vmatpush1.bf16.msra.mxu0 %v3409
    %4222 = vmatprep.subr.bf16.mxu0 %v3420
    %4223 = vmatpush1.bf16.msra.mxu0 %v3419
    %4224 = vmatprep.mubr.bf16.mxu0 %v860
    %4225 = vmatmul.mubr.bf16.gmra.mrb[0].mxu0 %v859
    %v4226 = vpop.f32.mrb[0].mxu0
    %v4227 = vadd.f32 %v4186, %v4226
    %v4228 = vpop.f32.mrb[0].mxu0
    %v4229 = vadd.f32 %v4188, %v4228
    %v4230 = vpop.f32.mrb[0].mxu0
    %v4231 = vpop.f32.mrb[0].mxu0
    %4232 = vdwg.mxu0
    %4233 = vmatprep.subr.bf16.mxu0 %v2792
    %4234 = vmatpush1.bf16.msra.mxu0 %v2791
    %4235 = vmatprep.subr.bf16.mxu0 %v2802
    %4236 = vmatpush1.bf16.msra.mxu0 %v2801
    %4237 = vmatprep.subr.bf16.mxu0 %v2812
    %4238 = vmatpush1.bf16.msra.mxu0 %v2811
    %4239 = vmatprep.subr.bf16.mxu0 %v2822
    %4240 = vmatpush1.bf16.msra.mxu0 %v2821
    %4241 = vmatprep.subr.bf16.mxu0 %v2832
    %4242 = vmatpush1.bf16.msra.mxu0 %v2831
    %4243 = vmatprep.subr.bf16.mxu0 %v2842
    %4244 = vmatpush1.bf16.msra.mxu0 %v2841
    %4245 = vmatprep.subr.bf16.mxu0 %v2852
    %4246 = vmatpush1.bf16.msra.mxu0 %v2851
    %4247 = vmatprep.subr.bf16.mxu0 %v2862
    %4248 = vmatpush1.bf16.msra.mxu0 %v2861
    %4249 = vmatprep.subr.bf16.mxu0 %v2872
    %4250 = vmatpush1.bf16.msra.mxu0 %v2871
    %4251 = vmatprep.subr.bf16.mxu0 %v2882
    %4252 = vmatpush1.bf16.msra.mxu0 %v2881
    %4253 = vmatprep.subr.bf16.mxu0 %v2892
    %4254 = vmatpush1.bf16.msra.mxu0 %v2891
    %4255 = vmatprep.subr.bf16.mxu0 %v2902
    %4256 = vmatpush1.bf16.msra.mxu0 %v2901
    %4257 = vmatprep.subr.bf16.mxu0 %v2912
    %4258 = vmatpush1.bf16.msra.mxu0 %v2911
    %4259 = vmatprep.subr.bf16.mxu0 %v2922
    %4260 = vmatpush1.bf16.msra.mxu0 %v2921
    %4261 = vmatprep.subr.bf16.mxu0 %v2932
    %4262 = vmatpush1.bf16.msra.mxu0 %v2931
    %4263 = vmatprep.subr.bf16.mxu0 %v2942
    %4264 = vmatpush1.bf16.msra.mxu0 %v2941
    %4265 = vmatprep.mubr.bf16.mxu0 %v854
    %4266 = vmatmul.mubr.bf16.gmra.mrb[0].mxu0 %v853
    %v4267 = vpop.f32.mrb[0].mxu0
    %v4268 = vadd.f32 %v802, %v4267
    %v4269 = vpop.f32.mrb[0].mxu0
    %v4270 = vadd.f32 %v806, %v4269
    %v4271 = vpop.f32.mrb[0].mxu0
    %v4272 = vpop.f32.mrb[0].mxu0
    %4273 = vdwg.mxu0
    %4274 = vmatprep.subr.bf16.mxu0 %v2952
    %4275 = vmatpush1.bf16.msra.mxu0 %v2951
    %4276 = vmatprep.subr.bf16.mxu0 %v2962
    %4277 = vmatpush1.bf16.msra.mxu0 %v2961
    %4278 = vmatprep.subr.bf16.mxu0 %v2972
    %4279 = vmatpush1.bf16.msra.mxu0 %v2971
    %4280 = vmatprep.subr.bf16.mxu0 %v2982
    %4281 = vmatpush1.bf16.msra.mxu0 %v2981
    %4282 = vmatprep.subr.bf16.mxu0 %v2992
    %4283 = vmatpush1.bf16.msra.mxu0 %v2991
    %4284 = vmatprep.subr.bf16.mxu0 %v3002
    %4285 = vmatpush1.bf16.msra.mxu0 %v3001
    %4286 = vmatprep.subr.bf16.mxu0 %v3012
    %4287 = vmatpush1.bf16.msra.mxu0 %v3011
    %4288 = vmatprep.subr.bf16.mxu0 %v3022
    %4289 = vmatpush1.bf16.msra.mxu0 %v3021
    %4290 = vmatprep.subr.bf16.mxu0 %v3032
    %4291 = vmatpush1.bf16.msra.mxu0 %v3031
    %4292 = vmatprep.subr.bf16.mxu0 %v3042
    %4293 = vmatpush1.bf16.msra.mxu0 %v3041
    %4294 = vmatprep.subr.bf16.mxu0 %v3052
    %4295 = vmatpush1.bf16.msra.mxu0 %v3051
    %4296 = vmatprep.subr.bf16.mxu0 %v3062
    %4297 = vmatpush1.bf16.msra.mxu0 %v3061
    %4298 = vmatprep.subr.bf16.mxu0 %v3072
    %4299 = vmatpush1.bf16.msra.mxu0 %v3071
    %4300 = vmatprep.subr.bf16.mxu0 %v3082
    %4301 = vmatpush1.bf16.msra.mxu0 %v3081
    %4302 = vmatprep.subr.bf16.mxu0 %v3092
    %4303 = vmatpush1.bf16.msra.mxu0 %v3091
    %4304 = vmatprep.subr.bf16.mxu0 %v3102
    %4305 = vmatpush1.bf16.msra.mxu0 %v3101
    %4306 = vmatprep.mubr.bf16.mxu0 %v856
    %4307 = vmatmul.mubr.bf16.gmra.mrb[0].mxu0 %v855
    %v4308 = vpop.f32.mrb[0].mxu0
    %v4309 = vadd.f32 %v4268, %v4308
    %v4310 = vpop.f32.mrb[0].mxu0
    %v4311 = vadd.f32 %v4270, %v4310
    %v4312 = vpop.f32.mrb[0].mxu0
    %v4313 = vpop.f32.mrb[0].mxu0
    %4314 = vdwg.mxu0
    %4315 = vmatprep.subr.bf16.mxu0 %v3112
    %4316 = vmatpush1.bf16.msra.mxu0 %v3111
    %4317 = vmatprep.subr.bf16.mxu0 %v3122
    %4318 = vmatpush1.bf16.msra.mxu0 %v3121
    %4319 = vmatprep.subr.bf16.mxu0 %v3132
    %4320 = vmatpush1.bf16.msra.mxu0 %v3131
    %4321 = vmatprep.subr.bf16.mxu0 %v3142
    %4322 = vmatpush1.bf16.msra.mxu0 %v3141
    %4323 = vmatprep.subr.bf16.mxu0 %v3152
    %4324 = vmatpush1.bf16.msra.mxu0 %v3151
    %4325 = vmatprep.subr.bf16.mxu0 %v3162
    %4326 = vmatpush1.bf16.msra.mxu0 %v3161
    %4327 = vmatprep.subr.bf16.mxu0 %v3172
    %4328 = vmatpush1.bf16.msra.mxu0 %v3171
    %4329 = vmatprep.subr.bf16.mxu0 %v3182
    %4330 = vmatpush1.bf16.msra.mxu0 %v3181
    %4331 = vmatprep.subr.bf16.mxu0 %v3192
    %4332 = vmatpush1.bf16.msra.mxu0 %v3191
    %4333 = vmatprep.subr.bf16.mxu0 %v3202
    %4334 = vmatpush1.bf16.msra.mxu0 %v3201
    %4335 = vmatprep.subr.bf16.mxu0 %v3212
    %4336 = vmatpush1.bf16.msra.mxu0 %v3211
    %4337 = vmatprep.subr.bf16.mxu0 %v3222
    %4338 = vmatpush1.bf16.msra.mxu0 %v3221
    %4339 = vmatprep.subr.bf16.mxu0 %v3232
    %4340 = vmatpush1.bf16.msra.mxu0 %v3231
    %4341 = vmatprep.subr.bf16.mxu0 %v3242
    %4342 = vmatpush1.bf16.msra.mxu0 %v3241
    %4343 = vmatprep.subr.bf16.mxu0 %v3252
    %4344 = vmatpush1.bf16.msra.mxu0 %v3251
    %4345 = vmatprep.subr.bf16.mxu0 %v3262
    %4346 = vmatpush1.bf16.msra.mxu0 %v3261
    %4347 = vmatprep.mubr.bf16.mxu0 %v858
    %4348 = vmatmul.mubr.bf16.gmra.mrb[0].mxu0 %v857
    %v4349 = vpop.f32.mrb[0].mxu0
    %v4350 = vadd.f32 %v4309, %v4349
    %v4351 = vpop.f32.mrb[0].mxu0
    %v4352 = vadd.f32 %v4311, %v4351
    %v4353 = vpop.f32.mrb[0].mxu0
    %v4354 = vpop.f32.mrb[0].mxu0
    %4355 = vdwg.mxu0
    %4356 = vmatprep.subr.bf16.mxu0 %v3272
    %4357 = vmatpush1.bf16.msra.mxu0 %v3271
    %4358 = vmatprep.subr.bf16.mxu0 %v3282
    %4359 = vmatpush1.bf16.msra.mxu0 %v3281
    %4360 = vmatprep.subr.bf16.mxu0 %v3292
    %4361 = vmatpush1.bf16.msra.mxu0 %v3291
    %4362 = vmatprep.subr.bf16.mxu0 %v3302
    %4363 = vmatpush1.bf16.msra.mxu0 %v3301
    %4364 = vmatprep.subr.bf16.mxu0 %v3312
    %4365 = vmatpush1.bf16.msra.mxu0 %v3311
    %4366 = vmatprep.subr.bf16.mxu0 %v3322
    %4367 = vmatpush1.bf16.msra.mxu0 %v3321
    %4368 = vmatprep.subr.bf16.mxu0 %v3332
    %4369 = vmatpush1.bf16.msra.mxu0 %v3331
    %4370 = vmatprep.subr.bf16.mxu0 %v3342
    %4371 = vmatpush1.bf16.msra.mxu0 %v3341
    %4372 = vmatprep.subr.bf16.mxu0 %v3352
    %4373 = vmatpush1.bf16.msra.mxu0 %v3351
    %4374 = vmatprep.subr.bf16.mxu0 %v3362
    %4375 = vmatpush1.bf16.msra.mxu0 %v3361
    %4376 = vmatprep.subr.bf16.mxu0 %v3372
    %4377 = vmatpush1.bf16.msra.mxu0 %v3371
    %4378 = vmatprep.subr.bf16.mxu0 %v3382
    %4379 = vmatpush1.bf16.msra.mxu0 %v3381
    %4380 = vmatprep.subr.bf16.mxu0 %v3392
    %4381 = vmatpush1.bf16.msra.mxu0 %v3391
    %4382 = vmatprep.subr.bf16.mxu0 %v3402
    %4383 = vmatpush1.bf16.msra.mxu0 %v3401
    %4384 = vmatprep.subr.bf16.mxu0 %v3412
    %4385 = vmatpush1.bf16.msra.mxu0 %v3411
    %4386 = vmatprep.subr.bf16.mxu0 %v3422
    %4387 = vmatpush1.bf16.msra.mxu0 %v3421
    %4388 = vmatprep.mubr.bf16.mxu0 %v860
    %4389 = vmatmul.mubr.bf16.gmra.mrb[0].mxu0 %v859
    %v4390 = vpop.f32.mrb[0].mxu0
    %v4391 = vadd.f32 %v4350, %v4390
    %v4392 = vpop.f32.mrb[0].mxu0
    %v4393 = vadd.f32 %v4352, %v4392
    %v4394 = vpop.f32.mrb[0].mxu0
    %v4395 = vpop.f32.mrb[0].mxu0
    %4396 = vdwg.mxu0
    %4397 = vmatprep.subr.bf16.mxu0 %v2794
    %4398 = vmatpush1.bf16.msra.mxu0 %v2793
    %4399 = vmatprep.subr.bf16.mxu0 %v2804
    %4400 = vmatpush1.bf16.msra.mxu0 %v2803
    %4401 = vmatprep.subr.bf16.mxu0 %v2814
    %4402 = vmatpush1.bf16.msra.mxu0 %v2813
    %4403 = vmatprep.subr.bf16.mxu0 %v2824
    %4404 = vmatpush1.bf16.msra.mxu0 %v2823
    %4405 = vmatprep.subr.bf16.mxu0 %v2834
    %4406 = vmatpush1.bf16.msra.mxu0 %v2833
    %4407 = vmatprep.subr.bf16.mxu0 %v2844
    %4408 = vmatpush1.bf16.msra.mxu0 %v2843
    %4409 = vmatprep.subr.bf16.mxu0 %v2854
    %4410 = vmatpush1.bf16.msra.mxu0 %v2853
    %4411 = vmatprep.subr.bf16.mxu0 %v2864
    %4412 = vmatpush1.bf16.msra.mxu0 %v2863
    %4413 = vmatprep.subr.bf16.mxu0 %v2874
    %4414 = vmatpush1.bf16.msra.mxu0 %v2873
    %4415 = vmatprep.subr.bf16.mxu0 %v2884
    %4416 = vmatpush1.bf16.msra.mxu0 %v2883
    %4417 = vmatprep.subr.bf16.mxu0 %v2894
    %4418 = vmatpush1.bf16.msra.mxu0 %v2893
    %4419 = vmatprep.subr.bf16.mxu0 %v2904
    %4420 = vmatpush1.bf16.msra.mxu0 %v2903
    %4421 = vmatprep.subr.bf16.mxu0 %v2914
    %4422 = vmatpush1.bf16.msra.mxu0 %v2913
    %4423 = vmatprep.subr.bf16.mxu0 %v2924
    %4424 = vmatpush1.bf16.msra.mxu0 %v2923
    %4425 = vmatprep.subr.bf16.mxu0 %v2934
    %4426 = vmatpush1.bf16.msra.mxu0 %v2933
    %4427 = vmatprep.subr.bf16.mxu0 %v2944
    %4428 = vmatpush1.bf16.msra.mxu0 %v2943
    %4429 = vmatprep.mubr.bf16.mxu0 %v854
    %4430 = vmatmul.mubr.bf16.gmra.mrb[0].mxu0 %v853
    %v4431 = vpop.f32.mrb[0].mxu0
    %v4432 = vadd.f32 %v810, %v4431
    %v4433 = vpop.f32.mrb[0].mxu0
    %v4434 = vadd.f32 %v814, %v4433
    %v4435 = vpop.f32.mrb[0].mxu0
    %v4436 = vpop.f32.mrb[0].mxu0
    %4437 = vdwg.mxu0
    %4438 = vmatprep.subr.bf16.mxu0 %v2954
    %4439 = vmatpush1.bf16.msra.mxu0 %v2953
    %4440 = vmatprep.subr.bf16.mxu0 %v2964
    %4441 = vmatpush1.bf16.msra.mxu0 %v2963
    %4442 = vmatprep.subr.bf16.mxu0 %v2974
    %4443 = vmatpush1.bf16.msra.mxu0 %v2973
    %4444 = vmatprep.subr.bf16.mxu0 %v2984
    %4445 = vmatpush1.bf16.msra.mxu0 %v2983
    %4446 = vmatprep.subr.bf16.mxu0 %v2994
    %4447 = vmatpush1.bf16.msra.mxu0 %v2993
    %4448 = vmatprep.subr.bf16.mxu0 %v3004
    %4449 = vmatpush1.bf16.msra.mxu0 %v3003
    %4450 = vmatprep.subr.bf16.mxu0 %v3014
    %4451 = vmatpush1.bf16.msra.mxu0 %v3013
    %4452 = vmatprep.subr.bf16.mxu0 %v3024
    %4453 = vmatpush1.bf16.msra.mxu0 %v3023
    %4454 = vmatprep.subr.bf16.mxu0 %v3034
    %4455 = vmatpush1.bf16.msra.mxu0 %v3033
    %4456 = vmatprep.subr.bf16.mxu0 %v3044
    %4457 = vmatpush1.bf16.msra.mxu0 %v3043
    %4458 = vmatprep.subr.bf16.mxu0 %v3054
    %4459 = vmatpush1.bf16.msra.mxu0 %v3053
    %4460 = vmatprep.subr.bf16.mxu0 %v3064
    %4461 = vmatpush1.bf16.msra.mxu0 %v3063
    %4462 = vmatprep.subr.bf16.mxu0 %v3074
    %4463 = vmatpush1.bf16.msra.mxu0 %v3073
    %4464 = vmatprep.subr.bf16.mxu0 %v3084
    %4465 = vmatpush1.bf16.msra.mxu0 %v3083
    %4466 = vmatprep.subr.bf16.mxu0 %v3094
    %4467 = vmatpush1.bf16.msra.mxu0 %v3093
    %4468 = vmatprep.subr.bf16.mxu0 %v3104
    %4469 = vmatpush1.bf16.msra.mxu0 %v3103
    %4470 = vmatprep.mubr.bf16.mxu0 %v856
    %4471 = vmatmul.mubr.bf16.gmra.mrb[0].mxu0 %v855
    %v4472 = vpop.f32.mrb[0].mxu0
    %v4473 = vadd.f32 %v4432, %v4472
    %v4474 = vpop.f32.mrb[0].mxu0
    %v4475 = vadd.f32 %v4434, %v4474
    %v4476 = vpop.f32.mrb[0].mxu0
    %v4477 = vpop.f32.mrb[0].mxu0
    %4478 = vdwg.mxu0
    %4479 = vmatprep.subr.bf16.mxu0 %v3114
    %4480 = vmatpush1.bf16.msra.mxu0 %v3113
    %4481 = vmatprep.subr.bf16.mxu0 %v3124
    %4482 = vmatpush1.bf16.msra.mxu0 %v3123
    %4483 = vmatprep.subr.bf16.mxu0 %v3134
    %4484 = vmatpush1.bf16.msra.mxu0 %v3133
    %4485 = vmatprep.subr.bf16.mxu0 %v3144
    %4486 = vmatpush1.bf16.msra.mxu0 %v3143
    %4487 = vmatprep.subr.bf16.mxu0 %v3154
    %4488 = vmatpush1.bf16.msra.mxu0 %v3153
    %4489 = vmatprep.subr.bf16.mxu0 %v3164
    %4490 = vmatpush1.bf16.msra.mxu0 %v3163
    %4491 = vmatprep.subr.bf16.mxu0 %v3174
    %4492 = vmatpush1.bf16.msra.mxu0 %v3173
    %4493 = vmatprep.subr.bf16.mxu0 %v3184
    %4494 = vmatpush1.bf16.msra.mxu0 %v3183
    %4495 = vmatprep.subr.bf16.mxu0 %v3194
    %4496 = vmatpush1.bf16.msra.mxu0 %v3193
    %4497 = vmatprep.subr.bf16.mxu0 %v3204
    %4498 = vmatpush1.bf16.msra.mxu0 %v3203
    %4499 = vmatprep.subr.bf16.mxu0 %v3214
    %4500 = vmatpush1.bf16.msra.mxu0 %v3213
    %4501 = vmatprep.subr.bf16.mxu0 %v3224
    %4502 = vmatpush1.bf16.msra.mxu0 %v3223
    %4503 = vmatprep.subr.bf16.mxu0 %v3234
    %4504 = vmatpush1.bf16.msra.mxu0 %v3233
    %4505 = vmatprep.subr.bf16.mxu0 %v3244
    %4506 = vmatpush1.bf16.msra.mxu0 %v3243
    %4507 = vmatprep.subr.bf16.mxu0 %v3254
    %4508 = vmatpush1.bf16.msra.mxu0 %v3253
    %4509 = vmatprep.subr.bf16.mxu0 %v3264
    %4510 = vmatpush1.bf16.msra.mxu0 %v3263
    %4511 = vmatprep.mubr.bf16.mxu0 %v858
    %4512 = vmatmul.mubr.bf16.gmra.mrb[0].mxu0 %v857
    %v4513 = vpop.f32.mrb[0].mxu0
    %v4514 = vadd.f32 %v4473, %v4513
    %v4515 = vpop.f32.mrb[0].mxu0
    %v4516 = vadd.f32 %v4475, %v4515
    %v4517 = vpop.f32.mrb[0].mxu0
    %v4518 = vpop.f32.mrb[0].mxu0
    %4519 = vdwg.mxu0
    %4520 = vmatprep.subr.bf16.mxu0 %v3274
    %4521 = vmatpush1.bf16.msra.mxu0 %v3273
    %4522 = vmatprep.subr.bf16.mxu0 %v3284
    %4523 = vmatpush1.bf16.msra.mxu0 %v3283
    %4524 = vmatprep.subr.bf16.mxu0 %v3294
    %4525 = vmatpush1.bf16.msra.mxu0 %v3293
    %4526 = vmatprep.subr.bf16.mxu0 %v3304
    %4527 = vmatpush1.bf16.msra.mxu0 %v3303
    %4528 = vmatprep.subr.bf16.mxu0 %v3314
    %4529 = vmatpush1.bf16.msra.mxu0 %v3313
    %4530 = vmatprep.subr.bf16.mxu0 %v3324
    %4531 = vmatpush1.bf16.msra.mxu0 %v3323
    %4532 = vmatprep.subr.bf16.mxu0 %v3334
    %4533 = vmatpush1.bf16.msra.mxu0 %v3333
    %4534 = vmatprep.subr.bf16.mxu0 %v3344
    %4535 = vmatpush1.bf16.msra.mxu0 %v3343
    %4536 = vmatprep.subr.bf16.mxu0 %v3354
    %4537 = vmatpush1.bf16.msra.mxu0 %v3353
    %4538 = vmatprep.subr.bf16.mxu0 %v3364
    %4539 = vmatpush1.bf16.msra.mxu0 %v3363
    %4540 = vmatprep.subr.bf16.mxu0 %v3374
    %4541 = vmatpush1.bf16.msra.mxu0 %v3373
    %4542 = vmatprep.subr.bf16.mxu0 %v3384
    %4543 = vmatpush1.bf16.msra.mxu0 %v3383
    %4544 = vmatprep.subr.bf16.mxu0 %v3394
    %4545 = vmatpush1.bf16.msra.mxu0 %v3393
    %4546 = vmatprep.subr.bf16.mxu0 %v3404
    %4547 = vmatpush1.bf16.msra.mxu0 %v3403
    %4548 = vmatprep.subr.bf16.mxu0 %v3414
    %4549 = vmatpush1.bf16.msra.mxu0 %v3413
    %4550 = vmatprep.subr.bf16.mxu0 %v3424
    %4551 = vmatpush1.bf16.msra.mxu0 %v3423
    %4552 = vmatprep.mubr.bf16.mxu0 %v860
    %4553 = vmatmul.mubr.bf16.gmra.mrb[0].mxu0 %v859
    %v4554 = vpop.f32.mrb[0].mxu0
    %v4555 = vadd.f32 %v4514, %v4554
    %v4556 = vpop.f32.mrb[0].mxu0
    %v4557 = vadd.f32 %v4516, %v4556
    %v4558 = vpop.f32.mrb[0].mxu0
    %v4559 = vpop.f32.mrb[0].mxu0
    %4560 = vdwg.mxu0
    %4561 = vmatprep.subr.bf16.mxu0 %v2796
    %4562 = vmatpush1.bf16.msra.mxu0 %v2795
    %4563 = vmatprep.subr.bf16.mxu0 %v2806
    %4564 = vmatpush1.bf16.msra.mxu0 %v2805
    %4565 = vmatprep.subr.bf16.mxu0 %v2816
    %4566 = vmatpush1.bf16.msra.mxu0 %v2815
    %4567 = vmatprep.subr.bf16.mxu0 %v2826
    %4568 = vmatpush1.bf16.msra.mxu0 %v2825
    %4569 = vmatprep.subr.bf16.mxu0 %v2836
    %4570 = vmatpush1.bf16.msra.mxu0 %v2835
    %4571 = vmatprep.subr.bf16.mxu0 %v2846
    %4572 = vmatpush1.bf16.msra.mxu0 %v2845
    %4573 = vmatprep.subr.bf16.mxu0 %v2856
    %4574 = vmatpush1.bf16.msra.mxu0 %v2855
    %4575 = vmatprep.subr.bf16.mxu0 %v2866
    %4576 = vmatpush1.bf16.msra.mxu0 %v2865
    %4577 = vmatprep.subr.bf16.mxu0 %v2876
    %4578 = vmatpush1.bf16.msra.mxu0 %v2875
    %4579 = vmatprep.subr.bf16.mxu0 %v2886
    %4580 = vmatpush1.bf16.msra.mxu0 %v2885
    %4581 = vmatprep.subr.bf16.mxu0 %v2896
    %4582 = vmatpush1.bf16.msra.mxu0 %v2895
    %4583 = vmatprep.subr.bf16.mxu0 %v2906
    %4584 = vmatpush1.bf16.msra.mxu0 %v2905
    %4585 = vmatprep.subr.bf16.mxu0 %v2916
    %4586 = vmatpush1.bf16.msra.mxu0 %v2915
    %4587 = vmatprep.subr.bf16.mxu0 %v2926
    %4588 = vmatpush1.bf16.msra.mxu0 %v2925
    %4589 = vmatprep.subr.bf16.mxu0 %v2936
    %4590 = vmatpush1.bf16.msra.mxu0 %v2935
    %4591 = vmatprep.subr.bf16.mxu0 %v2946
    %4592 = vmatpush1.bf16.msra.mxu0 %v2945
    %4593 = vmatprep.mubr.bf16.mxu0 %v854
    %4594 = vmatmul.mubr.bf16.gmra.mrb[0].mxu0 %v853
    %v4595 = vpop.f32.mrb[0].mxu0
    %v4596 = vadd.f32 %v818, %v4595
    %v4597 = vpop.f32.mrb[0].mxu0
    %v4598 = vadd.f32 %v822, %v4597
    %v4599 = vpop.f32.mrb[0].mxu0
    %v4600 = vpop.f32.mrb[0].mxu0
    %4601 = vdwg.mxu0
    %4602 = vmatprep.subr.bf16.mxu0 %v2956
    %4603 = vmatpush1.bf16.msra.mxu0 %v2955
    %4604 = vmatprep.subr.bf16.mxu0 %v2966
    %4605 = vmatpush1.bf16.msra.mxu0 %v2965
    %4606 = vmatprep.subr.bf16.mxu0 %v2976
    %4607 = vmatpush1.bf16.msra.mxu0 %v2975
    %4608 = vmatprep.subr.bf16.mxu0 %v2986
    %4609 = vmatpush1.bf16.msra.mxu0 %v2985
    %4610 = vmatprep.subr.bf16.mxu0 %v2996
    %4611 = vmatpush1.bf16.msra.mxu0 %v2995
    %4612 = vmatprep.subr.bf16.mxu0 %v3006
    %4613 = vmatpush1.bf16.msra.mxu0 %v3005
    %4614 = vmatprep.subr.bf16.mxu0 %v3016
    %4615 = vmatpush1.bf16.msra.mxu0 %v3015
    %4616 = vmatprep.subr.bf16.mxu0 %v3026
    %4617 = vmatpush1.bf16.msra.mxu0 %v3025
    %4618 = vmatprep.subr.bf16.mxu0 %v3036
    %4619 = vmatpush1.bf16.msra.mxu0 %v3035
    %4620 = vmatprep.subr.bf16.mxu0 %v3046
    %4621 = vmatpush1.bf16.msra.mxu0 %v3045
    %4622 = vmatprep.subr.bf16.mxu0 %v3056
    %4623 = vmatpush1.bf16.msra.mxu0 %v3055
    %4624 = vmatprep.subr.bf16.mxu0 %v3066
    %4625 = vmatpush1.bf16.msra.mxu0 %v3065
    %4626 = vmatprep.subr.bf16.mxu0 %v3076
    %4627 = vmatpush1.bf16.msra.mxu0 %v3075
    %4628 = vmatprep.subr.bf16.mxu0 %v3086
    %4629 = vmatpush1.bf16.msra.mxu0 %v3085
    %4630 = vmatprep.subr.bf16.mxu0 %v3096
    %4631 = vmatpush1.bf16.msra.mxu0 %v3095
    %4632 = vmatprep.subr.bf16.mxu0 %v3106
    %4633 = vmatpush1.bf16.msra.mxu0 %v3105
    %4634 = vmatprep.mubr.bf16.mxu0 %v856
    %4635 = vmatmul.mubr.bf16.gmra.mrb[0].mxu0 %v855
    %v4636 = vpop.f32.mrb[0].mxu0
    %v4637 = vadd.f32 %v4596, %v4636
    %v4638 = vpop.f32.mrb[0].mxu0
    %v4639 = vadd.f32 %v4598, %v4638
    %v4640 = vpop.f32.mrb[0].mxu0
    %v4641 = vpop.f32.mrb[0].mxu0
    %4642 = vdwg.mxu0
    %4643 = vmatprep.subr.bf16.mxu0 %v3116
    %4644 = vmatpush1.bf16.msra.mxu0 %v3115
    %4645 = vmatprep.subr.bf16.mxu0 %v3126
    %4646 = vmatpush1.bf16.msra.mxu0 %v3125
    %4647 = vmatprep.subr.bf16.mxu0 %v3136
    %4648 = vmatpush1.bf16.msra.mxu0 %v3135
    %4649 = vmatprep.subr.bf16.mxu0 %v3146
    %4650 = vmatpush1.bf16.msra.mxu0 %v3145
    %4651 = vmatprep.subr.bf16.mxu0 %v3156
    %4652 = vmatpush1.bf16.msra.mxu0 %v3155
    %4653 = vmatprep.subr.bf16.mxu0 %v3166
    %4654 = vmatpush1.bf16.msra.mxu0 %v3165
    %4655 = vmatprep.subr.bf16.mxu0 %v3176
    %4656 = vmatpush1.bf16.msra.mxu0 %v3175
    %4657 = vmatprep.subr.bf16.mxu0 %v3186
    %4658 = vmatpush1.bf16.msra.mxu0 %v3185
    %4659 = vmatprep.subr.bf16.mxu0 %v3196
    %4660 = vmatpush1.bf16.msra.mxu0 %v3195
    %4661 = vmatprep.subr.bf16.mxu0 %v3206
    %4662 = vmatpush1.bf16.msra.mxu0 %v3205
    %4663 = vmatprep.subr.bf16.mxu0 %v3216
    %4664 = vmatpush1.bf16.msra.mxu0 %v3215
    %4665 = vmatprep.subr.bf16.mxu0 %v3226
    %4666 = vmatpush1.bf16.msra.mxu0 %v3225
    %4667 = vmatprep.subr.bf16.mxu0 %v3236
    %4668 = vmatpush1.bf16.msra.mxu0 %v3235
    %4669 = vmatprep.subr.bf16.mxu0 %v3246
    %4670 = vmatpush1.bf16.msra.mxu0 %v3245
    %4671 = vmatprep.subr.bf16.mxu0 %v3256
    %4672 = vmatpush1.bf16.msra.mxu0 %v3255
    %4673 = vmatprep.subr.bf16.mxu0 %v3266
    %4674 = vmatpush1.bf16.msra.mxu0 %v3265
    %4675 = vmatprep.mubr.bf16.mxu0 %v858
    %4676 = vmatmul.mubr.bf16.gmra.mrb[0].mxu0 %v857
    %v4677 = vpop.f32.mrb[0].mxu0
    %v4678 = vadd.f32 %v4637, %v4677
    %v4679 = vpop.f32.mrb[0].mxu0
    %v4680 = vadd.f32 %v4639, %v4679
    %v4681 = vpop.f32.mrb[0].mxu0
    %v4682 = vpop.f32.mrb[0].mxu0
    %4683 = vdwg.mxu0
    %4684 = vmatprep.subr.bf16.mxu0 %v3276
    %4685 = vmatpush1.bf16.msra.mxu0 %v3275
    %4686 = vmatprep.subr.bf16.mxu0 %v3286
    %4687 = vmatpush1.bf16.msra.mxu0 %v3285
    %4688 = vmatprep.subr.bf16.mxu0 %v3296
    %4689 = vmatpush1.bf16.msra.mxu0 %v3295
    %4690 = vmatprep.subr.bf16.mxu0 %v3306
    %4691 = vmatpush1.bf16.msra.mxu0 %v3305
    %4692 = vmatprep.subr.bf16.mxu0 %v3316
    %4693 = vmatpush1.bf16.msra.mxu0 %v3315
    %4694 = vmatprep.subr.bf16.mxu0 %v3326
    %4695 = vmatpush1.bf16.msra.mxu0 %v3325
    %4696 = vmatprep.subr.bf16.mxu0 %v3336
    %4697 = vmatpush1.bf16.msra.mxu0 %v3335
    %4698 = vmatprep.subr.bf16.mxu0 %v3346
    %4699 = vmatpush1.bf16.msra.mxu0 %v3345
    %4700 = vmatprep.subr.bf16.mxu0 %v3356
    %4701 = vmatpush1.bf16.msra.mxu0 %v3355
    %4702 = vmatprep.subr.bf16.mxu0 %v3366
    %4703 = vmatpush1.bf16.msra.mxu0 %v3365
    %4704 = vmatprep.subr.bf16.mxu0 %v3376
    %4705 = vmatpush1.bf16.msra.mxu0 %v3375
    %4706 = vmatprep.subr.bf16.mxu0 %v3386
    %4707 = vmatpush1.bf16.msra.mxu0 %v3385
    %4708 = vmatprep.subr.bf16.mxu0 %v3396
    %4709 = vmatpush1.bf16.msra.mxu0 %v3395
    %4710 = vmatprep.subr.bf16.mxu0 %v3406
    %4711 = vmatpush1.bf16.msra.mxu0 %v3405
    %4712 = vmatprep.subr.bf16.mxu0 %v3416
    %4713 = vmatpush1.bf16.msra.mxu0 %v3415
    %4714 = vmatprep.subr.bf16.mxu0 %v3426
    %4715 = vmatpush1.bf16.msra.mxu0 %v3425
    %4716 = vmatprep.mubr.bf16.mxu0 %v860
    %4717 = vmatmul.mubr.bf16.gmra.mrb[0].mxu0 %v859
    %v4718 = vpop.f32.mrb[0].mxu0
    %v4719 = vadd.f32 %v4678, %v4718
    %v4720 = vpop.f32.mrb[0].mxu0
    %v4721 = vadd.f32 %v4680, %v4720
    %v4722 = vpop.f32.mrb[0].mxu0
    %v4723 = vpop.f32.mrb[0].mxu0
    %4724 = vdwg.mxu0
    %4725 = vmatprep.subr.bf16.mxu0 %v2798
    %4726 = vmatpush1.bf16.msra.mxu0 %v2797
    %4727 = vmatprep.subr.bf16.mxu0 %v2808
    %4728 = vmatpush1.bf16.msra.mxu0 %v2807
    %4729 = vmatprep.subr.bf16.mxu0 %v2818
    %4730 = vmatpush1.bf16.msra.mxu0 %v2817
    %4731 = vmatprep.subr.bf16.mxu0 %v2828
    %4732 = vmatpush1.bf16.msra.mxu0 %v2827
    %4733 = vmatprep.subr.bf16.mxu0 %v2838
    %4734 = vmatpush1.bf16.msra.mxu0 %v2837
    %4735 = vmatprep.subr.bf16.mxu0 %v2848
    %4736 = vmatpush1.bf16.msra.mxu0 %v2847
    %4737 = vmatprep.subr.bf16.mxu0 %v2858
    %4738 = vmatpush1.bf16.msra.mxu0 %v2857
    %4739 = vmatprep.subr.bf16.mxu0 %v2868
    %4740 = vmatpush1.bf16.msra.mxu0 %v2867
    %4741 = vmatprep.subr.bf16.mxu0 %v2878
    %4742 = vmatpush1.bf16.msra.mxu0 %v2877
    %4743 = vmatprep.subr.bf16.mxu0 %v2888
    %4744 = vmatpush1.bf16.msra.mxu0 %v2887
    %4745 = vmatprep.subr.bf16.mxu0 %v2898
    %4746 = vmatpush1.bf16.msra.mxu0 %v2897
    %4747 = vmatprep.subr.bf16.mxu0 %v2908
    %4748 = vmatpush1.bf16.msra.mxu0 %v2907
    %4749 = vmatprep.subr.bf16.mxu0 %v2918
    %4750 = vmatpush1.bf16.msra.mxu0 %v2917
    %4751 = vmatprep.subr.bf16.mxu0 %v2928
    %4752 = vmatpush1.bf16.msra.mxu0 %v2927
    %4753 = vmatprep.subr.bf16.mxu0 %v2938
    %4754 = vmatpush1.bf16.msra.mxu0 %v2937
    %4755 = vmatprep.subr.bf16.mxu0 %v2948
    %4756 = vmatpush1.bf16.msra.mxu0 %v2947
    %4757 = vmatprep.mubr.bf16.mxu0 %v854
    %4758 = vmatmul.mubr.bf16.gmra.mrb[0].mxu0 %v853
    %v4759 = vpop.f32.mrb[0].mxu0
    %v4760 = vadd.f32 %v826, %v4759
    %v4761 = vpop.f32.mrb[0].mxu0
    %v4762 = vadd.f32 %v830, %v4761
    %v4763 = vpop.f32.mrb[0].mxu0
    %v4764 = vpop.f32.mrb[0].mxu0
    %4765 = vdwg.mxu0
    %4766 = vmatprep.subr.bf16.mxu0 %v2958
    %4767 = vmatpush1.bf16.msra.mxu0 %v2957
    %4768 = vmatprep.subr.bf16.mxu0 %v2968
    %4769 = vmatpush1.bf16.msra.mxu0 %v2967
    %4770 = vmatprep.subr.bf16.mxu0 %v2978
    %4771 = vmatpush1.bf16.msra.mxu0 %v2977
    %4772 = vmatprep.subr.bf16.mxu0 %v2988
    %4773 = vmatpush1.bf16.msra.mxu0 %v2987
    %4774 = vmatprep.subr.bf16.mxu0 %v2998
    %4775 = vmatpush1.bf16.msra.mxu0 %v2997
    %4776 = vmatprep.subr.bf16.mxu0 %v3008
    %4777 = vmatpush1.bf16.msra.mxu0 %v3007
    %4778 = vmatprep.subr.bf16.mxu0 %v3018
    %4779 = vmatpush1.bf16.msra.mxu0 %v3017
    %4780 = vmatprep.subr.bf16.mxu0 %v3028
    %4781 = vmatpush1.bf16.msra.mxu0 %v3027
    %4782 = vmatprep.subr.bf16.mxu0 %v3038
    %4783 = vmatpush1.bf16.msra.mxu0 %v3037
    %4784 = vmatprep.subr.bf16.mxu0 %v3048
    %4785 = vmatpush1.bf16.msra.mxu0 %v3047
    %4786 = vmatprep.subr.bf16.mxu0 %v3058
    %4787 = vmatpush1.bf16.msra.mxu0 %v3057
    %4788 = vmatprep.subr.bf16.mxu0 %v3068
    %4789 = vmatpush1.bf16.msra.mxu0 %v3067
    %4790 = vmatprep.subr.bf16.mxu0 %v3078
    %4791 = vmatpush1.bf16.msra.mxu0 %v3077
    %4792 = vmatprep.subr.bf16.mxu0 %v3088
    %4793 = vmatpush1.bf16.msra.mxu0 %v3087
    %4794 = vmatprep.subr.bf16.mxu0 %v3098
    %4795 = vmatpush1.bf16.msra.mxu0 %v3097
    %4796 = vmatprep.subr.bf16.mxu0 %v3108
    %4797 = vmatpush1.bf16.msra.mxu0 %v3107
    %4798 = vmatprep.mubr.bf16.mxu0 %v856
    %4799 = vmatmul.mubr.bf16.gmra.mrb[0].mxu0 %v855
    %v4800 = vpop.f32.mrb[0].mxu0
    %v4801 = vadd.f32 %v4760, %v4800
    %v4802 = vpop.f32.mrb[0].mxu0
    %v4803 = vadd.f32 %v4762, %v4802
    %v4804 = vpop.f32.mrb[0].mxu0
    %v4805 = vpop.f32.mrb[0].mxu0
    %4806 = vdwg.mxu0
    %4807 = vmatprep.subr.bf16.mxu0 %v3118
    %4808 = vmatpush1.bf16.msra.mxu0 %v3117
    %4809 = vmatprep.subr.bf16.mxu0 %v3128
    %4810 = vmatpush1.bf16.msra.mxu0 %v3127
    %4811 = vmatprep.subr.bf16.mxu0 %v3138
    %4812 = vmatpush1.bf16.msra.mxu0 %v3137
    %4813 = vmatprep.subr.bf16.mxu0 %v3148
    %4814 = vmatpush1.bf16.msra.mxu0 %v3147
    %4815 = vmatprep.subr.bf16.mxu0 %v3158
    %4816 = vmatpush1.bf16.msra.mxu0 %v3157
    %4817 = vmatprep.subr.bf16.mxu0 %v3168
    %4818 = vmatpush1.bf16.msra.mxu0 %v3167
    %4819 = vmatprep.subr.bf16.mxu0 %v3178
    %4820 = vmatpush1.bf16.msra.mxu0 %v3177
    %4821 = vmatprep.subr.bf16.mxu0 %v3188
    %4822 = vmatpush1.bf16.msra.mxu0 %v3187
    %4823 = vmatprep.subr.bf16.mxu0 %v3198
    %4824 = vmatpush1.bf16.msra.mxu0 %v3197
    %4825 = vmatprep.subr.bf16.mxu0 %v3208
    %4826 = vmatpush1.bf16.msra.mxu0 %v3207
    %4827 = vmatprep.subr.bf16.mxu0 %v3218
    %4828 = vmatpush1.bf16.msra.mxu0 %v3217
    %4829 = vmatprep.subr.bf16.mxu0 %v3228
    %4830 = vmatpush1.bf16.msra.mxu0 %v3227
    %4831 = vmatprep.subr.bf16.mxu0 %v3238
    %4832 = vmatpush1.bf16.msra.mxu0 %v3237
    %4833 = vmatprep.subr.bf16.mxu0 %v3248
    %4834 = vmatpush1.bf16.msra.mxu0 %v3247
    %4835 = vmatprep.subr.bf16.mxu0 %v3258
    %4836 = vmatpush1.bf16.msra.mxu0 %v3257
    %4837 = vmatprep.subr.bf16.mxu0 %v3268
    %4838 = vmatpush1.bf16.msra.mxu0 %v3267
    %4839 = vmatprep.mubr.bf16.mxu0 %v858
    %4840 = vmatmul.mubr.bf16.gmra.mrb[0].mxu0 %v857
    %v4841 = vpop.f32.mrb[0].mxu0
    %v4842 = vadd.f32 %v4801, %v4841
    %v4843 = vpop.f32.mrb[0].mxu0
    %v4844 = vadd.f32 %v4803, %v4843
    %v4845 = vpop.f32.mrb[0].mxu0
    %v4846 = vpop.f32.mrb[0].mxu0
    %4847 = vdwg.mxu0
    %4848 = vmatprep.subr.bf16.mxu0 %v3278
    %4849 = vmatpush1.bf16.msra.mxu0 %v3277
    %4850 = vmatprep.subr.bf16.mxu0 %v3288
    %4851 = vmatpush1.bf16.msra.mxu0 %v3287
    %4852 = vmatprep.subr.bf16.mxu0 %v3298
    %4853 = vmatpush1.bf16.msra.mxu0 %v3297
    %4854 = vmatprep.subr.bf16.mxu0 %v3308
    %4855 = vmatpush1.bf16.msra.mxu0 %v3307
    %4856 = vmatprep.subr.bf16.mxu0 %v3318
    %4857 = vmatpush1.bf16.msra.mxu0 %v3317
    %4858 = vmatprep.subr.bf16.mxu0 %v3328
    %4859 = vmatpush1.bf16.msra.mxu0 %v3327
    %4860 = vmatprep.subr.bf16.mxu0 %v3338
    %4861 = vmatpush1.bf16.msra.mxu0 %v3337
    %4862 = vmatprep.subr.bf16.mxu0 %v3348
    %4863 = vmatpush1.bf16.msra.mxu0 %v3347
    %4864 = vmatprep.subr.bf16.mxu0 %v3358
    %4865 = vmatpush1.bf16.msra.mxu0 %v3357
    %4866 = vmatprep.subr.bf16.mxu0 %v3368
    %4867 = vmatpush1.bf16.msra.mxu0 %v3367
    %4868 = vmatprep.subr.bf16.mxu0 %v3378
    %4869 = vmatpush1.bf16.msra.mxu0 %v3377
    %4870 = vmatprep.subr.bf16.mxu0 %v3388
    %4871 = vmatpush1.bf16.msra.mxu0 %v3387
    %4872 = vmatprep.subr.bf16.mxu0 %v3398
    %4873 = vmatpush1.bf16.msra.mxu0 %v3397
    %4874 = vmatprep.subr.bf16.mxu0 %v3408
    %4875 = vmatpush1.bf16.msra.mxu0 %v3407
    %4876 = vmatprep.subr.bf16.mxu0 %v3418
    %4877 = vmatpush1.bf16.msra.mxu0 %v3417
    %4878 = vmatprep.subr.bf16.mxu0 %v3428
    %4879 = vmatpush1.bf16.msra.mxu0 %v3427
    %4880 = vmatprep.mubr.bf16.mxu0 %v860
    %4881 = vmatmul.mubr.bf16.gmra.mrb[0].mxu0 %v859
    %v4882 = vpop.f32.mrb[0].mxu0
    %v4883 = vadd.f32 %v4842, %v4882
    %v4884 = vpop.f32.mrb[0].mxu0
    %v4885 = vadd.f32 %v4844, %v4884
    %v4886 = vpop.f32.mrb[0].mxu0
    %v4887 = vpop.f32.mrb[0].mxu0
    %4888 = vdwg.mxu0
    %v4889 = vmax.f32 %v4227, %v4391
    %v4890 = vmax.f32 %v4229, %v4393
    %v4891 = vmax.f32 %v4889, %v4555
    %v4892 = vmax.f32 %v4890, %v4557
    %v4893 = vmax.f32 %v4891, %v4719
    %v4894 = vmax.f32 %v4892, %v4721
    %v4895 = vmax.f32 %v4893, %v4883
    %v4896 = vmax.f32 %v4894, %v4885
    %v4897 = vld [vmem:[#allocation7] sm:$0xff]
    %v4898 = vld [vmem:[#allocation7 + $0x8] sm:$0xff]
    %v4899 = vld [vmem:[#allocation7 + $0x10] sm:$0xf]
    %v4900 = vld [vmem:[#allocation7 + $0x14] sm:$0x11]
    %v4901 = vld [vmem:[#allocation7 + $0x1c] sm:$0x11]
    %v4902 = vld [vmem:[#allocation7 + $0x24] sm:$0x1]
    %v4903 = vld [vmem:[#allocation8] sm:$0x1f]
    %v4905 = vlaneseq
    %v4906 = vshrl.u32 %v4905, 7
    %v4907 = vsub.s32 0, %v4906
    %v4908 = vrot.slane %v4903, %v4907
    %v4909 = vlaneseq
    %v4910 = vshrl.u32 %v4909, 7
    %v4911 = vsub.s32 1, %v4910
    %v4912 = vrot.slane %v4903, %v4911
    %v4913 = vlaneseq
    %v4914 = vshrl.u32 %v4913, 7
    %v4915 = vsub.s32 2, %v4914
    %v4916 = vrot.slane %v4903, %v4915
    %v4917 = vlaneseq
    %v4918 = vshrl.u32 %v4917, 7
    %v4919 = vsub.s32 3, %v4918
    %v4920 = vrot.slane %v4903, %v4919
    %v4921 = vlaneseq
    %v4922 = vshrl.u32 %v4921, 7
    %v4923 = vsub.s32 4, %v4922
    %v4924 = vrot.slane %v4903, %v4923
    %v4936 = vunpack.c.l.b16 %v4897
    %v4937 = vunpack.c.h.b16 %v4897
    %v4938 = vunpack.c.l.b16 %v4898
    %v4939 = vunpack.c.h.b16 %v4898
    %v4940 = vunpack.c.l.b16 %v4899
    %v4941 = vunpack.c.l.b16 %v4900
    %v4942 = vunpack.c.h.b16 %v4900
    %v4943 = vunpack.c.l.b16 %v4901
    %v4944 = vunpack.c.h.b16 %v4901
    %v4945 = vunpack.c.l.b16 %v4902
    %v4946 = vpack.c.b16 %v4941, %v4936
    %v4947 = vpack.c.b16 %v4942, %v4937
    %v4948 = vpack.c.b16 %v4943, %v4938
    %v4949 = vpack.c.b16 %v4944, %v4939
    %v4950 = vpack.c.b16 %v4945, %v4940
    %vm4951 = vcmask 80896
    %v4953 = vsel %vm4951, %v146, 0
    %vm4955 = vcmask 1044480
    %v4957 = vsel %vm4955, %v4946, 0
    %v4960 = vsel %vm4955, %v4947, 0
    %v4963 = vsel %vm4955, %v4948, 0
    %v4966 = vsel %vm4955, %v4949, 0
    %v4969 = vsel %vm4955, %v4950, 0
    %4971 = vmatprep.subr.bf16.mxu0 %v4960
    %4972 = vmatpush1.bf16.msra.mxu0 %v4957
    %4973 = vmatprep.subr.bf16.mxu0 0
    %4974 = vmatpush1.bf16.msra.mxu0 0
    %4975 = vmatprep.subr.bf16.mxu0 0
    %4976 = vmatpush1.bf16.msra.mxu0 0
    %4977 = vmatprep.subr.bf16.mxu0 0
    %4978 = vmatpush1.bf16.msra.mxu0 0
    %4979 = vmatprep.subr.bf16.mxu0 0
    %4980 = vmatpush1.bf16.msra.mxu0 0
    %4981 = vmatprep.subr.bf16.mxu0 0
    %4982 = vmatpush1.bf16.msra.mxu0 0
    %4983 = vmatprep.subr.bf16.mxu0 0
    %4984 = vmatpush1.bf16.msra.mxu0 0
    %4985 = vmatprep.subr.bf16.mxu0 0
    %4986 = vmatpush1.bf16.msra.mxu0 0
    %4987 = vmatprep.subr.bf16.mxu0 0
    %4988 = vmatpush1.bf16.msra.mxu0 0
    %4989 = vmatprep.subr.bf16.mxu0 0
    %4990 = vmatpush1.bf16.msra.mxu0 0
    %4991 = vmatprep.subr.bf16.mxu0 0
    %4992 = vmatpush1.bf16.msra.mxu0 0
    %4993 = vmatprep.subr.bf16.mxu0 0
    %4994 = vmatpush1.bf16.msra.mxu0 0
    %4995 = vmatprep.subr.bf16.mxu0 0
    %4996 = vmatpush1.bf16.msra.mxu0 0
    %4997 = vmatprep.subr.bf16.mxu0 0
    %4998 = vmatpush1.bf16.msra.mxu0 0
    %4999 = vmatprep.subr.bf16.mxu0 0
    %5000 = vmatpush1.bf16.msra.mxu0 0
    %5001 = vmatprep.subr.bf16.mxu0 0
    %5002 = vmatpush1.bf16.msra.mxu0 0
    %5003 = vmatprep.mubr.bf16.mxu0 0
    %5004 = vmatmul.mubr.bf16.gmra.mrb[0].mxu0 %v4953
    %v5005 = vpop.f32.mrb[0].mxu0
    %v5006 = vadd.f32 %v4908, %v5005
    %v5007 = vpop.f32.mrb[0].mxu0
    %v5008 = vadd.f32 %v4912, %v5007
    %v5009 = vpop.f32.mrb[0].mxu0
    %v5010 = vpop.f32.mrb[0].mxu0
    %5011 = vdwg.mxu0
    %5012 = vmatprep.subr.bf16.mxu0 %v4966
    %5013 = vmatpush1.bf16.msra.mxu0 %v4963
    %5014 = vmatprep.subr.bf16.mxu0 0
    %5015 = vmatpush1.bf16.msra.mxu0 0
    %5016 = vmatprep.subr.bf16.mxu0 0
    %5017 = vmatpush1.bf16.msra.mxu0 0
    %5018 = vmatprep.subr.bf16.mxu0 0
    %5019 = vmatpush1.bf16.msra.mxu0 0
    %5020 = vmatprep.subr.bf16.mxu0 0
    %5021 = vmatpush1.bf16.msra.mxu0 0
    %5022 = vmatprep.subr.bf16.mxu0 0
    %5023 = vmatpush1.bf16.msra.mxu0 0
    %5024 = vmatprep.subr.bf16.mxu0 0
    %5025 = vmatpush1.bf16.msra.mxu0 0
    %5026 = vmatprep.subr.bf16.mxu0 0
    %5027 = vmatpush1.bf16.msra.mxu0 0
    %5028 = vmatprep.subr.bf16.mxu0 0
    %5029 = vmatpush1.bf16.msra.mxu0 0
    %5030 = vmatprep.subr.bf16.mxu0 0
    %5031 = vmatpush1.bf16.msra.mxu0 0
    %5032 = vmatprep.subr.bf16.mxu0 0
    %5033 = vmatpush1.bf16.msra.mxu0 0
    %5034 = vmatprep.subr.bf16.mxu0 0
    %5035 = vmatpush1.bf16.msra.mxu0 0
    %5036 = vmatprep.subr.bf16.mxu0 0
    %5037 = vmatpush1.bf16.msra.mxu0 0
    %5038 = vmatprep.subr.bf16.mxu0 0
    %5039 = vmatpush1.bf16.msra.mxu0 0
    %5040 = vmatprep.subr.bf16.mxu0 0
    %5041 = vmatpush1.bf16.msra.mxu0 0
    %5042 = vmatprep.subr.bf16.mxu0 0
    %5043 = vmatpush1.bf16.msra.mxu0 0
    %5044 = vmatprep.mubr.bf16.mxu0 0
    %5045 = vmatmul.mubr.bf16.gmra.mrb[0].mxu0 %v4953
    %v5046 = vpop.f32.mrb[0].mxu0
    %v5047 = vadd.f32 %v4916, %v5046
    %v5048 = vpop.f32.mrb[0].mxu0
    %v5049 = vadd.f32 %v4920, %v5048
    %v5050 = vpop.f32.mrb[0].mxu0
    %v5051 = vpop.f32.mrb[0].mxu0
    %5052 = vdwg.mxu0
    %5053 = vmatprep.subr.bf16.mxu0 0
    %5054 = vmatpush1.bf16.msra.mxu0 %v4969
    %5055 = vmatprep.subr.bf16.mxu0 0
    %5056 = vmatpush1.bf16.msra.mxu0 0
    %5057 = vmatprep.subr.bf16.mxu0 0
    %5058 = vmatpush1.bf16.msra.mxu0 0
    %5059 = vmatprep.subr.bf16.mxu0 0
    %5060 = vmatpush1.bf16.msra.mxu0 0
    %5061 = vmatprep.subr.bf16.mxu0 0
    %5062 = vmatpush1.bf16.msra.mxu0 0
    %5063 = vmatprep.subr.bf16.mxu0 0
    %5064 = vmatpush1.bf16.msra.mxu0 0
    %5065 = vmatprep.subr.bf16.mxu0 0
    %5066 = vmatpush1.bf16.msra.mxu0 0
    %5067 = vmatprep.subr.bf16.mxu0 0
    %5068 = vmatpush1.bf16.msra.mxu0 0
    %5069 = vmatprep.subr.bf16.mxu0 0
    %5070 = vmatpush1.bf16.msra.mxu0 0
    %5071 = vmatprep.subr.bf16.mxu0 0
    %5072 = vmatpush1.bf16.msra.mxu0 0
    %5073 = vmatprep.subr.bf16.mxu0 0
    %5074 = vmatpush1.bf16.msra.mxu0 0
    %5075 = vmatprep.subr.bf16.mxu0 0
    %5076 = vmatpush1.bf16.msra.mxu0 0
    %5077 = vmatprep.subr.bf16.mxu0 0
    %5078 = vmatpush1.bf16.msra.mxu0 0
    %5079 = vmatprep.subr.bf16.mxu0 0
    %5080 = vmatpush1.bf16.msra.mxu0 0
    %5081 = vmatprep.subr.bf16.mxu0 0
    %5082 = vmatpush1.bf16.msra.mxu0 0
    %5083 = vmatprep.subr.bf16.mxu0 0
    %5084 = vmatpush1.bf16.msra.mxu0 0
    %5085 = vmatprep.mubr.bf16.mxu0 0
    %5086 = vmatmul.mubr.bf16.gmra.mrb[0].mxu0 %v4953
    %v5087 = vpop.f32.mrb[0].mxu0
    %v5088 = vadd.f32 %v4924, %v5087
    %v5089 = vpop.f32.mrb[0].mxu0
    %v5090 = vpop.f32.mrb[0].mxu0
    %v5091 = vpop.f32.mrb[0].mxu0
    %5092 = vdwg.mxu0
    %v5093 = vmax.f32 %v5006, %v5008
    %v5094 = vmax.f32 %v5093, %v5047
    %v5095 = vmax.f32 %v5094, %v5049
    %v5096 = vmax.f32 %v5095, %v5088
    %v5097 = vpack.c.bf16 %v4895, %v4895
    %v5098 = vpack.c.bf16 %v4896, %v4896
    %v5099 = vld [vmem:[#allocation10] sm:$0xff]
    %v5100 = vld [vmem:[#allocation10 + $0x8] sm:$0xff]
    %v5101 = vld [vmem:[#allocation10 + $0x10] sm:$0xff]
    %v5102 = vld [vmem:[#allocation10 + $0x18] sm:$0xff]
    %v5103 = vld [vmem:[#allocation10 + $0x20] sm:$0xff]
    %v5104 = vld [vmem:[#allocation10 + $0x28] sm:$0xff]
    %v5105 = vld [vmem:[#allocation10 + $0x30] sm:$0xff]
    %v5106 = vld [vmem:[#allocation10 + $0x38] sm:$0xff]
    %v5107 = vld [vmem:[#allocation10 + $0x40] sm:$0xff]
    %v5108 = vld [vmem:[#allocation10 + $0x48] sm:$0xff]
    %v5109 = vld [vmem:[#allocation10 + $0x50] sm:$0xff]
    %v5110 = vld [vmem:[#allocation10 + $0x58] sm:$0xff]
    %v5111 = vld [vmem:[#allocation10 + $0x60] sm:$0xff]
    %v5112 = vld [vmem:[#allocation10 + $0x68] sm:$0xff]
    %v5113 = vld [vmem:[#allocation10 + $0x70] sm:$0xff]
    %v5114 = vld [vmem:[#allocation10 + $0x78] sm:$0xff]
    %v5115 = vld [vmem:[#allocation10 + $0x80] sm:$0xff]
    %v5116 = vld [vmem:[#allocation10 + $0x88] sm:$0xff]
    %v5117 = vld [vmem:[#allocation10 + $0x90] sm:$0xff]
    %v5118 = vld [vmem:[#allocation10 + $0x98] sm:$0xff]
    %v5119 = vld [vmem:[#allocation10 + $0xa0] sm:$0xff]
    %v5120 = vld [vmem:[#allocation10 + $0xa8] sm:$0xff]
    %v5121 = vld [vmem:[#allocation10 + $0xb0] sm:$0xff]
    %v5122 = vld [vmem:[#allocation10 + $0xb8] sm:$0xff]
    %v5123 = vld [vmem:[#allocation10 + $0xc0] sm:$0xff]
    %v5124 = vld [vmem:[#allocation10 + $0xc8] sm:$0xff]
    %v5125 = vld [vmem:[#allocation10 + $0xd0] sm:$0xff]
    %v5126 = vld [vmem:[#allocation10 + $0xd8] sm:$0xff]
    %v5127 = vld [vmem:[#allocation10 + $0xe0] sm:$0xff]
    %v5128 = vld [vmem:[#allocation10 + $0xe8] sm:$0xff]
    %v5129 = vld [vmem:[#allocation10 + $0xf0] sm:$0xff]
    %v5130 = vld [vmem:[#allocation10 + $0xf8] sm:$0xff]
    %v5131 = vld [vmem:[#allocation10 + $0x100] sm:$0xff]
    %v5132 = vld [vmem:[#allocation10 + $0x108] sm:$0xff]
    %v5133 = vld [vmem:[#allocation10 + $0x110] sm:$0xff]
    %v5134 = vld [vmem:[#allocation10 + $0x118] sm:$0xff]
    %v5135 = vld [vmem:[#allocation10 + $0x120] sm:$0xff]
    %v5136 = vld [vmem:[#allocation10 + $0x128] sm:$0xff]
    %v5137 = vld [vmem:[#allocation10 + $0x130] sm:$0xff]
    %v5138 = vld [vmem:[#allocation10 + $0x138] sm:$0xff]
    %v5139 = vld [vmem:[#allocation10 + $0x140] sm:$0xff]
    %v5140 = vld [vmem:[#allocation10 + $0x148] sm:$0xff]
    %v5141 = vld [vmem:[#allocation10 + $0x150] sm:$0xff]
    %v5142 = vld [vmem:[#allocation10 + $0x158] sm:$0xff]
    %v5143 = vld [vmem:[#allocation10 + $0x160] sm:$0xff]
    %v5144 = vld [vmem:[#allocation10 + $0x168] sm:$0xff]
    %v5145 = vld [vmem:[#allocation10 + $0x170] sm:$0xff]
    %v5146 = vld [vmem:[#allocation10 + $0x178] sm:$0xff]
    %v5147 = vld [vmem:[#allocation10 + $0x180] sm:$0xff]
    %v5148 = vld [vmem:[#allocation10 + $0x188] sm:$0xff]
    %v5149 = vld [vmem:[#allocation10 + $0x190] sm:$0xff]
    %v5150 = vld [vmem:[#allocation10 + $0x198] sm:$0xff]
    %v5151 = vld [vmem:[#allocation10 + $0x1a0] sm:$0xff]
    %v5152 = vld [vmem:[#allocation10 + $0x1a8] sm:$0xff]
    %v5153 = vld [vmem:[#allocation10 + $0x1b0] sm:$0xff]
    %v5154 = vld [vmem:[#allocation10 + $0x1b8] sm:$0xff]
    %v5155 = vld [vmem:[#allocation10 + $0x1c0] sm:$0xff]
    %v5156 = vld [vmem:[#allocation10 + $0x1c8] sm:$0xff]
    %v5157 = vld [vmem:[#allocation10 + $0x1d0] sm:$0xff]
    %v5158 = vld [vmem:[#allocation10 + $0x1d8] sm:$0xff]
    %v5159 = vld [vmem:[#allocation10 + $0x1e0] sm:$0xff]
    %v5160 = vld [vmem:[#allocation10 + $0x1e8] sm:$0xff]
    %v5161 = vld [vmem:[#allocation10 + $0x1f0] sm:$0xff]
    %v5162 = vld [vmem:[#allocation10 + $0x1f8] sm:$0xff]
    %v5163 = vld [vmem:[#allocation10 + $0x200] sm:$0xff]
    %v5164 = vld [vmem:[#allocation10 + $0x208] sm:$0xff]
    %v5165 = vld [vmem:[#allocation10 + $0x210] sm:$0xff]
    %v5166 = vld [vmem:[#allocation10 + $0x218] sm:$0xff]
    %v5167 = vld [vmem:[#allocation10 + $0x220] sm:$0xff]
    %v5168 = vld [vmem:[#allocation10 + $0x228] sm:$0xff]
    %v5169 = vld [vmem:[#allocation10 + $0x230] sm:$0xff]
    %v5170 = vld [vmem:[#allocation10 + $0x238] sm:$0xff]
    %v5171 = vld [vmem:[#allocation10 + $0x240] sm:$0xff]
    %v5172 = vld [vmem:[#allocation10 + $0x248] sm:$0xff]
    %v5173 = vld [vmem:[#allocation10 + $0x250] sm:$0xff]
    %v5174 = vld [vmem:[#allocation10 + $0x258] sm:$0xff]
    %v5175 = vld [vmem:[#allocation10 + $0x260] sm:$0xff]
    %v5176 = vld [vmem:[#allocation10 + $0x268] sm:$0xff]
    %v5177 = vld [vmem:[#allocation10 + $0x270] sm:$0xff]
    %v5178 = vld [vmem:[#allocation10 + $0x278] sm:$0xff]
    %v5179 = vld [vmem:[#allocation10 + $0x280] sm:$0xff]
    %v5180 = vld [vmem:[#allocation10 + $0x288] sm:$0xff]
    %v5181 = vld [vmem:[#allocation10 + $0x290] sm:$0xff]
    %v5182 = vld [vmem:[#allocation10 + $0x298] sm:$0xff]
    %v5183 = vld [vmem:[#allocation10 + $0x2a0] sm:$0xff]
    %v5184 = vld [vmem:[#allocation10 + $0x2a8] sm:$0xff]
    %v5185 = vld [vmem:[#allocation10 + $0x2b0] sm:$0xff]
    %v5186 = vld [vmem:[#allocation10 + $0x2b8] sm:$0xff]
    %v5187 = vld [vmem:[#allocation10 + $0x2c0] sm:$0xff]
    %v5188 = vld [vmem:[#allocation10 + $0x2c8] sm:$0xff]
    %v5189 = vld [vmem:[#allocation10 + $0x2d0] sm:$0xff]
    %v5190 = vld [vmem:[#allocation10 + $0x2d8] sm:$0xff]
    %v5191 = vld [vmem:[#allocation10 + $0x2e0] sm:$0xff]
    %v5192 = vld [vmem:[#allocation10 + $0x2e8] sm:$0xff]
    %v5193 = vld [vmem:[#allocation10 + $0x2f0] sm:$0xff]
    %v5194 = vld [vmem:[#allocation10 + $0x2f8] sm:$0xff]
    %v5195 = vld [vmem:[#allocation10 + $0x300] sm:$0xff]
    %v5196 = vld [vmem:[#allocation10 + $0x308] sm:$0xff]
    %v5197 = vld [vmem:[#allocation10 + $0x310] sm:$0xff]
    %v5198 = vld [vmem:[#allocation10 + $0x318] sm:$0xff]
    %v5199 = vld [vmem:[#allocation10 + $0x320] sm:$0xff]
    %v5200 = vld [vmem:[#allocation10 + $0x328] sm:$0xff]
    %v5201 = vld [vmem:[#allocation10 + $0x330] sm:$0xff]
    %v5202 = vld [vmem:[#allocation10 + $0x338] sm:$0xff]
    %v5203 = vld [vmem:[#allocation10 + $0x340] sm:$0xff]
    %v5204 = vld [vmem:[#allocation10 + $0x348] sm:$0xff]
    %v5205 = vld [vmem:[#allocation10 + $0x350] sm:$0xff]
    %v5206 = vld [vmem:[#allocation10 + $0x358] sm:$0xff]
    %v5207 = vld [vmem:[#allocation10 + $0x360] sm:$0xff]
    %v5208 = vld [vmem:[#allocation10 + $0x368] sm:$0xff]
    %v5209 = vld [vmem:[#allocation10 + $0x370] sm:$0xff]
    %v5210 = vld [vmem:[#allocation10 + $0x378] sm:$0xff]
    %v5211 = vld [vmem:[#allocation10 + $0x380] sm:$0xff]
    %v5212 = vld [vmem:[#allocation10 + $0x388] sm:$0xff]
    %v5213 = vld [vmem:[#allocation10 + $0x390] sm:$0xff]
    %v5214 = vld [vmem:[#allocation10 + $0x398] sm:$0xff]
    %v5215 = vld [vmem:[#allocation10 + $0x3a0] sm:$0xff]
    %v5216 = vld [vmem:[#allocation10 + $0x3a8] sm:$0xff]
    %v5217 = vld [vmem:[#allocation10 + $0x3b0] sm:$0xff]
    %v5218 = vld [vmem:[#allocation10 + $0x3b8] sm:$0xff]
    %v5219 = vld [vmem:[#allocation10 + $0x3c0] sm:$0xff]
    %v5220 = vld [vmem:[#allocation10 + $0x3c8] sm:$0xff]
    %v5221 = vld [vmem:[#allocation10 + $0x3d0] sm:$0xff]
    %v5222 = vld [vmem:[#allocation10 + $0x3d8] sm:$0xff]
    %v5223 = vld [vmem:[#allocation10 + $0x3e0] sm:$0xff]
    %v5224 = vld [vmem:[#allocation10 + $0x3e8] sm:$0xff]
    %v5225 = vld [vmem:[#allocation10 + $0x3f0] sm:$0xff]
    %v5226 = vld [vmem:[#allocation10 + $0x3f8] sm:$0xff]
    %v5227 = vpack.c.bf16 %v5096, %v5096
    %v5228 = vld [vmem:[#allocation11] sm:$0xff]
    %v5229 = vld [vmem:[#allocation11 + $0x8] sm:$0xff]
    %v5230 = vld [vmem:[#allocation11 + $0x10] sm:$0xff]
    %v5231 = vld [vmem:[#allocation11 + $0x18] sm:$0xff]
    %v5232 = vld [vmem:[#allocation11 + $0x20] sm:$0xff]
    %v5233 = vld [vmem:[#allocation11 + $0x28] sm:$0xff]
    %v5234 = vld [vmem:[#allocation11 + $0x30] sm:$0xff]
    %v5235 = vld [vmem:[#allocation11 + $0x38] sm:$0xff]
    %v5236 = vld [vmem:[#allocation11 + $0x40] sm:$0xff]
    %v5237 = vld [vmem:[#allocation11 + $0x48] sm:$0xff]
    %v5238 = vld [vmem:[#allocation11 + $0x50] sm:$0xff]
    %v5239 = vld [vmem:[#allocation11 + $0x58] sm:$0xff]
    %v5240 = vld [vmem:[#allocation11 + $0x60] sm:$0xff]
    %v5241 = vld [vmem:[#allocation11 + $0x68] sm:$0xff]
    %v5242 = vld [vmem:[#allocation11 + $0x70] sm:$0xff]
    %v5243 = vld [vmem:[#allocation11 + $0x78] sm:$0xff]
    %v5244 = vld [vmem:[#allocation11 + $0x80] sm:$0xff]
    %v5245 = vld [vmem:[#allocation11 + $0x88] sm:$0xff]
    %v5246 = vld [vmem:[#allocation11 + $0x90] sm:$0xff]
    %v5247 = vld [vmem:[#allocation11 + $0x98] sm:$0xff]
    %v5248 = vld [vmem:[#allocation11 + $0xa0] sm:$0xff]
    %v5249 = vld [vmem:[#allocation11 + $0xa8] sm:$0xff]
    %v5250 = vld [vmem:[#allocation11 + $0xb0] sm:$0xff]
    %v5251 = vld [vmem:[#allocation11 + $0xb8] sm:$0xff]
    %v5252 = vld [vmem:[#allocation11 + $0xc0] sm:$0xff]
    %v5253 = vld [vmem:[#allocation11 + $0xc8] sm:$0xff]
    %v5254 = vld [vmem:[#allocation11 + $0xd0] sm:$0xff]
    %v5255 = vld [vmem:[#allocation11 + $0xd8] sm:$0xff]
    %v5256 = vld [vmem:[#allocation11 + $0xe0] sm:$0xff]
    %v5257 = vld [vmem:[#allocation11 + $0xe8] sm:$0xff]
    %v5258 = vld [vmem:[#allocation11 + $0xf0] sm:$0xff]
    %v5259 = vld [vmem:[#allocation11 + $0xf8] sm:$0xff]
    %v5260 = vld [vmem:[#allocation11 + $0x100] sm:$0xff]
    %v5261 = vld [vmem:[#allocation11 + $0x108] sm:$0xff]
    %v5262 = vld [vmem:[#allocation11 + $0x110] sm:$0xff]
    %v5263 = vld [vmem:[#allocation11 + $0x118] sm:$0xff]
    %v5264 = vld [vmem:[#allocation11 + $0x120] sm:$0xff]
    %v5265 = vld [vmem:[#allocation11 + $0x128] sm:$0xff]
    %v5266 = vld [vmem:[#allocation11 + $0x130] sm:$0xff]
    %v5267 = vld [vmem:[#allocation11 + $0x138] sm:$0xff]
    %v5268 = vld [vmem:[#allocation11 + $0x140] sm:$0xff]
    %v5269 = vld [vmem:[#allocation11 + $0x148] sm:$0xff]
    %v5270 = vld [vmem:[#allocation11 + $0x150] sm:$0xff]
    %v5271 = vld [vmem:[#allocation11 + $0x158] sm:$0xff]
    %v5272 = vld [vmem:[#allocation11 + $0x160] sm:$0xff]
    %v5273 = vld [vmem:[#allocation11 + $0x168] sm:$0xff]
    %v5274 = vld [vmem:[#allocation11 + $0x170] sm:$0xff]
    %v5275 = vld [vmem:[#allocation11 + $0x178] sm:$0xff]
    %v5276 = vld [vmem:[#allocation11 + $0x180] sm:$0xff]
    %v5277 = vld [vmem:[#allocation11 + $0x188] sm:$0xff]
    %v5278 = vld [vmem:[#allocation11 + $0x190] sm:$0xff]
    %v5279 = vld [vmem:[#allocation11 + $0x198] sm:$0xff]
    %v5280 = vld [vmem:[#allocation11 + $0x1a0] sm:$0xff]
    %v5281 = vld [vmem:[#allocation11 + $0x1a8] sm:$0xff]
    %v5282 = vld [vmem:[#allocation11 + $0x1b0] sm:$0xff]
    %v5283 = vld [vmem:[#allocation11 + $0x1b8] sm:$0xff]
    %v5284 = vld [vmem:[#allocation11 + $0x1c0] sm:$0xff]
    %v5285 = vld [vmem:[#allocation11 + $0x1c8] sm:$0xff]
    %v5286 = vld [vmem:[#allocation11 + $0x1d0] sm:$0xff]
    %v5287 = vld [vmem:[#allocation11 + $0x1d8] sm:$0xff]
    %v5288 = vld [vmem:[#allocation11 + $0x1e0] sm:$0xff]
    %v5289 = vld [vmem:[#allocation11 + $0x1e8] sm:$0xff]
    %v5290 = vld [vmem:[#allocation11 + $0x1f0] sm:$0xff]
    %v5291 = vld [vmem:[#allocation11 + $0x1f8] sm:$0xff]
    %v5356 = vunpack.c.l.b16 %v5228
    %v5357 = vunpack.c.h.b16 %v5228
    %v5358 = vunpack.c.l.b16 %v5229
    %v5359 = vunpack.c.h.b16 %v5229
    %v5360 = vunpack.c.l.b16 %v5230
    %v5361 = vunpack.c.h.b16 %v5230
    %v5362 = vunpack.c.l.b16 %v5231
    %v5363 = vunpack.c.h.b16 %v5231
    %v5364 = vunpack.c.l.b16 %v5232
    %v5365 = vunpack.c.h.b16 %v5232
    %v5366 = vunpack.c.l.b16 %v5233
    %v5367 = vunpack.c.h.b16 %v5233
    %v5368 = vunpack.c.l.b16 %v5234
    %v5369 = vunpack.c.h.b16 %v5234
    %v5370 = vunpack.c.l.b16 %v5235
    %v5371 = vunpack.c.h.b16 %v5235
    %v5372 = vunpack.c.l.b16 %v5236
    %v5373 = vunpack.c.h.b16 %v5236
    %v5374 = vunpack.c.l.b16 %v5237
    %v5375 = vunpack.c.h.b16 %v5237
    %v5376 = vunpack.c.l.b16 %v5238
    %v5377 = vunpack.c.h.b16 %v5238
    %v5378 = vunpack.c.l.b16 %v5239
    %v5379 = vunpack.c.h.b16 %v5239
    %v5380 = vunpack.c.l.b16 %v5240
    %v5381 = vunpack.c.h.b16 %v5240
    %v5382 = vunpack.c.l.b16 %v5241
    %v5383 = vunpack.c.h.b16 %v5241
    %v5384 = vunpack.c.l.b16 %v5242
    %v5385 = vunpack.c.h.b16 %v5242
    %v5386 = vunpack.c.l.b16 %v5243
    %v5387 = vunpack.c.h.b16 %v5243
    %v5388 = vunpack.c.l.b16 %v5244
    %v5389 = vunpack.c.h.b16 %v5244
    %v5390 = vunpack.c.l.b16 %v5245
    %v5391 = vunpack.c.h.b16 %v5245
    %v5392 = vunpack.c.l.b16 %v5246
    %v5393 = vunpack.c.h.b16 %v5246
    %v5394 = vunpack.c.l.b16 %v5247
    %v5395 = vunpack.c.h.b16 %v5247
    %v5396 = vunpack.c.l.b16 %v5248
    %v5397 = vunpack.c.h.b16 %v5248
    %v5398 = vunpack.c.l.b16 %v5249
    %v5399 = vunpack.c.h.b16 %v5249
    %v5400 = vunpack.c.l.b16 %v5250
    %v5401 = vunpack.c.h.b16 %v5250
    %v5402 = vunpack.c.l.b16 %v5251
    %v5403 = vunpack.c.h.b16 %v5251
    %v5404 = vunpack.c.l.b16 %v5252
    %v5405 = vunpack.c.h.b16 %v5252
    %v5406 = vunpack.c.l.b16 %v5253
    %v5407 = vunpack.c.h.b16 %v5253
    %v5408 = vunpack.c.l.b16 %v5254
    %v5409 = vunpack.c.h.b16 %v5254
    %v5410 = vunpack.c.l.b16 %v5255
    %v5411 = vunpack.c.h.b16 %v5255
    %v5412 = vunpack.c.l.b16 %v5256
    %v5413 = vunpack.c.h.b16 %v5256
    %v5414 = vunpack.c.l.b16 %v5257
    %v5415 = vunpack.c.h.b16 %v5257
    %v5416 = vunpack.c.l.b16 %v5258
    %v5417 = vunpack.c.h.b16 %v5258
    %v5418 = vunpack.c.l.b16 %v5259
    %v5419 = vunpack.c.h.b16 %v5259
    %v5420 = vunpack.c.l.b16 %v5260
    %v5421 = vunpack.c.h.b16 %v5260
    %v5422 = vunpack.c.l.b16 %v5261
    %v5423 = vunpack.c.h.b16 %v5261
    %v5424 = vunpack.c.l.b16 %v5262
    %v5425 = vunpack.c.h.b16 %v5262
    %v5426 = vunpack.c.l.b16 %v5263
    %v5427 = vunpack.c.h.b16 %v5263
    %v5428 = vunpack.c.l.b16 %v5264
    %v5429 = vunpack.c.h.b16 %v5264
    %v5430 = vunpack.c.l.b16 %v5265
    %v5431 = vunpack.c.h.b16 %v5265
    %v5432 = vunpack.c.l.b16 %v5266
    %v5433 = vunpack.c.h.b16 %v5266
    %v5434 = vunpack.c.l.b16 %v5267
    %v5435 = vunpack.c.h.b16 %v5267
    %v5436 = vunpack.c.l.b16 %v5268
    %v5437 = vunpack.c.h.b16 %v5268
    %v5438 = vunpack.c.l.b16 %v5269
    %v5439 = vunpack.c.h.b16 %v5269
    %v5440 = vunpack.c.l.b16 %v5270
    %v5441 = vunpack.c.h.b16 %v5270
    %v5442 = vunpack.c.l.b16 %v5271
    %v5443 = vunpack.c.h.b16 %v5271
    %v5444 = vunpack.c.l.b16 %v5272
    %v5445 = vunpack.c.h.b16 %v5272
    %v5446 = vunpack.c.l.b16 %v5273
    %v5447 = vunpack.c.h.b16 %v5273
    %v5448 = vunpack.c.l.b16 %v5274
    %v5449 = vunpack.c.h.b16 %v5274
    %v5450 = vunpack.c.l.b16 %v5275
    %v5451 = vunpack.c.h.b16 %v5275
    %v5452 = vunpack.c.l.b16 %v5276
    %v5453 = vunpack.c.h.b16 %v5276
    %v5454 = vunpack.c.l.b16 %v5277
    %v5455 = vunpack.c.h.b16 %v5277
    %v5456 = vunpack.c.l.b16 %v5278
    %v5457 = vunpack.c.h.b16 %v5278
    %v5458 = vunpack.c.l.b16 %v5279
    %v5459 = vunpack.c.h.b16 %v5279
    %v5460 = vunpack.c.l.b16 %v5280
    %v5461 = vunpack.c.h.b16 %v5280
    %v5462 = vunpack.c.l.b16 %v5281
    %v5463 = vunpack.c.h.b16 %v5281
    %v5464 = vunpack.c.l.b16 %v5282
    %v5465 = vunpack.c.h.b16 %v5282
    %v5466 = vunpack.c.l.b16 %v5283
    %v5467 = vunpack.c.h.b16 %v5283
    %v5468 = vunpack.c.l.b16 %v5284
    %v5469 = vunpack.c.h.b16 %v5284
    %v5470 = vunpack.c.l.b16 %v5285
    %v5471 = vunpack.c.h.b16 %v5285
    %v5472 = vunpack.c.l.b16 %v5286
    %v5473 = vunpack.c.h.b16 %v5286
    %v5474 = vunpack.c.l.b16 %v5287
    %v5475 = vunpack.c.h.b16 %v5287
    %v5476 = vunpack.c.l.b16 %v5288
    %v5477 = vunpack.c.h.b16 %v5288
    %v5478 = vunpack.c.l.b16 %v5289
    %v5479 = vunpack.c.h.b16 %v5289
    %v5480 = vunpack.c.l.b16 %v5290
    %v5481 = vunpack.c.h.b16 %v5290
    %v5482 = vunpack.c.l.b16 %v5291
    %v5483 = vunpack.c.h.b16 %v5291
    %v5484 = vpack.c.b16 %v5364, %v5356
    %v5485 = vpack.c.b16 %v5365, %v5357
    %v5486 = vpack.c.b16 %v5366, %v5358
    %v5487 = vpack.c.b16 %v5367, %v5359
    %v5488 = vpack.c.b16 %v5368, %v5360
    %v5489 = vpack.c.b16 %v5369, %v5361
    %v5490 = vpack.c.b16 %v5370, %v5362
    %v5491 = vpack.c.b16 %v5371, %v5363
    %v5492 = vpack.c.b16 %v5380, %v5372
    %v5493 = vpack.c.b16 %v5381, %v5373
    %v5494 = vpack.c.b16 %v5382, %v5374
    %v5495 = vpack.c.b16 %v5383, %v5375
    %v5496 = vpack.c.b16 %v5384, %v5376
    %v5497 = vpack.c.b16 %v5385, %v5377
    %v5498 = vpack.c.b16 %v5386, %v5378
    %v5499 = vpack.c.b16 %v5387, %v5379
    %v5500 = vpack.c.b16 %v5396, %v5388
    %v5501 = vpack.c.b16 %v5397, %v5389
    %v5502 = vpack.c.b16 %v5398, %v5390
    %v5503 = vpack.c.b16 %v5399, %v5391
    %v5504 = vpack.c.b16 %v5400, %v5392
    %v5505 = vpack.c.b16 %v5401, %v5393
    %v5506 = vpack.c.b16 %v5402, %v5394
    %v5507 = vpack.c.b16 %v5403, %v5395
    %v5508 = vpack.c.b16 %v5412, %v5404
    %v5509 = vpack.c.b16 %v5413, %v5405
    %v5510 = vpack.c.b16 %v5414, %v5406
    %v5511 = vpack.c.b16 %v5415, %v5407
    %v5512 = vpack.c.b16 %v5416, %v5408
    %v5513 = vpack.c.b16 %v5417, %v5409
    %v5514 = vpack.c.b16 %v5418, %v5410
    %v5515 = vpack.c.b16 %v5419, %v5411
    %v5516 = vpack.c.b16 %v5428, %v5420
    %v5517 = vpack.c.b16 %v5429, %v5421
    %v5518 = vpack.c.b16 %v5430, %v5422
    %v5519 = vpack.c.b16 %v5431, %v5423
    %v5520 = vpack.c.b16 %v5432, %v5424
    %v5521 = vpack.c.b16 %v5433, %v5425
    %v5522 = vpack.c.b16 %v5434, %v5426
    %v5523 = vpack.c.b16 %v5435, %v5427
    %v5524 = vpack.c.b16 %v5444, %v5436
    %v5525 = vpack.c.b16 %v5445, %v5437
    %v5526 = vpack.c.b16 %v5446, %v5438
    %v5527 = vpack.c.b16 %v5447, %v5439
    %v5528 = vpack.c.b16 %v5448, %v5440
    %v5529 = vpack.c.b16 %v5449, %v5441
    %v5530 = vpack.c.b16 %v5450, %v5442
    %v5531 = vpack.c.b16 %v5451, %v5443
    %v5532 = vpack.c.b16 %v5460, %v5452
    %v5533 = vpack.c.b16 %v5461, %v5453
    %v5534 = vpack.c.b16 %v5462, %v5454
    %v5535 = vpack.c.b16 %v5463, %v5455
    %v5536 = vpack.c.b16 %v5464, %v5456
    %v5537 = vpack.c.b16 %v5465, %v5457
    %v5538 = vpack.c.b16 %v5466, %v5458
    %v5539 = vpack.c.b16 %v5467, %v5459
    %v5540 = vpack.c.b16 %v5476, %v5468
    %v5541 = vpack.c.b16 %v5477, %v5469
    %v5542 = vpack.c.b16 %v5478, %v5470
    %v5543 = vpack.c.b16 %v5479, %v5471
    %v5544 = vpack.c.b16 %v5480, %v5472
    %v5545 = vpack.c.b16 %v5481, %v5473
    %v5546 = vpack.c.b16 %v5482, %v5474
    %v5547 = vpack.c.b16 %v5483, %v5475
    %5612 = vmatprep.subr.bf16.mxu0 %v5485
    %5613 = vmatpush1.bf16.msra.mxu0 %v5484
    %5614 = vmatprep.subr.bf16.mxu0 %v5493
    %5615 = vmatpush1.bf16.msra.mxu0 %v5492
    %5616 = vmatprep.subr.bf16.mxu0 %v5501
    %5617 = vmatpush1.bf16.msra.mxu0 %v5500
    %5618 = vmatprep.subr.bf16.mxu0 %v5509
    %5619 = vmatpush1.bf16.msra.mxu0 %v5508
    %5620 = vmatprep.subr.bf16.mxu0 %v5517
    %5621 = vmatpush1.bf16.msra.mxu0 %v5516
    %5622 = vmatprep.subr.bf16.mxu0 %v5525
    %5623 = vmatpush1.bf16.msra.mxu0 %v5524
    %5624 = vmatprep.subr.bf16.mxu0 %v5533
    %5625 = vmatpush1.bf16.msra.mxu0 %v5532
    %5626 = vmatprep.subr.bf16.mxu0 %v5541
    %5627 = vmatpush1.bf16.msra.mxu0 %v5540
    %5628 = vmatprep.subr.bf16.mxu0 0
    %5629 = vmatpush1.bf16.msra.mxu0 0
    %5630 = vmatprep.subr.bf16.mxu0 0
    %5631 = vmatpush1.bf16.msra.mxu0 0
    %5632 = vmatprep.subr.bf16.mxu0 0
    %5633 = vmatpush1.bf16.msra.mxu0 0
    %5634 = vmatprep.subr.bf16.mxu0 0
    %5635 = vmatpush1.bf16.msra.mxu0 0
    %5636 = vmatprep.subr.bf16.mxu0 0
    %5637 = vmatpush1.bf16.msra.mxu0 0
    %5638 = vmatprep.subr.bf16.mxu0 0
    %5639 = vmatpush1.bf16.msra.mxu0 0
    %5640 = vmatprep.subr.bf16.mxu0 0
    %5641 = vmatpush1.bf16.msra.mxu0 0
    %5642 = vmatprep.subr.bf16.mxu0 0
    %5643 = vmatpush1.bf16.msra.mxu0 0
    %5644 = vmatprep.mubr.bf16.mxu0 0
    %5645 = vmatmul.mubr.bf16.gmra.mrb[0].mxu0 %v5227
    %v5646 = vpop.f32.mrb[0].mxu0
    %v5647 = vadd.f32 0.0, %v5646
    %v5648 = vpop.f32.mrb[0].mxu0
    %v5649 = vadd.f32 0.0, %v5648
    %v5650 = vpop.f32.mrb[0].mxu0
    %v5651 = vpop.f32.mrb[0].mxu0
    %5652 = vdwg.mxu0
    %5653 = vmatprep.subr.bf16.mxu0 %v5487
    %5654 = vmatpush1.bf16.msra.mxu0 %v5486
    %5655 = vmatprep.subr.bf16.mxu0 %v5495
    %5656 = vmatpush1.bf16.msra.mxu0 %v5494
    %5657 = vmatprep.subr.bf16.mxu0 %v5503
    %5658 = vmatpush1.bf16.msra.mxu0 %v5502
    %5659 = vmatprep.subr.bf16.mxu0 %v5511
    %5660 = vmatpush1.bf16.msra.mxu0 %v5510
    %5661 = vmatprep.subr.bf16.mxu0 %v5519
    %5662 = vmatpush1.bf16.msra.mxu0 %v5518
    %5663 = vmatprep.subr.bf16.mxu0 %v5527
    %5664 = vmatpush1.bf16.msra.mxu0 %v5526
    %5665 = vmatprep.subr.bf16.mxu0 %v5535
    %5666 = vmatpush1.bf16.msra.mxu0 %v5534
    %5667 = vmatprep.subr.bf16.mxu0 %v5543
    %5668 = vmatpush1.bf16.msra.mxu0 %v5542
    %5669 = vmatprep.subr.bf16.mxu0 0
    %5670 = vmatpush1.bf16.msra.mxu0 0
    %5671 = vmatprep.subr.bf16.mxu0 0
    %5672 = vmatpush1.bf16.msra.mxu0 0
    %5673 = vmatprep.subr.bf16.mxu0 0
    %5674 = vmatpush1.bf16.msra.mxu0 0
    %5675 = vmatprep.subr.bf16.mxu0 0
    %5676 = vmatpush1.bf16.msra.mxu0 0
    %5677 = vmatprep.subr.bf16.mxu0 0
    %5678 = vmatpush1.bf16.msra.mxu0 0
    %5679 = vmatprep.subr.bf16.mxu0 0
    %5680 = vmatpush1.bf16.msra.mxu0 0
    %5681 = vmatprep.subr.bf16.mxu0 0
    %5682 = vmatpush1.bf16.msra.mxu0 0
    %5683 = vmatprep.subr.bf16.mxu0 0
    %5684 = vmatpush1.bf16.msra.mxu0 0
    %5685 = vmatprep.mubr.bf16.mxu0 0
    %5686 = vmatmul.mubr.bf16.gmra.mrb[0].mxu0 %v5227
    %v5687 = vpop.f32.mrb[0].mxu0
    %v5688 = vadd.f32 0.0, %v5687
    %v5689 = vpop.f32.mrb[0].mxu0
    %v5690 = vadd.f32 0.0, %v5689
    %v5691 = vpop.f32.mrb[0].mxu0
    %v5692 = vpop.f32.mrb[0].mxu0
    %5693 = vdwg.mxu0
    %5694 = vmatprep.subr.bf16.mxu0 %v5489
    %5695 = vmatpush1.bf16.msra.mxu0 %v5488
    %5696 = vmatprep.subr.bf16.mxu0 %v5497
    %5697 = vmatpush1.bf16.msra.mxu0 %v5496
    %5698 = vmatprep.subr.bf16.mxu0 %v5505
    %5699 = vmatpush1.bf16.msra.mxu0 %v5504
    %5700 = vmatprep.subr.bf16.mxu0 %v5513
    %5701 = vmatpush1.bf16.msra.mxu0 %v5512
    %5702 = vmatprep.subr.bf16.mxu0 %v5521
    %5703 = vmatpush1.bf16.msra.mxu0 %v5520
    %5704 = vmatprep.subr.bf16.mxu0 %v5529
    %5705 = vmatpush1.bf16.msra.mxu0 %v5528
    %5706 = vmatprep.subr.bf16.mxu0 %v5537
    %5707 = vmatpush1.bf16.msra.mxu0 %v5536
    %5708 = vmatprep.subr.bf16.mxu0 %v5545
    %5709 = vmatpush1.bf16.msra.mxu0 %v5544
    %5710 = vmatprep.subr.bf16.mxu0 0
    %5711 = vmatpush1.bf16.msra.mxu0 0
    %5712 = vmatprep.subr.bf16.mxu0 0
    %5713 = vmatpush1.bf16.msra.mxu0 0
    %5714 = vmatprep.subr.bf16.mxu0 0
    %5715 = vmatpush1.bf16.msra.mxu0 0
    %5716 = vmatprep.subr.bf16.mxu0 0
    %5717 = vmatpush1.bf16.msra.mxu0 0
    %5718 = vmatprep.subr.bf16.mxu0 0
    %5719 = vmatpush1.bf16.msra.mxu0 0
    %5720 = vmatprep.subr.bf16.mxu0 0
    %5721 = vmatpush1.bf16.msra.mxu0 0
    %5722 = vmatprep.subr.bf16.mxu0 0
    %5723 = vmatpush1.bf16.msra.mxu0 0
    %5724 = vmatprep.subr.bf16.mxu0 0
    %5725 = vmatpush1.bf16.msra.mxu0 0
    %5726 = vmatprep.mubr.bf16.mxu0 0
    %5727 = vmatmul.mubr.bf16.gmra.mrb[0].mxu0 %v5227
    %v5728 = vpop.f32.mrb[0].mxu0
    %v5729 = vadd.f32 0.0, %v5728
    %v5730 = vpop.f32.mrb[0].mxu0
    %v5731 = vadd.f32 0.0, %v5730
    %v5732 = vpop.f32.mrb[0].mxu0
    %v5733 = vpop.f32.mrb[0].mxu0
    %5734 = vdwg.mxu0
    %5735 = vmatprep.subr.bf16.mxu0 %v5491
    %5736 = vmatpush1.bf16.msra.mxu0 %v5490
    %5737 = vmatprep.subr.bf16.mxu0 %v5499
    %5738 = vmatpush1.bf16.msra.mxu0 %v5498
    %5739 = vmatprep.subr.bf16.mxu0 %v5507
    %5740 = vmatpush1.bf16.msra.mxu0 %v5506
    %5741 = vmatprep.subr.bf16.mxu0 %v5515
    %5742 = vmatpush1.bf16.msra.mxu0 %v5514
    %5743 = vmatprep.subr.bf16.mxu0 %v5523
    %5744 = vmatpush1.bf16.msra.mxu0 %v5522
    %5745 = vmatprep.subr.bf16.mxu0 %v5531
    %5746 = vmatpush1.bf16.msra.mxu0 %v5530
    %5747 = vmatprep.subr.bf16.mxu0 %v5539
    %5748 = vmatpush1.bf16.msra.mxu0 %v5538
    %5749 = vmatprep.subr.bf16.mxu0 %v5547
    %5750 = vmatpush1.bf16.msra.mxu0 %v5546
    %5751 = vmatprep.subr.bf16.mxu0 0
    %5752 = vmatpush1.bf16.msra.mxu0 0
    %5753 = vmatprep.subr.bf16.mxu0 0
    %5754 = vmatpush1.bf16.msra.mxu0 0
    %5755 = vmatprep.subr.bf16.mxu0 0
    %5756 = vmatpush1.bf16.msra.mxu0 0
    %5757 = vmatprep.subr.bf16.mxu0 0
    %5758 = vmatpush1.bf16.msra.mxu0 0
    %5759 = vmatprep.subr.bf16.mxu0 0
    %5760 = vmatpush1.bf16.msra.mxu0 0
    %5761 = vmatprep.subr.bf16.mxu0 0
    %5762 = vmatpush1.bf16.msra.mxu0 0
    %5763 = vmatprep.subr.bf16.mxu0 0
    %5764 = vmatpush1.bf16.msra.mxu0 0
    %5765 = vmatprep.subr.bf16.mxu0 0
    %5766 = vmatpush1.bf16.msra.mxu0 0
    %5767 = vmatprep.mubr.bf16.mxu0 0
    %5768 = vmatmul.mubr.bf16.gmra.mrb[0].mxu0 %v5227
    %v5769 = vpop.f32.mrb[0].mxu0
    %v5770 = vadd.f32 0.0, %v5769
    %v5771 = vpop.f32.mrb[0].mxu0
    %v5772 = vadd.f32 0.0, %v5771
    %v5773 = vpop.f32.mrb[0].mxu0
    %v5774 = vpop.f32.mrb[0].mxu0
    %5775 = vdwg.mxu0
    %v5904 = vunpack.c.l.b16 %v5099
    %v5905 = vunpack.c.h.b16 %v5099
    %v5906 = vunpack.c.l.b16 %v5100
    %v5907 = vunpack.c.h.b16 %v5100
    %v5908 = vunpack.c.l.b16 %v5101
    %v5909 = vunpack.c.h.b16 %v5101
    %v5910 = vunpack.c.l.b16 %v5102
    %v5911 = vunpack.c.h.b16 %v5102
    %v5912 = vunpack.c.l.b16 %v5103
    %v5913 = vunpack.c.h.b16 %v5103
    %v5914 = vunpack.c.l.b16 %v5104
    %v5915 = vunpack.c.h.b16 %v5104
    %v5916 = vunpack.c.l.b16 %v5105
    %v5917 = vunpack.c.h.b16 %v5105
    %v5918 = vunpack.c.l.b16 %v5106
    %v5919 = vunpack.c.h.b16 %v5106
    %v5920 = vunpack.c.l.b16 %v5107
    %v5921 = vunpack.c.h.b16 %v5107
    %v5922 = vunpack.c.l.b16 %v5108
    %v5923 = vunpack.c.h.b16 %v5108
    %v5924 = vunpack.c.l.b16 %v5109
    %v5925 = vunpack.c.h.b16 %v5109
    %v5926 = vunpack.c.l.b16 %v5110
    %v5927 = vunpack.c.h.b16 %v5110
    %v5928 = vunpack.c.l.b16 %v5111
    %v5929 = vunpack.c.h.b16 %v5111
    %v5930 = vunpack.c.l.b16 %v5112
    %v5931 = vunpack.c.h.b16 %v5112
    %v5932 = vunpack.c.l.b16 %v5113
    %v5933 = vunpack.c.h.b16 %v5113
    %v5934 = vunpack.c.l.b16 %v5114
    %v5935 = vunpack.c.h.b16 %v5114
    %v5936 = vunpack.c.l.b16 %v5115
    %v5937 = vunpack.c.h.b16 %v5115
    %v5938 = vunpack.c.l.b16 %v5116
    %v5939 = vunpack.c.h.b16 %v5116
    %v5940 = vunpack.c.l.b16 %v5117
    %v5941 = vunpack.c.h.b16 %v5117
    %v5942 = vunpack.c.l.b16 %v5118
    %v5943 = vunpack.c.h.b16 %v5118
    %v5944 = vunpack.c.l.b16 %v5119
    %v5945 = vunpack.c.h.b16 %v5119
    %v5946 = vunpack.c.l.b16 %v5120
    %v5947 = vunpack.c.h.b16 %v5120
    %v5948 = vunpack.c.l.b16 %v5121
    %v5949 = vunpack.c.h.b16 %v5121
    %v5950 = vunpack.c.l.b16 %v5122
    %v5951 = vunpack.c.h.b16 %v5122
    %v5952 = vunpack.c.l.b16 %v5123
    %v5953 = vunpack.c.h.b16 %v5123
    %v5954 = vunpack.c.l.b16 %v5124
    %v5955 = vunpack.c.h.b16 %v5124
    %v5956 = vunpack.c.l.b16 %v5125
    %v5957 = vunpack.c.h.b16 %v5125
    %v5958 = vunpack.c.l.b16 %v5126
    %v5959 = vunpack.c.h.b16 %v5126
    %v5960 = vunpack.c.l.b16 %v5127
    %v5961 = vunpack.c.h.b16 %v5127
    %v5962 = vunpack.c.l.b16 %v5128
    %v5963 = vunpack.c.h.b16 %v5128
    %v5964 = vunpack.c.l.b16 %v5129
    %v5965 = vunpack.c.h.b16 %v5129
    %v5966 = vunpack.c.l.b16 %v5130
    %v5967 = vunpack.c.h.b16 %v5130
    %v5968 = vunpack.c.l.b16 %v5131
    %v5969 = vunpack.c.h.b16 %v5131
    %v5970 = vunpack.c.l.b16 %v5132
    %v5971 = vunpack.c.h.b16 %v5132
    %v5972 = vunpack.c.l.b16 %v5133
    %v5973 = vunpack.c.h.b16 %v5133
    %v5974 = vunpack.c.l.b16 %v5134
    %v5975 = vunpack.c.h.b16 %v5134
    %v5976 = vunpack.c.l.b16 %v5135
    %v5977 = vunpack.c.h.b16 %v5135
    %v5978 = vunpack.c.l.b16 %v5136
    %v5979 = vunpack.c.h.b16 %v5136
    %v5980 = vunpack.c.l.b16 %v5137
    %v5981 = vunpack.c.h.b16 %v5137
    %v5982 = vunpack.c.l.b16 %v5138
    %v5983 = vunpack.c.h.b16 %v5138
    %v5984 = vunpack.c.l.b16 %v5139
    %v5985 = vunpack.c.h.b16 %v5139
    %v5986 = vunpack.c.l.b16 %v5140
    %v5987 = vunpack.c.h.b16 %v5140
    %v5988 = vunpack.c.l.b16 %v5141
    %v5989 = vunpack.c.h.b16 %v5141
    %v5990 = vunpack.c.l.b16 %v5142
    %v5991 = vunpack.c.h.b16 %v5142
    %v5992 = vunpack.c.l.b16 %v5143
    %v5993 = vunpack.c.h.b16 %v5143
    %v5994 = vunpack.c.l.b16 %v5144
    %v5995 = vunpack.c.h.b16 %v5144
    %v5996 = vunpack.c.l.b16 %v5145
    %v5997 = vunpack.c.h.b16 %v5145
    %v5998 = vunpack.c.l.b16 %v5146
    %v5999 = vunpack.c.h.b16 %v5146
    %v6000 = vunpack.c.l.b16 %v5147
    %v6001 = vunpack.c.h.b16 %v5147
    %v6002 = vunpack.c.l.b16 %v5148
    %v6003 = vunpack.c.h.b16 %v5148
    %v6004 = vunpack.c.l.b16 %v5149
    %v6005 = vunpack.c.h.b16 %v5149
    %v6006 = vunpack.c.l.b16 %v5150
    %v6007 = vunpack.c.h.b16 %v5150
    %v6008 = vunpack.c.l.b16 %v5151
    %v6009 = vunpack.c.h.b16 %v5151
    %v6010 = vunpack.c.l.b16 %v5152
    %v6011 = vunpack.c.h.b16 %v5152
    %v6012 = vunpack.c.l.b16 %v5153
    %v6013 = vunpack.c.h.b16 %v5153
    %v6014 = vunpack.c.l.b16 %v5154
    %v6015 = vunpack.c.h.b16 %v5154
    %v6016 = vunpack.c.l.b16 %v5155
    %v6017 = vunpack.c.h.b16 %v5155
    %v6018 = vunpack.c.l.b16 %v5156
    %v6019 = vunpack.c.h.b16 %v5156
    %v6020 = vunpack.c.l.b16 %v5157
    %v6021 = vunpack.c.h.b16 %v5157
    %v6022 = vunpack.c.l.b16 %v5158
    %v6023 = vunpack.c.h.b16 %v5158
    %v6024 = vunpack.c.l.b16 %v5159
    %v6025 = vunpack.c.h.b16 %v5159
    %v6026 = vunpack.c.l.b16 %v5160
    %v6027 = vunpack.c.h.b16 %v5160
    %v6028 = vunpack.c.l.b16 %v5161
    %v6029 = vunpack.c.h.b16 %v5161
    %v6030 = vunpack.c.l.b16 %v5162
    %v6031 = vunpack.c.h.b16 %v5162
    %v6032 = vunpack.c.l.b16 %v5163
    %v6033 = vunpack.c.h.b16 %v5163
    %v6034 = vunpack.c.l.b16 %v5164
    %v6035 = vunpack.c.h.b16 %v5164
    %v6036 = vunpack.c.l.b16 %v5165
    %v6037 = vunpack.c.h.b16 %v5165
    %v6038 = vunpack.c.l.b16 %v5166
    %v6039 = vunpack.c.h.b16 %v5166
    %v6040 = vunpack.c.l.b16 %v5167
    %v6041 = vunpack.c.h.b16 %v5167
    %v6042 = vunpack.c.l.b16 %v5168
    %v6043 = vunpack.c.h.b16 %v5168
    %v6044 = vunpack.c.l.b16 %v5169
    %v6045 = vunpack.c.h.b16 %v5169
    %v6046 = vunpack.c.l.b16 %v5170
    %v6047 = vunpack.c.h.b16 %v5170
    %v6048 = vunpack.c.l.b16 %v5171
    %v6049 = vunpack.c.h.b16 %v5171
    %v6050 = vunpack.c.l.b16 %v5172
    %v6051 = vunpack.c.h.b16 %v5172
    %v6052 = vunpack.c.l.b16 %v5173
    %v6053 = vunpack.c.h.b16 %v5173
    %v6054 = vunpack.c.l.b16 %v5174
    %v6055 = vunpack.c.h.b16 %v5174
    %v6056 = vunpack.c.l.b16 %v5175
    %v6057 = vunpack.c.h.b16 %v5175
    %v6058 = vunpack.c.l.b16 %v5176
    %v6059 = vunpack.c.h.b16 %v5176
    %v6060 = vunpack.c.l.b16 %v5177
    %v6061 = vunpack.c.h.b16 %v5177
    %v6062 = vunpack.c.l.b16 %v5178
    %v6063 = vunpack.c.h.b16 %v5178
    %v6064 = vunpack.c.l.b16 %v5179
    %v6065 = vunpack.c.h.b16 %v5179
    %v6066 = vunpack.c.l.b16 %v5180
    %v6067 = vunpack.c.h.b16 %v5180
    %v6068 = vunpack.c.l.b16 %v5181
    %v6069 = vunpack.c.h.b16 %v5181
    %v6070 = vunpack.c.l.b16 %v5182
    %v6071 = vunpack.c.h.b16 %v5182
    %v6072 = vunpack.c.l.b16 %v5183
    %v6073 = vunpack.c.h.b16 %v5183
    %v6074 = vunpack.c.l.b16 %v5184
    %v6075 = vunpack.c.h.b16 %v5184
    %v6076 = vunpack.c.l.b16 %v5185
    %v6077 = vunpack.c.h.b16 %v5185
    %v6078 = vunpack.c.l.b16 %v5186
    %v6079 = vunpack.c.h.b16 %v5186
    %v6080 = vunpack.c.l.b16 %v5187
    %v6081 = vunpack.c.h.b16 %v5187
    %v6082 = vunpack.c.l.b16 %v5188
    %v6083 = vunpack.c.h.b16 %v5188
    %v6084 = vunpack.c.l.b16 %v5189
    %v6085 = vunpack.c.h.b16 %v5189
    %v6086 = vunpack.c.l.b16 %v5190
    %v6087 = vunpack.c.h.b16 %v5190
    %v6088 = vunpack.c.l.b16 %v5191
    %v6089 = vunpack.c.h.b16 %v5191
    %v6090 = vunpack.c.l.b16 %v5192
    %v6091 = vunpack.c.h.b16 %v5192
    %v6092 = vunpack.c.l.b16 %v5193
    %v6093 = vunpack.c.h.b16 %v5193
    %v6094 = vunpack.c.l.b16 %v5194
    %v6095 = vunpack.c.h.b16 %v5194
    %v6096 = vunpack.c.l.b16 %v5195
    %v6097 = vunpack.c.h.b16 %v5195
    %v6098 = vunpack.c.l.b16 %v5196
    %v6099 = vunpack.c.h.b16 %v5196
    %v6100 = vunpack.c.l.b16 %v5197
    %v6101 = vunpack.c.h.b16 %v5197
    %v6102 = vunpack.c.l.b16 %v5198
    %v6103 = vunpack.c.h.b16 %v5198
    %v6104 = vunpack.c.l.b16 %v5199
    %v6105 = vunpack.c.h.b16 %v5199
    %v6106 = vunpack.c.l.b16 %v5200
    %v6107 = vunpack.c.h.b16 %v5200
    %v6108 = vunpack.c.l.b16 %v5201
    %v6109 = vunpack.c.h.b16 %v5201
    %v6110 = vunpack.c.l.b16 %v5202
    %v6111 = vunpack.c.h.b16 %v5202
    %v6112 = vunpack.c.l.b16 %v5203
    %v6113 = vunpack.c.h.b16 %v5203
    %v6114 = vunpack.c.l.b16 %v5204
    %v6115 = vunpack.c.h.b16 %v5204
    %v6116 = vunpack.c.l.b16 %v5205
    %v6117 = vunpack.c.h.b16 %v5205
    %v6118 = vunpack.c.l.b16 %v5206
    %v6119 = vunpack.c.h.b16 %v5206
    %v6120 = vunpack.c.l.b16 %v5207
    %v6121 = vunpack.c.h.b16 %v5207
    %v6122 = vunpack.c.l.b16 %v5208
    %v6123 = vunpack.c.h.b16 %v5208
    %v6124 = vunpack.c.l.b16 %v5209
    %v6125 = vunpack.c.h.b16 %v5209
    %v6126 = vunpack.c.l.b16 %v5210
    %v6127 = vunpack.c.h.b16 %v5210
    %v6128 = vunpack.c.l.b16 %v5211
    %v6129 = vunpack.c.h.b16 %v5211
    %v6130 = vunpack.c.l.b16 %v5212
    %v6131 = vunpack.c.h.b16 %v5212
    %v6132 = vunpack.c.l.b16 %v5213
    %v6133 = vunpack.c.h.b16 %v5213
    %v6134 = vunpack.c.l.b16 %v5214
    %v6135 = vunpack.c.h.b16 %v5214
    %v6136 = vunpack.c.l.b16 %v5215
    %v6137 = vunpack.c.h.b16 %v5215
    %v6138 = vunpack.c.l.b16 %v5216
    %v6139 = vunpack.c.h.b16 %v5216
    %v6140 = vunpack.c.l.b16 %v5217
    %v6141 = vunpack.c.h.b16 %v5217
    %v6142 = vunpack.c.l.b16 %v5218
    %v6143 = vunpack.c.h.b16 %v5218
    %v6144 = vunpack.c.l.b16 %v5219
    %v6145 = vunpack.c.h.b16 %v5219
    %v6146 = vunpack.c.l.b16 %v5220
    %v6147 = vunpack.c.h.b16 %v5220
    %v6148 = vunpack.c.l.b16 %v5221
    %v6149 = vunpack.c.h.b16 %v5221
    %v6150 = vunpack.c.l.b16 %v5222
    %v6151 = vunpack.c.h.b16 %v5222
    %v6152 = vunpack.c.l.b16 %v5223
    %v6153 = vunpack.c.h.b16 %v5223
    %v6154 = vunpack.c.l.b16 %v5224
    %v6155 = vunpack.c.h.b16 %v5224
    %v6156 = vunpack.c.l.b16 %v5225
    %v6157 = vunpack.c.h.b16 %v5225
    %v6158 = vunpack.c.l.b16 %v5226
    %v6159 = vunpack.c.h.b16 %v5226
    %v6160 = vpack.c.b16 %v5912, %v5904
    %v6161 = vpack.c.b16 %v5913, %v5905
    %v6162 = vpack.c.b16 %v5914, %v5906
    %v6163 = vpack.c.b16 %v5915, %v5907
    %v6164 = vpack.c.b16 %v5916, %v5908
    %v6165 = vpack.c.b16 %v5917, %v5909
    %v6166 = vpack.c.b16 %v5918, %v5910
    %v6167 = vpack.c.b16 %v5919, %v5911
    %v6168 = vpack.c.b16 %v5928, %v5920
    %v6169 = vpack.c.b16 %v5929, %v5921
    %v6170 = vpack.c.b16 %v5930, %v5922
    %v6171 = vpack.c.b16 %v5931, %v5923
    %v6172 = vpack.c.b16 %v5932, %v5924
    %v6173 = vpack.c.b16 %v5933, %v5925
    %v6174 = vpack.c.b16 %v5934, %v5926
    %v6175 = vpack.c.b16 %v5935, %v5927
    %v6176 = vpack.c.b16 %v5944, %v5936
    %v6177 = vpack.c.b16 %v5945, %v5937
    %v6178 = vpack.c.b16 %v5946, %v5938
    %v6179 = vpack.c.b16 %v5947, %v5939
    %v6180 = vpack.c.b16 %v5948, %v5940
    %v6181 = vpack.c.b16 %v5949, %v5941
    %v6182 = vpack.c.b16 %v5950, %v5942
    %v6183 = vpack.c.b16 %v5951, %v5943
    %v6184 = vpack.c.b16 %v5960, %v5952
    %v6185 = vpack.c.b16 %v5961, %v5953
    %v6186 = vpack.c.b16 %v5962, %v5954
    %v6187 = vpack.c.b16 %v5963, %v5955
    %v6188 = vpack.c.b16 %v5964, %v5956
    %v6189 = vpack.c.b16 %v5965, %v5957
    %v6190 = vpack.c.b16 %v5966, %v5958
    %v6191 = vpack.c.b16 %v5967, %v5959
    %v6192 = vpack.c.b16 %v5976, %v5968
    %v6193 = vpack.c.b16 %v5977, %v5969
    %v6194 = vpack.c.b16 %v5978, %v5970
    %v6195 = vpack.c.b16 %v5979, %v5971
    %v6196 = vpack.c.b16 %v5980, %v5972
    %v6197 = vpack.c.b16 %v5981, %v5973
    %v6198 = vpack.c.b16 %v5982, %v5974
    %v6199 = vpack.c.b16 %v5983, %v5975
    %v6200 = vpack.c.b16 %v5992, %v5984
    %v6201 = vpack.c.b16 %v5993, %v5985
    %v6202 = vpack.c.b16 %v5994, %v5986
    %v6203 = vpack.c.b16 %v5995, %v5987
    %v6204 = vpack.c.b16 %v5996, %v5988
    %v6205 = vpack.c.b16 %v5997, %v5989
    %v6206 = vpack.c.b16 %v5998, %v5990
    %v6207 = vpack.c.b16 %v5999, %v5991
    %v6208 = vpack.c.b16 %v6008, %v6000
    %v6209 = vpack.c.b16 %v6009, %v6001
    %v6210 = vpack.c.b16 %v6010, %v6002
    %v6211 = vpack.c.b16 %v6011, %v6003
    %v6212 = vpack.c.b16 %v6012, %v6004
    %v6213 = vpack.c.b16 %v6013, %v6005
    %v6214 = vpack.c.b16 %v6014, %v6006
    %v6215 = vpack.c.b16 %v6015, %v6007
    %v6216 = vpack.c.b16 %v6024, %v6016
    %v6217 = vpack.c.b16 %v6025, %v6017
    %v6218 = vpack.c.b16 %v6026, %v6018
    %v6219 = vpack.c.b16 %v6027, %v6019
    %v6220 = vpack.c.b16 %v6028, %v6020
    %v6221 = vpack.c.b16 %v6029, %v6021
    %v6222 = vpack.c.b16 %v6030, %v6022
    %v6223 = vpack.c.b16 %v6031, %v6023
    %v6224 = vpack.c.b16 %v6040, %v6032
    %v6225 = vpack.c.b16 %v6041, %v6033
    %v6226 = vpack.c.b16 %v6042, %v6034
    %v6227 = vpack.c.b16 %v6043, %v6035
    %v6228 = vpack.c.b16 %v6044, %v6036
    %v6229 = vpack.c.b16 %v6045, %v6037
    %v6230 = vpack.c.b16 %v6046, %v6038
    %v6231 = vpack.c.b16 %v6047, %v6039
    %v6232 = vpack.c.b16 %v6056, %v6048
    %v6233 = vpack.c.b16 %v6057, %v6049
    %v6234 = vpack.c.b16 %v6058, %v6050
    %v6235 = vpack.c.b16 %v6059, %v6051
    %v6236 = vpack.c.b16 %v6060, %v6052
    %v6237 = vpack.c.b16 %v6061, %v6053
    %v6238 = vpack.c.b16 %v6062, %v6054
    %v6239 = vpack.c.b16 %v6063, %v6055
    %v6240 = vpack.c.b16 %v6072, %v6064
    %v6241 = vpack.c.b16 %v6073, %v6065
    %v6242 = vpack.c.b16 %v6074, %v6066
    %v6243 = vpack.c.b16 %v6075, %v6067
    %v6244 = vpack.c.b16 %v6076, %v6068
    %v6245 = vpack.c.b16 %v6077, %v6069
    %v6246 = vpack.c.b16 %v6078, %v6070
    %v6247 = vpack.c.b16 %v6079, %v6071
    %v6248 = vpack.c.b16 %v6088, %v6080
    %v6249 = vpack.c.b16 %v6089, %v6081
    %v6250 = vpack.c.b16 %v6090, %v6082
    %v6251 = vpack.c.b16 %v6091, %v6083
    %v6252 = vpack.c.b16 %v6092, %v6084
    %v6253 = vpack.c.b16 %v6093, %v6085
    %v6254 = vpack.c.b16 %v6094, %v6086
    %v6255 = vpack.c.b16 %v6095, %v6087
    %v6256 = vpack.c.b16 %v6104, %v6096
    %v6257 = vpack.c.b16 %v6105, %v6097
    %v6258 = vpack.c.b16 %v6106, %v6098
    %v6259 = vpack.c.b16 %v6107, %v6099
    %v6260 = vpack.c.b16 %v6108, %v6100
    %v6261 = vpack.c.b16 %v6109, %v6101
    %v6262 = vpack.c.b16 %v6110, %v6102
    %v6263 = vpack.c.b16 %v6111, %v6103
    %v6264 = vpack.c.b16 %v6120, %v6112
    %v6265 = vpack.c.b16 %v6121, %v6113
    %v6266 = vpack.c.b16 %v6122, %v6114
    %v6267 = vpack.c.b16 %v6123, %v6115
    %v6268 = vpack.c.b16 %v6124, %v6116
    %v6269 = vpack.c.b16 %v6125, %v6117
    %v6270 = vpack.c.b16 %v6126, %v6118
    %v6271 = vpack.c.b16 %v6127, %v6119
    %v6272 = vpack.c.b16 %v6136, %v6128
    %v6273 = vpack.c.b16 %v6137, %v6129
    %v6274 = vpack.c.b16 %v6138, %v6130
    %v6275 = vpack.c.b16 %v6139, %v6131
    %v6276 = vpack.c.b16 %v6140, %v6132
    %v6277 = vpack.c.b16 %v6141, %v6133
    %v6278 = vpack.c.b16 %v6142, %v6134
    %v6279 = vpack.c.b16 %v6143, %v6135
    %v6280 = vpack.c.b16 %v6152, %v6144
    %v6281 = vpack.c.b16 %v6153, %v6145
    %v6282 = vpack.c.b16 %v6154, %v6146
    %v6283 = vpack.c.b16 %v6155, %v6147
    %v6284 = vpack.c.b16 %v6156, %v6148
    %v6285 = vpack.c.b16 %v6157, %v6149
    %v6286 = vpack.c.b16 %v6158, %v6150
    %v6287 = vpack.c.b16 %v6159, %v6151
    %6416 = vmatprep.subr.bf16.mxu0 %v6161
    %6417 = vmatpush1.bf16.msra.mxu0 %v6160
    %6418 = vmatprep.subr.bf16.mxu0 %v6169
    %6419 = vmatpush1.bf16.msra.mxu0 %v6168
    %6420 = vmatprep.subr.bf16.mxu0 %v6177
    %6421 = vmatpush1.bf16.msra.mxu0 %v6176
    %6422 = vmatprep.subr.bf16.mxu0 %v6185
    %6423 = vmatpush1.bf16.msra.mxu0 %v6184
    %6424 = vmatprep.subr.bf16.mxu0 %v6193
    %6425 = vmatpush1.bf16.msra.mxu0 %v6192
    %6426 = vmatprep.subr.bf16.mxu0 %v6201
    %6427 = vmatpush1.bf16.msra.mxu0 %v6200
    %6428 = vmatprep.subr.bf16.mxu0 %v6209
    %6429 = vmatpush1.bf16.msra.mxu0 %v6208
    %6430 = vmatprep.subr.bf16.mxu0 %v6217
    %6431 = vmatpush1.bf16.msra.mxu0 %v6216
    %6432 = vmatprep.subr.bf16.mxu0 %v6225
    %6433 = vmatpush1.bf16.msra.mxu0 %v6224
    %6434 = vmatprep.subr.bf16.mxu0 %v6233
    %6435 = vmatpush1.bf16.msra.mxu0 %v6232
    %6436 = vmatprep.subr.bf16.mxu0 %v6241
    %6437 = vmatpush1.bf16.msra.mxu0 %v6240
    %6438 = vmatprep.subr.bf16.mxu0 %v6249
    %6439 = vmatpush1.bf16.msra.mxu0 %v6248
    %6440 = vmatprep.subr.bf16.mxu0 %v6257
    %6441 = vmatpush1.bf16.msra.mxu0 %v6256
    %6442 = vmatprep.subr.bf16.mxu0 %v6265
    %6443 = vmatpush1.bf16.msra.mxu0 %v6264
    %6444 = vmatprep.subr.bf16.mxu0 %v6273
    %6445 = vmatpush1.bf16.msra.mxu0 %v6272
    %6446 = vmatprep.subr.bf16.mxu0 %v6281
    %6447 = vmatpush1.bf16.msra.mxu0 %v6280
    %6448 = vmatprep.mubr.bf16.mxu0 %v5098
    %6449 = vmatmul.mubr.bf16.gmra.mrb[0].mxu0 %v5097
    %v6450 = vpop.f32.mrb[0].mxu0
    %v6451 = vadd.f32 %v5647, %v6450
    %v6452 = vpop.f32.mrb[0].mxu0
    %v6453 = vadd.f32 %v5649, %v6452
    %v6454 = vpop.f32.mrb[0].mxu0
    %v6455 = vpop.f32.mrb[0].mxu0
    %6456 = vdwg.mxu0
    %6457 = vmatprep.subr.bf16.mxu0 %v6163
    %6458 = vmatpush1.bf16.msra.mxu0 %v6162
    %6459 = vmatprep.subr.bf16.mxu0 %v6171
    %6460 = vmatpush1.bf16.msra.mxu0 %v6170
    %6461 = vmatprep.subr.bf16.mxu0 %v6179
    %6462 = vmatpush1.bf16.msra.mxu0 %v6178
    %6463 = vmatprep.subr.bf16.mxu0 %v6187
    %6464 = vmatpush1.bf16.msra.mxu0 %v6186
    %6465 = vmatprep.subr.bf16.mxu0 %v6195
    %6466 = vmatpush1.bf16.msra.mxu0 %v6194
    %6467 = vmatprep.subr.bf16.mxu0 %v6203
    %6468 = vmatpush1.bf16.msra.mxu0 %v6202
    %6469 = vmatprep.subr.bf16.mxu0 %v6211
    %6470 = vmatpush1.bf16.msra.mxu0 %v6210
    %6471 = vmatprep.subr.bf16.mxu0 %v6219
    %6472 = vmatpush1.bf16.msra.mxu0 %v6218
    %6473 = vmatprep.subr.bf16.mxu0 %v6227
    %6474 = vmatpush1.bf16.msra.mxu0 %v6226
    %6475 = vmatprep.subr.bf16.mxu0 %v6235
    %6476 = vmatpush1.bf16.msra.mxu0 %v6234
    %6477 = vmatprep.subr.bf16.mxu0 %v6243
    %6478 = vmatpush1.bf16.msra.mxu0 %v6242
    %6479 = vmatprep.subr.bf16.mxu0 %v6251
    %6480 = vmatpush1.bf16.msra.mxu0 %v6250
    %6481 = vmatprep.subr.bf16.mxu0 %v6259
    %6482 = vmatpush1.bf16.msra.mxu0 %v6258
    %6483 = vmatprep.subr.bf16.mxu0 %v6267
    %6484 = vmatpush1.bf16.msra.mxu0 %v6266
    %6485 = vmatprep.subr.bf16.mxu0 %v6275
    %6486 = vmatpush1.bf16.msra.mxu0 %v6274
    %6487 = vmatprep.subr.bf16.mxu0 %v6283
    %6488 = vmatpush1.bf16.msra.mxu0 %v6282
    %6489 = vmatprep.mubr.bf16.mxu0 %v5098
    %6490 = vmatmul.mubr.bf16.gmra.mrb[0].mxu0 %v5097
    %v6491 = vpop.f32.mrb[0].mxu0
    %v6492 = vadd.f32 %v5688, %v6491
    %v6493 = vpop.f32.mrb[0].mxu0
    %v6494 = vadd.f32 %v5690, %v6493
    %v6495 = vpop.f32.mrb[0].mxu0
    %v6496 = vpop.f32.mrb[0].mxu0
    %6497 = vdwg.mxu0
    %6498 = vmatprep.subr.bf16.mxu0 %v6165
    %6499 = vmatpush1.bf16.msra.mxu0 %v6164
    %6500 = vmatprep.subr.bf16.mxu0 %v6173
    %6501 = vmatpush1.bf16.msra.mxu0 %v6172
    %6502 = vmatprep.subr.bf16.mxu0 %v6181
    %6503 = vmatpush1.bf16.msra.mxu0 %v6180
    %6504 = vmatprep.subr.bf16.mxu0 %v6189
    %6505 = vmatpush1.bf16.msra.mxu0 %v6188
    %6506 = vmatprep.subr.bf16.mxu0 %v6197
    %6507 = vmatpush1.bf16.msra.mxu0 %v6196
    %6508 = vmatprep.subr.bf16.mxu0 %v6205
    %6509 = vmatpush1.bf16.msra.mxu0 %v6204
    %6510 = vmatprep.subr.bf16.mxu0 %v6213
    %6511 = vmatpush1.bf16.msra.mxu0 %v6212
    %6512 = vmatprep.subr.bf16.mxu0 %v6221
    %6513 = vmatpush1.bf16.msra.mxu0 %v6220
    %6514 = vmatprep.subr.bf16.mxu0 %v6229
    %6515 = vmatpush1.bf16.msra.mxu0 %v6228
    %6516 = vmatprep.subr.bf16.mxu0 %v6237
    %6517 = vmatpush1.bf16.msra.mxu0 %v6236
    %6518 = vmatprep.subr.bf16.mxu0 %v6245
    %6519 = vmatpush1.bf16.msra.mxu0 %v6244
    %6520 = vmatprep.subr.bf16.mxu0 %v6253
    %6521 = vmatpush1.bf16.msra.mxu0 %v6252
    %6522 = vmatprep.subr.bf16.mxu0 %v6261
    %6523 = vmatpush1.bf16.msra.mxu0 %v6260
    %6524 = vmatprep.subr.bf16.mxu0 %v6269
    %6525 = vmatpush1.bf16.msra.mxu0 %v6268
    %6526 = vmatprep.subr.bf16.mxu0 %v6277
    %6527 = vmatpush1.bf16.msra.mxu0 %v6276
    %6528 = vmatprep.subr.bf16.mxu0 %v6285
    %6529 = vmatpush1.bf16.msra.mxu0 %v6284
    %6530 = vmatprep.mubr.bf16.mxu0 %v5098
    %6531 = vmatmul.mubr.bf16.gmra.mrb[0].mxu0 %v5097
    %v6532 = vpop.f32.mrb[0].mxu0
    %v6533 = vadd.f32 %v5729, %v6532
    %v6534 = vpop.f32.mrb[0].mxu0
    %v6535 = vadd.f32 %v5731, %v6534
    %v6536 = vpop.f32.mrb[0].mxu0
    %v6537 = vpop.f32.mrb[0].mxu0
    %6538 = vdwg.mxu0
    %6539 = vmatprep.subr.bf16.mxu0 %v6167
    %6540 = vmatpush1.bf16.msra.mxu0 %v6166
    %6541 = vmatprep.subr.bf16.mxu0 %v6175
    %6542 = vmatpush1.bf16.msra.mxu0 %v6174
    %6543 = vmatprep.subr.bf16.mxu0 %v6183
    %6544 = vmatpush1.bf16.msra.mxu0 %v6182
    %6545 = vmatprep.subr.bf16.mxu0 %v6191
    %6546 = vmatpush1.bf16.msra.mxu0 %v6190
    %6547 = vmatprep.subr.bf16.mxu0 %v6199
    %6548 = vmatpush1.bf16.msra.mxu0 %v6198
    %6549 = vmatprep.subr.bf16.mxu0 %v6207
    %6550 = vmatpush1.bf16.msra.mxu0 %v6206
    %6551 = vmatprep.subr.bf16.mxu0 %v6215
    %6552 = vmatpush1.bf16.msra.mxu0 %v6214
    %6553 = vmatprep.subr.bf16.mxu0 %v6223
    %6554 = vmatpush1.bf16.msra.mxu0 %v6222
    %6555 = vmatprep.subr.bf16.mxu0 %v6231
    %6556 = vmatpush1.bf16.msra.mxu0 %v6230
    %6557 = vmatprep.subr.bf16.mxu0 %v6239
    %6558 = vmatpush1.bf16.msra.mxu0 %v6238
    %6559 = vmatprep.subr.bf16.mxu0 %v6247
    %6560 = vmatpush1.bf16.msra.mxu0 %v6246
    %6561 = vmatprep.subr.bf16.mxu0 %v6255
    %6562 = vmatpush1.bf16.msra.mxu0 %v6254
    %6563 = vmatprep.subr.bf16.mxu0 %v6263
    %6564 = vmatpush1.bf16.msra.mxu0 %v6262
    %6565 = vmatprep.subr.bf16.mxu0 %v6271
    %6566 = vmatpush1.bf16.msra.mxu0 %v6270
    %6567 = vmatprep.subr.bf16.mxu0 %v6279
    %6568 = vmatpush1.bf16.msra.mxu0 %v6278
    %6569 = vmatprep.subr.bf16.mxu0 %v6287
    %6570 = vmatpush1.bf16.msra.mxu0 %v6286
    %6571 = vmatprep.mubr.bf16.mxu0 %v5098
    %6572 = vmatmul.mubr.bf16.gmra.mrb[0].mxu0 %v5097
    %v6573 = vpop.f32.mrb[0].mxu0
    %v6574 = vadd.f32 %v5770, %v6573
    %v6575 = vpop.f32.mrb[0].mxu0
    %v6576 = vadd.f32 %v5772, %v6575
    %v6577 = vpop.f32.mrb[0].mxu0
    %v6578 = vpop.f32.mrb[0].mxu0
    %6579 = vdwg.mxu0
    %v6580 = vld [vmem:[#allocation13] sm:$0xff]
    %v6582 = vlaneseq
    %v6583 = vshrl.u32 %v6582, 7
    %v6584 = vsub.s32 0, %v6583
    %v6585 = vrot.slane %v6580, %v6584
    %v6586 = vlaneseq
    %v6587 = vshrl.u32 %v6586, 7
    %v6588 = vsub.s32 1, %v6587
    %v6589 = vrot.slane %v6580, %v6588
    %v6590 = vlaneseq
    %v6591 = vshrl.u32 %v6590, 7
    %v6592 = vsub.s32 2, %v6591
    %v6593 = vrot.slane %v6580, %v6592
    %v6594 = vlaneseq
    %v6595 = vshrl.u32 %v6594, 7
    %v6596 = vsub.s32 3, %v6595
    %v6597 = vrot.slane %v6580, %v6596
    %v6598 = vlaneseq
    %v6599 = vshrl.u32 %v6598, 7
    %v6600 = vsub.s32 4, %v6599
    %v6601 = vrot.slane %v6580, %v6600
    %v6602 = vlaneseq
    %v6603 = vshrl.u32 %v6602, 7
    %v6604 = vsub.s32 5, %v6603
    %v6605 = vrot.slane %v6580, %v6604
    %v6606 = vlaneseq
    %v6607 = vshrl.u32 %v6606, 7
    %v6608 = vsub.s32 6, %v6607
    %v6609 = vrot.slane %v6580, %v6608
    %v6610 = vlaneseq
    %v6611 = vshrl.u32 %v6610, 7
    %v6612 = vsub.s32 7, %v6611
    %v6613 = vrot.slane %v6580, %v6612
    %v6622 = vadd.f32 %v6451, %v6585
    %v6623 = vadd.f32 %v6453, %v6589
    %v6624 = vadd.f32 %v6492, %v6593
    %v6625 = vadd.f32 %v6494, %v6597
    %v6626 = vadd.f32 %v6533, %v6601
    %v6627 = vadd.f32 %v6535, %v6605
    %v6628 = vadd.f32 %v6574, %v6609
    %v6629 = vadd.f32 %v6576, %v6613
    %v6630 = vmax.f32 %v6622, %v6624
    %v6631 = vmax.f32 %v6623, %v6625
    %v6632 = vmax.f32 %v6630, %v6626
    %v6633 = vmax.f32 %v6631, %v6627
    %v6634 = vmax.f32 %v6632, %v6628
    %v6635 = vmax.f32 %v6633, %v6629
    %v6636 = vld [vmem:[#allocation14] sm:$0x3]
    %v6638 = vlaneseq
    %v6639 = vshrl.u32 %v6638, 7
    %v6640 = vsub.s32 0, %v6639
    %v6641 = vrot.slane %v6636, %v6640
    %v6642 = vlaneseq
    %v6643 = vshrl.u32 %v6642, 7
    %v6644 = vsub.s32 1, %v6643
    %v6645 = vrot.slane %v6636, %v6644
    %v6648 = vmul.f32 %v6634, %v6641
    %v6649 = vmul.f32 %v6635, %v6645
    %v6650 = vadd.f32 %v6648, %v6649
    %6651 = vadd.xlane.f32.xlu0 %v6650
    %v6652 = vpop.xlane.xlu0 %6651
    %v6653 = vld [vmem:[#allocation2] sm:$0x1]
    %v6655 = vlaneseq
    %v6656 = vshrl.u32 %v6655, 7
    %v6657 = vsub.s32 0, %v6656
    %v6658 = vrot.slane %v6653, %v6657
    %v6660 = vadd.f32 %v6652, %v6658
    %v6661 = vxor.u32 %v6660, 2147483648
    %v6662 = vmul.f32 %v6661, 1.442695
    %v6663 = vpow.pop %v6662
    %v6664 = vadd.f32 %v6663, 1.0
    %v6665 = vrcp.pop %v6664
    %v6666 = vmul.f32 1.0, %v6665
    %vm6667 = vcmask 7168
    %6668 = vst.msk [vmem:[%s11] sm:$0xff] %vm6667, %v6666
    // Predicated region
    $region78: #{discriminator_forward.1} parent=1 // pred_check
      _
    $region79: #{discriminator_forward.1} parent=1 // pred_check_branch
      %6670 = sbr.rel (0) target = $region81
    $region80: #{discriminator_forward.1} parent=1 // pred_region
      _
    $region81: #{discriminator_forward.1} parent=1 // pred_fallthru
      _
    // Predicated region
    $region82: #{discriminator_forward.1} parent=1 // pred_check
      _
    $region83: #{discriminator_forward.1} parent=1 // pred_check_branch
      %6672 = sbr.rel (0) target = $region85
    $region84: #{discriminator_forward.1} parent=1 // pred_region
      _
    $region85: #{discriminator_forward.1} parent=1 // pred_fallthru
      _
    %6673 = vsyncpa [#allocation4], 1
    %6674 = vsyncpa [#allocation6], 1
    %6675 = vsyncpa [#allocation9], 1
    %6676 = vsyncpa [#allocation12], 1
    %6677 = vsyncpa [#allocation15], 1

</llo_original>
